<compile_context>
chip_gen: v5e
topology: v5e:2x2
jax: 0.10.0
libtpu: 0.0.40
codegen_flags: <defaults>
</compile_context>

<pallas_src>
import functools

import numpy as np
import jax
import jax.numpy as jnp
from jax import lax
from jax.experimental import pallas as pl
from jax.experimental.pallas import tpu as pltpu

CROSS_ATTN = "t2i"
LAMBDA_SOFTMAX = 4.0
MARGIN = 0.2


def _vmem_budget_bytes():
    """~75% of physical VMEM, capped at 96 MiB (leaves headroom for compiler
    scratch / double buffers; 48 MiB on v7x, 96 MiB on v5e/v6e)."""
    phys = 64 * 1024 * 1024
    try:
        phys = int(pltpu.get_tpu_info().vmem_capacity_bytes)
    except Exception:
        pass
    return min(phys * 3 // 4, 96 * 1024 * 1024)


# ----------------------------------------------------------------------------
# Kernel 1: xattn_score_t2i  (hot path)
# ----------------------------------------------------------------------------
def _xattn_t2i_kernel(img_ref, gram_ref, cap_ref, wmask_ref, w1sq_ref,
                      kpart_ref, s01_ref, sagg_ref, out_ref, *, lam):
    TB, R, D = img_ref.shape          # image tile
    TC, W, _ = cap_ref.shape          # caption tile
    N = TC * W                        # flattened (caption, word) lane dimension
    X = TB * R                        # flattened (image, region) row dimension

    img_bf = img_ref[...].reshape(X, D)          # bf16 (pre-cast in wrapper)
    cap_bf = cap_ref[...].reshape(N, D)          # bf16 (pre-cast in wrapper)

    # raw[(b,r), (c,w)] = <images[b,r,:], cap[c,w,:]>   -- one MXU matmul
    raw = lax.dot_general(img_bf, cap_bf, (((1,), (1,)), ((), ())),
                          preferred_element_type=jnp.float32)          # (X, N)

    # zero padded words (robust even if captions are not pre-zeroed)
    wm = wmask_ref[...].reshape(1, N)                                  # (1, N)
    raw = raw * wm

    # clipped_l2norm: LeakyReLU(0.1) then l2-normalize over the word dim.
    # Per-(image,region,caption) sum of squares via a tiny 0/1 group matmul
    # (no lane regrouping / swapaxes of the big tensor).
    lk = jnp.where(raw > 0, raw, 0.1 * raw)                            # (X, N)
    s01 = s01_ref[...]                                                 # (N, TC)
    gss = lax.dot_general(lk * lk, s01, (((1,), (0,)), ((), ())),
                          preferred_element_type=jnp.float32)          # (X, TC)
    inv_nrm_g = lax.rsqrt(gss + 1e-16)                                 # (X, TC)
    inv_nrm = lax.dot_general(inv_nrm_g, s01, (((1,), (1,)), ((), ())),
                              preferred_element_type=jnp.float32)      # (X, N)
    attn_n = lk * inv_nrm                                              # normalized

    # lambda softmax over regions r, masking r >= k_part[b]  (reduce over
    # axis=1 of the (TB, R, N) layout; no transpose)
    attn3 = attn_n.reshape(TB, R, N)
    kp = kpart_ref[...]                                                # (TB, 1)
    rmask = (lax.broadcasted_iota(jnp.int32, (TB, R), 1) < kp).astype(jnp.float32)
    e = jnp.exp(attn3 * lam) * rmask[:, :, None]                       # (TB, R, N)
    denom = jnp.sum(e, axis=1, keepdims=True)                          # (TB, 1, N)
    a_sm = e * pl.reciprocal(denom, approx=True)                       # (TB, R, N)

    # cosine(cap, weightedContext) without materializing weightedContext:
    #   <cap, wc> = sum_r a_sm * raw
    #   |wc|^2    = a_sm^T Gram a_sm  (Gram precomputed in the wrapper)
    raw3 = raw.reshape(TB, R, N)
    w12 = jnp.sum(a_sm * raw3, axis=1)                                 # (TB, N)
    gram = gram_ref[...]                                               # (TB, R, R)
    ga = lax.dot_general(gram, a_sm, (((2,), (1,)), ((0,), (0,))),
                         preferred_element_type=jnp.float32)           # (TB, R, N)
    w2sq = jnp.maximum(jnp.sum(a_sm * ga, axis=1), 0.0)                # (TB, N)
    w1sq = w1sq_ref[...].reshape(1, N)                                 # (1, N)

    # row_sim = w12 / clamp(|cap| * |wc|, eps)   (clamp folded into the rsqrt)
    row_sim = w12 * lax.rsqrt(jnp.maximum(w1sq * w2sq, 1e-16))         # (TB, N)

    # agg_func == "Mean": word selection and 1/n_word folded into sagg (N, TC)
    score_cb = lax.dot_general(sagg_ref[...], row_sim, (((0,), (1,)), ((), ())),
                               preferred_element_type=jnp.float32)     # (TC, TB)
    out_ref[...] = score_cb


def xattn_score_t2i(images, captions, cap_lens, k_part, lam=LAMBDA_SOFTMAX):
    """Returns scores in (n_caption, n_image) layout."""
    B, R, D = images.shape
    Bc, W, Dc = captions.shape
    assert Dc == D

    # Caption tile: lane-dense N = TC*W (~128 lanes); pad the caption batch to
    # a multiple of TC.  (On v5e/v6e, with 128 MiB VMEM, TC can be doubled.)
    TC = max(1, 128 // W) if W <= 128 else 1
    Bc_pad = -(-Bc // TC) * TC
    Gc = Bc_pad // TC
    N = TC * W

    # Image tile: full batch below 128 images (block == full dim), 128-wide
    # (lane-dense output stores) above; pad images to a multiple of TB.
    TB = 128 if B >= 128 else B
    B_pad = -(-B // TB) * TB
    Gb = B_pad // TB

    cap_lens = jnp.asarray(cap_lens, jnp.int32)
    k_part = jnp.asarray(k_part, jnp.int32)

    # Padding (zero features; length-1 dummies keep denominators finite).
    captions_p = jnp.zeros((Bc_pad, W, D), captions.dtype).at[:Bc].set(captions)
    cap_lens_p = jnp.ones((Bc_pad,), jnp.int32).at[:Bc].set(cap_lens)
    images_p = jnp.zeros((B_pad, R, D), images.dtype).at[:B].set(images)
    k_part_p = jnp.ones((B_pad,), jnp.int32).at[:B].set(k_part)

    # bf16 operands fed straight to the kernel.
    img_bf = images_p.astype(jnp.bfloat16)
    cap_bf = captions_p.astype(jnp.bfloat16)

    # Grid-invariant per-image Gram matrices, hoisted out of the grid loop.
    gram = jnp.einsum("brd,bsd->brs", img_bf, img_bf,
                      preferred_element_type=jnp.float32)              # (B_pad, R, R)

    # Word-validity mask + per-word caption squared norms in the kernel's
    # flattened (caption, word) lane order.
    wvalid = (jnp.arange(W)[None, :] < cap_lens_p[:, None]).astype(jnp.float32)
    wmask = wvalid.reshape(Gc, 1, N)
    w1sq = (jnp.sum(captions_p.astype(jnp.float32) ** 2, axis=-1) * wvalid
            ).reshape(Gc, 1, N)

    # 0/1 word->caption selector (tile invariant) and mean-agg matrix with
    # 1/n_word folded in (per caption tile).
    s01 = (jnp.arange(N)[:, None] // W ==
           jnp.arange(TC)[None, :]).astype(jnp.float32)                # (N, TC)
    inv_len = 1.0 / cap_lens_p.astype(jnp.float32)
    sagg = (s01[None, :, :] * inv_len.reshape(Gc, TC)[:, None, :]).reshape(Gc * N, TC)

    kpart2d = k_part_p.reshape(B_pad, 1)

    grid_spec = pltpu.PrefetchScalarGridSpec(
        num_scalar_prefetch=0,
        grid=(Gb, Gc),   # image tiles outer -> big image/Gram blocks stay resident
        in_specs=[
            pl.BlockSpec((TB, R, D), lambda bi, ci: (bi, 0, 0)),   # images (bf16)
            pl.BlockSpec((TB, R, R), lambda bi, ci: (bi, 0, 0)),   # gram (f32, hoisted)
            pl.BlockSpec((TC, W, D), lambda bi, ci: (ci, 0, 0)),   # caption tile (bf16)
            pl.BlockSpec((1, 1, N), lambda bi, ci: (ci, 0, 0)),    # word mask
            pl.BlockSpec((1, 1, N), lambda bi, ci: (ci, 0, 0)),    # |cap word|^2
            pl.BlockSpec((TB, 1), lambda bi, ci: (bi, 0)),         # k_part
            pl.BlockSpec((N, TC), lambda bi, ci: (0, 0)),          # word->caption sel
            pl.BlockSpec((N, TC), lambda bi, ci: (ci, 0)),         # mean-agg matrix
        ],
        out_specs=pl.BlockSpec((TC, TB), lambda bi, ci: (ci, bi)),  # disjoint blocks
    )
    scores = pl.pallas_call(
        functools.partial(_xattn_t2i_kernel, lam=float(lam)),
        grid_spec=grid_spec,
        out_shape=jax.ShapeDtypeStruct((Bc_pad, B_pad), jnp.float32),
        compiler_params=pltpu.CompilerParams(
            dimension_semantics=("parallel", "parallel"),
            vmem_limit_bytes=_vmem_budget_bytes()),
    )(img_bf, gram, cap_bf, wmask, w1sq, kpart2d, s01, sagg)
    return scores[:Bc, :B]


# ----------------------------------------------------------------------------
# Kernel 2: contrastive hinge loss over the (n_caption, n_image) score matrix.
# The (semi, hard) losses are invariant under transposing the score matrix, so
# the caption-major layout of kernel 1 is consumed directly — no transpose.
# ----------------------------------------------------------------------------
def _contrastive_loss_kernel(scores_ref, semi_ref, hard_ref, *, margin):
    s = scores_ref[...]                                      # (n, n) f32
    n = s.shape[0]
    ri = lax.broadcasted_iota(jnp.int32, (n, n), 0)
    cj = lax.broadcasted_iota(jnp.int32, (n, n), 1)
    eye = ri == cj
    d_row = jnp.sum(jnp.where(eye, s, 0.0), axis=1, keepdims=True)   # (n, 1)
    d_col = jnp.sum(jnp.where(eye, s, 0.0), axis=0, keepdims=True)   # (1, n)

    cost_a = jnp.maximum(margin + s - d_row, 0.0)
    cost_b = jnp.maximum(margin + s - d_col, 0.0)
    cost_a = jnp.where(eye, 0.0, cost_a)
    cost_b = jnp.where(eye, 0.0, cost_b)

    semi_a = jnp.where(s > d_row, 0.0, cost_a)               # semi-hard mining
    semi_b = jnp.where(s > d_col, 0.0, cost_b)

    # max_violation = False -> plain means
    semi_ref[0] = jnp.mean(semi_a) + jnp.mean(semi_b)
    hard_ref[0] = jnp.mean(cost_a) + jnp.mean(cost_b)


def contrastive_loss_forward(im, s, s_l, k_part, margin=MARGIN, lam=LAMBDA_SOFTMAX):
    scores_ci = xattn_score_t2i(im, s, s_l, k_part, lam)     # (n_caption, n_image)
    assert scores_ci.shape[0] == scores_ci.shape[1]
    semi, hard = pl.pallas_call(
        functools.partial(_contrastive_loss_kernel, margin=float(margin)),
        out_shape=(jax.ShapeDtypeStruct((1,), jnp.float32),
                   jax.ShapeDtypeStruct((1,), jnp.float32)),
        in_specs=[pl.BlockSpec(memory_space=pltpu.MemorySpace.VMEM)],
        out_specs=(pl.BlockSpec(memory_space=pltpu.MemorySpace.SMEM),
                   pl.BlockSpec(memory_space=pltpu.MemorySpace.SMEM)),
    )(scores_ci)
    return semi[0], hard[0], scores_ci


# ----------------------------------------------------------------------------
# Pure numpy reference (direct port of the PyTorch code path used above)
# ----------------------------------------------------------------------------
def _reference_forward(images, captions, cap_lens, k_part, lam, margin):
    images = np.asarray(images, dtype=np.float64)
    captions = np.asarray(captions, dtype=np.float64)
    cap_lens = np.asarray(cap_lens)
    k_part = np.asarray(k_part)
    B, R, D = images.shape
    sims = []
    for i in range(captions.shape[0]):
        nw = int(cap_lens[i])
        cap = captions[i, :nw, :]                                    # (nw, D)
        attn = np.einsum("brd,wd->brw", images, cap)                 # (B, R, nw)
        attn = np.where(attn > 0, attn, 0.1 * attn)
        attn = attn / (np.sqrt((attn ** 2).sum(axis=2, keepdims=True)) + 1e-8)
        attn = attn.transpose(0, 2, 1)                               # (B, nw, R)
        e = np.exp(attn * lam)
        mask = np.arange(R).reshape(1, 1, R) >= k_part.reshape(B, 1, 1)
        e = np.where(mask, 0.0, e)
        attn_sm = e / e.sum(axis=2, keepdims=True)
        wc = np.einsum("bwr,brd->bwd", attn_sm, images)              # (B, nw, D)
        w12 = (cap[None] * wc).sum(axis=2)
        w1 = np.sqrt((cap ** 2).sum(axis=1))[None]
        w2 = np.sqrt((wc ** 2).sum(axis=2))
        row_sim = w12 / np.maximum(w1 * w2, 1e-8)
        sims.append(row_sim.mean(axis=1, keepdims=True))
    scores = np.concatenate(sims, axis=1)                            # (B_img, B_cap)
    diag = np.diag(scores).reshape(B, 1)
    cost_s = np.clip(margin + scores - diag, 0.0, None)
    cost_im = np.clip(margin + scores - diag.T, 0.0, None)
    eye = np.eye(B, dtype=bool)
    cost_s[eye] = 0.0
    cost_im[eye] = 0.0
    semi_s = np.where(scores > diag, 0.0, cost_s)
    semi_im = np.where(scores > diag.T, 0.0, cost_im)
    return semi_s.mean() + semi_im.mean(), cost_s.mean() + cost_im.mean(), scores


if __name__ == "__main__":
    # n_image = n_caption = 32, 8 regions, 8 max words, d = 128
    # (W=8 -> TC=16 -> N=128 lane-dense; two caption tiles exercise the grid)
    B, R, W, D = 32, 8, 8, 128
    key = jax.random.PRNGKey(0)
    k1, k2, k3, k4 = jax.random.split(key, 4)
    images = jax.random.normal(k1, (B, R, D), dtype=jnp.float32)
    captions = jax.random.normal(k2, (B, W, D), dtype=jnp.float32)   # NOT pre-masked
    cap_lens = jax.random.randint(k3, (B,), 3, W + 1)     # true word counts in [3, W]
    k_part = jax.random.randint(k4, (B,), 2, R + 1)       # valid parts per image in [2, R]

    semi_loss, hard_loss, scores_ci = contrastive_loss_forward(
        images, captions, cap_lens, k_part)
    jax.block_until_ready((semi_loss, hard_loss, scores_ci))

    ref_semi, ref_hard, ref_scores = _reference_forward(
        images, captions, cap_lens, k_part, LAMBDA_SOFTMAX, MARGIN)

    # kernel scores are (caption, image); reference is (image, caption)
    assert np.allclose(np.asarray(scores_ci), ref_scores.T,
                       atol=3e-2, rtol=3e-2), "scores mismatch"
    assert abs(float(semi_loss) - float(ref_semi)) < 3e-2, "semi loss mismatch"
    assert abs(float(hard_loss) - float(ref_hard)) < 3e-2, "hard loss mismatch"

    print("KERNEL_OK")
</pallas_src>

<mosaic_0001>
module attributes {stable_mosaic.version = 11 : i64} {
  func.func @_xattn_t2i_kernel(%arg0: i32, %arg1: i32, %arg2: memref<32x8x128xbf16, #tpu.memory_space<vmem>>, %arg3: memref<32x8x8xf32, #tpu.memory_space<vmem>>, %arg4: memref<16x8x128xbf16, #tpu.memory_space<vmem>>, %arg5: memref<1x1x128xf32, #tpu.memory_space<vmem>>, %arg6: memref<1x1x128xf32, #tpu.memory_space<vmem>>, %arg7: memref<32x1xi32, #tpu.memory_space<vmem>>, %arg8: memref<128x16xf32, #tpu.memory_space<vmem>>, %arg9: memref<128x16xf32, #tpu.memory_space<vmem>>, %arg10: memref<16x32xf32, #tpu.memory_space<vmem>>) attributes {dimension_semantics = [#tpu.dimension_semantics<parallel>, #tpu.dimension_semantics<parallel>], iteration_bounds = array<i64: 1, 2>, scalar_prefetch = 0 : i64, scratch_operands = 0 : i64, tpu.core_type = #tpu.core_type<tc>, window_params = [{transform_indices = @transform_0, window_bounds = array<i64: 32, 8, 128>}, {transform_indices = @transform_1, window_bounds = array<i64: 32, 8, 8>}, {transform_indices = @transform_2, window_bounds = array<i64: 16, 8, 128>}, {transform_indices = @transform_3, window_bounds = array<i64: 1, 1, 128>}, {transform_indices = @transform_4, window_bounds = array<i64: 1, 1, 128>}, {transform_indices = @transform_5, window_bounds = array<i64: 32, 1>}, {pipeline_mode = #tpu.pipeline_mode<synchronous>, transform_indices = @transform_6, window_bounds = array<i64: 128, 16>}, {transform_indices = @transform_7, window_bounds = array<i64: 128, 16>}, {transform_indices = @transform_8, window_bounds = array<i64: 16, 32>}]} {
    %c0 = arith.constant 0 : index
    %c0_0 = arith.constant 0 : index
    %c0_1 = arith.constant 0 : index
    %0 = vector.load %arg2[%c0, %c0_0, %c0_1] : memref<32x8x128xbf16, #tpu.memory_space<vmem>>, vector<32x8x128xbf16>
    %1 = vector.shape_cast %0 : vector<32x8x128xbf16> to vector<256x128xbf16>
    %c0_2 = arith.constant 0 : index
    %c0_3 = arith.constant 0 : index
    %c0_4 = arith.constant 0 : index
    %2 = vector.load %arg4[%c0_2, %c0_3, %c0_4] : memref<16x8x128xbf16, #tpu.memory_space<vmem>>, vector<16x8x128xbf16>
    %3 = vector.shape_cast %2 : vector<16x8x128xbf16> to vector<128x128xbf16>
    %cst = arith.constant dense<0.000000e+00> : vector<256x128xf32>
    %4 = tpu.matmul %1, %3, %cst {dimension_numbers = #tpu.dot_dimension_numbers<[1], [1], [0], [0], [0, 0, 1, 0], [], []>} : vector<256x128xbf16>, vector<128x128xbf16>, vector<256x128xf32> -> vector<256x128xf32>
    %c0_5 = arith.constant 0 : index
    %c0_6 = arith.constant 0 : index
    %c0_7 = arith.constant 0 : index
    %5 = vector.load %arg5[%c0_5, %c0_6, %c0_7] : memref<1x1x128xf32, #tpu.memory_space<vmem>>, vector<1x1x128xf32>
    %6 = vector.shape_cast %5 : vector<1x1x128xf32> to vector<1x128xf32>
    %7 = vector.broadcast %6 : vector<1x128xf32> to vector<256x128xf32>
    %8 = arith.mulf %4, %7 : vector<256x128xf32>
    %cst_8 = arith.constant 0.000000e+00 : f32
    %9 = vector.broadcast %cst_8 : f32 to vector<256x128xf32>
    %10 = arith.cmpf ogt, %8, %9 : vector<256x128xf32>
    %cst_9 = arith.constant 1.000000e-01 : f32
    %11 = vector.broadcast %cst_9 : f32 to vector<256x128xf32>
    %12 = arith.mulf %11, %8 : vector<256x128xf32>
    %13 = arith.select %10, %8, %12 : vector<256x128xi1>, vector<256x128xf32>
    %c0_10 = arith.constant 0 : index
    %c0_11 = arith.constant 0 : index
    %14 = vector.load %arg8[%c0_10, %c0_11] : memref<128x16xf32, #tpu.memory_space<vmem>>, vector<128x16xf32>
    %15 = arith.mulf %13, %13 : vector<256x128xf32>
    %cst_12 = arith.constant dense<0.000000e+00> : vector<256x16xf32>
    %16 = tpu.matmul %15, %14, %cst_12 {dimension_numbers = #tpu.dot_dimension_numbers<[1], [0], [0], [1], [0, 0, 1, 1], [], []>} : vector<256x128xf32>, vector<128x16xf32>, vector<256x16xf32> -> vector<256x16xf32>
    %cst_13 = arith.constant 1.000000e-16 : f32
    %17 = vector.broadcast %cst_13 : f32 to vector<256x16xf32>
    %18 = arith.addf %16, %17 : vector<256x16xf32>
    %19 = math.rsqrt %18 : vector<256x16xf32>
    %cst_14 = arith.constant dense<0.000000e+00> : vector<256x128xf32>
    %20 = tpu.matmul %19, %14, %cst_14 {dimension_numbers = #tpu.dot_dimension_numbers<[1], [1], [0], [0], [0, 0, 1, 0], [], []>} : vector<256x16xf32>, vector<128x16xf32>, vector<256x128xf32> -> vector<256x128xf32>
    %21 = arith.mulf %13, %20 : vector<256x128xf32>
    %22 = vector.shape_cast %21 : vector<256x128xf32> to vector<32x8x128xf32>
    %c0_15 = arith.constant 0 : index
    %c0_16 = arith.constant 0 : index
    %23 = vector.load %arg7[%c0_15, %c0_16] : memref<32x1xi32, #tpu.memory_space<vmem>>, vector<32x1xi32>
    %24 = tpu.iota {dimensions = array<i32: 1>} : vector<32x8xi32>
    %25 = vector.broadcast %23 : vector<32x1xi32> to vector<32x8xi32>
    %26 = arith.cmpi slt, %24, %25 : vector<32x8xi32>
    %27 = arith.extui %26 : vector<32x8xi1> to vector<32x8xi32>
    %28 = arith.sitofp %27 : vector<32x8xi32> to vector<32x8xf32>
    %cst_17 = arith.constant 4.000000e+00 : f32
    %29 = vector.broadcast %cst_17 : f32 to vector<32x8x128xf32>
    %30 = arith.mulf %22, %29 : vector<32x8x128xf32>
    %31 = math.exp %30 : vector<32x8x128xf32>
    %32 = vector.shape_cast %28 : vector<32x8xf32> to vector<32x8x1xf32>
    %33 = vector.broadcast %32 : vector<32x8x1xf32> to vector<32x8x128xf32>
    %34 = arith.mulf %31, %33 : vector<32x8x128xf32>
    %cst_18 = arith.constant dense<0.000000e+00> : vector<32x128xf32>
    %35 = vector.multi_reduction <add>, %34, %cst_18 [1] : vector<32x8x128xf32> to vector<32x128xf32>
    %36 = vector.shape_cast %35 : vector<32x128xf32> to vector<32x1x128xf32>
    %37 = tpu.reciprocal %36 {approx = true} : vector<32x1x128xf32> -> vector<32x1x128xf32>
    %38 = vector.broadcast %37 : vector<32x1x128xf32> to vector<32x8x128xf32>
    %39 = arith.mulf %34, %38 : vector<32x8x128xf32>
    %40 = vector.shape_cast %8 : vector<256x128xf32> to vector<32x8x128xf32>
    %41 = arith.mulf %39, %40 : vector<32x8x128xf32>
    %cst_19 = arith.constant dense<0.000000e+00> : vector<32x128xf32>
    %42 = vector.multi_reduction <add>, %41, %cst_19 [1] : vector<32x8x128xf32> to vector<32x128xf32>
    %c0_20 = arith.constant 0 : index
    %c0_21 = arith.constant 0 : index
    %c0_22 = arith.constant 0 : index
    %43 = vector.load %arg3[%c0_20, %c0_21, %c0_22] : memref<32x8x8xf32, #tpu.memory_space<vmem>>, vector<32x8x8xf32>
    %cst_23 = arith.constant dense<0.000000e+00> : vector<32x8x128xf32>
    %44 = tpu.matmul %43, %39, %cst_23 {dimension_numbers = #tpu.dot_dimension_numbers<[2], [1], [1], [2], [0, 0, 0, 1, 1, 2], [0], [0]>} : vector<32x8x8xf32>, vector<32x8x128xf32>, vector<32x8x128xf32> -> vector<32x8x128xf32>
    %45 = arith.mulf %39, %44 : vector<32x8x128xf32>
    %cst_24 = arith.constant dense<0.000000e+00> : vector<32x128xf32>
    %46 = vector.multi_reduction <add>, %45, %cst_24 [1] : vector<32x8x128xf32> to vector<32x128xf32>
    %cst_25 = arith.constant 0.000000e+00 : f32
    %47 = vector.broadcast %cst_25 : f32 to vector<32x128xf32>
    %48 = arith.maximumf %46, %47 : vector<32x128xf32>
    %c0_26 = arith.constant 0 : index
    %c0_27 = arith.constant 0 : index
    %c0_28 = arith.constant 0 : index
    %49 = vector.load %arg6[%c0_26, %c0_27, %c0_28] : memref<1x1x128xf32, #tpu.memory_space<vmem>>, vector<1x1x128xf32>
    %50 = vector.shape_cast %49 : vector<1x1x128xf32> to vector<1x128xf32>
    %51 = vector.broadcast %50 : vector<1x128xf32> to vector<32x128xf32>
    %52 = arith.mulf %51, %48 : vector<32x128xf32>
    %cst_29 = arith.constant 1.000000e-16 : f32
    %53 = vector.broadcast %cst_29 : f32 to vector<32x128xf32>
    %54 = arith.maximumf %52, %53 : vector<32x128xf32>
    %55 = math.rsqrt %54 : vector<32x128xf32>
    %56 = arith.mulf %42, %55 : vector<32x128xf32>
    %c0_30 = arith.constant 0 : index
    %c0_31 = arith.constant 0 : index
    %57 = vector.load %arg9[%c0_30, %c0_31] : memref<128x16xf32, #tpu.memory_space<vmem>>, vector<128x16xf32>
    %cst_32 = arith.constant dense<0.000000e+00> : vector<16x32xf32>
    %58 = tpu.matmul %57, %56, %cst_32 {dimension_numbers = #tpu.dot_dimension_numbers<[0], [1], [1], [0], [0, 1, 1, 0], [], []>} : vector<128x16xf32>, vector<32x128xf32>, vector<16x32xf32> -> vector<16x32xf32>
    %c0_33 = arith.constant 0 : index
    %c0_34 = arith.constant 0 : index
    %59 = vector.load %arg10[%c0_33, %c0_34] : memref<16x32xf32, #tpu.memory_space<vmem>>, vector<16x32xf32>
    tpu.vector_store %arg10[%c0_33, %c0_34], %58 {strides = array<i32>} : memref<16x32xf32, #tpu.memory_space<vmem>>, vector<16x32xf32>,
    return
  }
  func.func @transform_0(%arg0: i32, %arg1: i32) -> (i32, i32, i32) {
    %c0_i32 = arith.constant 0 : i32
    %c0_i32_0 = arith.constant 0 : i32
    %c0_i32_1 = arith.constant 0 : i32
    return %arg0, %c0_i32, %c0_i32_0 : i32, i32, i32
  }
  func.func @transform_1(%arg0: i32, %arg1: i32) -> (i32, i32, i32) {
    %c0_i32 = arith.constant 0 : i32
    %c0_i32_0 = arith.constant 0 : i32
    %c0_i32_1 = arith.constant 0 : i32
    return %arg0, %c0_i32, %c0_i32_0 : i32, i32, i32
  }
  func.func @transform_2(%arg0: i32, %arg1: i32) -> (i32, i32, i32) {
    %c0_i32 = arith.constant 0 : i32
    %c0_i32_0 = arith.constant 0 : i32
    %c0_i32_1 = arith.constant 0 : i32
    return %arg1, %c0_i32, %c0_i32_0 : i32, i32, i32
  }
  func.func @transform_3(%arg0: i32, %arg1: i32) -> (i32, i32, i32) {
    %c0_i32 = arith.constant 0 : i32
    %c0_i32_0 = arith.constant 0 : i32
    %c0_i32_1 = arith.constant 0 : i32
    return %arg1, %c0_i32, %c0_i32_0 : i32, i32, i32
  }
  func.func @transform_4(%arg0: i32, %arg1: i32) -> (i32, i32, i32) {
    %c0_i32 = arith.constant 0 : i32
    %c0_i32_0 = arith.constant 0 : i32
    %c0_i32_1 = arith.constant 0 : i32
    return %arg1, %c0_i32, %c0_i32_0 : i32, i32, i32
  }
  func.func @transform_5(%arg0: i32, %arg1: i32) -> (i32, i32) {
    %c0_i32 = arith.constant 0 : i32
    %c0_i32_0 = arith.constant 0 : i32
    return %arg0, %c0_i32 : i32, i32
  }
  func.func @transform_6(%arg0: i32, %arg1: i32) -> (i32, i32) {
    %c0_i32 = arith.constant 0 : i32
    %c0_i32_0 = arith.constant 0 : i32
    %c0_i32_1 = arith.constant 0 : i32
    return %c0_i32, %c0_i32_0 : i32, i32
  }
  func.func @transform_7(%arg0: i32, %arg1: i32) -> (i32, i32) {
    %c0_i32 = arith.constant 0 : i32
    %c0_i32_0 = arith.constant 0 : i32
    return %arg1, %c0_i32 : i32, i32
  }
  func.func @transform_8(%arg0: i32, %arg1: i32) -> (i32, i32) {
    %c0_i32 = arith.constant 0 : i32
    return %arg1, %arg0 : i32, i32
  }
}

</mosaic_0001>

<llo_original>
// kernel: tpu_custom_call.1
$region0: #{tpu_custom_call.1}
  #allocation0 [shape = 'u32[]', space=smem, size = 0x4, offset = 0x4, fixed_abs, tag = 'smem constant byte address 0x4 - core index']
  #allocation1 [shape = 'u32[72,128]{1,0:T(1,128)}', space=vmem, size = 0x9000, scoped, tag = 'internal scratch']
  %s0 = inlined_call_operand.vmem [shape: bf16[32,8,128], index: 0, kind: input, shape index: {}]
  %s1 = inlined_call_operand.vmem [shape: f32[32,8,8], index: 1, kind: input, shape index: {}]
  %s2 = inlined_call_operand.vmem [shape: bf16[32,8,128], index: 2, kind: input, shape index: {}]
  %s3 = inlined_call_operand.vmem [shape: f32[2,1,128], index: 3, kind: input, shape index: {}]
  %s4 = inlined_call_operand.vmem [shape: f32[2,1,128], index: 4, kind: input, shape index: {}]
  %s5 = inlined_call_operand.vmem [shape: s32[32,1], index: 5, kind: input, shape index: {}]
  %s6 = inlined_call_operand.vmem [shape: f32[128,16], index: 6, kind: input, shape index: {}]
  %s7 = inlined_call_operand.vmem [shape: f32[256,16], index: 7, kind: input, shape index: {}]
  %s8 = inlined_call_operand.hbm [shape: f32[32,32], index: 8, kind: output, shape index: {}]
  %s9 = sld [smem:[#allocation0]]
  $region65: #{tpu_custom_call.1} parent=0
    _
  %s11 = ssub.s32 1, %s9
  %s12 = scalar_select 0, %s11, %s9
  $region1: #{tpu_custom_call.1} parent=0
    #allocation2 [shape = 'u8[16384]{0}', space=vmem, size = 0x4000, scoped, tag = 'output window, operand 0']
    #allocation3 [shape = 's32[2]{0}', space=sflag, size = 0x8, scoped, tag = 'scoped memory for tpu_custom_call.1']
    %13 = vsyncpa [#allocation3], 0
    %s14 = scalar_lea.sflag [#allocation3], 1
    %15 = vsyncpa %s14, 0
    loop: start=0, step=1, limit=4
    $region2: #{tpu_custom_call.1} parent=1 // loop_pre_header
      _
    $region3: #{tpu_custom_call.1} parent=1 // loop_header
      %s17 = sphi 0, %s21
      %p18 = scmp.ge.s32.totalorder %s17, 4
      %s24 = sphi 0, %s36
      %s25 = sphi 0, %s32
      %s26 = sphi 0, %s24
      %s27 = sphi 0, %s25
      %s28 = sphi 0, %s26
      %s29 = sphi 0, %s27
      %s39 = sphi 0, %s41
      %s42 = sphi 0, %s39
      %s43 = sphi 0, %s42
      %s59 = sphi 0, %s43
      %s65 = sphi 0, %s67
      %s68 = sphi 0, %s65
      %s69 = sphi 0, %s68
      %s85 = sphi 0, %s69
      %s91 = sphi 0, %s93
      %s94 = sphi 0, %s91
      %s95 = sphi 0, %s94
      %s111 = sphi 0, %s95
      %s117 = sphi 0, %s119
      %s120 = sphi 0, %s117
      %s121 = sphi 0, %s120
      %s137 = sphi 0, %s121
      %s143 = sphi 0, %s145
      %s146 = sphi 0, %s143
      %s147 = sphi 0, %s146
      %s163 = sphi 0, %s147
      %s169 = sphi 0, %s171
      %s172 = sphi 0, %s169
      %s173 = sphi 0, %s172
      %s189 = sphi 0, %s173
      %s193 = sphi 0, %s193
      %s195 = sphi 0, %s193
      %s196 = sphi 0, %s195
      %s210 = sphi 0, %s196
      %s216 = sphi 0, %s218
      %s219 = sphi 0, %s216
      %s220 = sphi 0, %s219
      %s236 = sphi 0, %s220
      %s244 = sphi 0, %s246
      %s247 = sphi 0, %s244
      %s248 = sphi 0, %s247
      %s264 = sphi 0, %s248
    $region4: #{tpu_custom_call.1} parent=1 // loop_header_branch
      %20 = sbr.rel (%p18) target = $region8
    $region5: #{tpu_custom_call.1} parent=1 // loop_body
      %s22 = ssub.s32 %s17, 1
      %s23 = ssub.s32 %s17, 2
      %s30 = sadd.s32 1, %s25
      %p31 = scmp.ge.s32.totalorder %s30, 2
      %s32 = scalar_select %p31, 0, %s30
      %s33 = sadd.s32 1, %s24
      %s34 = scalar_select %p31, %s33, %s24
      %p35 = scmp.ge.s32.totalorder %s34, 1
      %s36 = scalar_select %p35, 0, %s34
      %s37 = ssub.s32 %s24, %s36
      %p38 = scmp.eq.s32.totalorder %s37, 0
      %s40 = sadd.s32 %s39, 1
      %s41 = scalar_select %p38, %s39, %s40
      %p44 = pneg %p38
      %p45 = scmp.eq.s32.totalorder %s17, 1
      %p46 = por %p44, %p45
      %p47 = scmp.ne.s32.totalorder %s39, %s42
      %p48 = scmp.eq.s32.totalorder %s17, 0
      %p49 = por %p47, %p48
      %p50 = scmp.ne.s32.totalorder %s39, %s42
      %p51 = scmp.eq.s32.totalorder %s22, 1
      %p52 = por %p50, %p51
      %p53 = scmp.ne.s32.totalorder %s42, %s43
      %p54 = scmp.eq.s32.totalorder %s22, 0
      %p55 = por %p53, %p54
      %p56 = scmp.ne.s32.totalorder %s42, %s43
      %p57 = scmp.eq.s32.totalorder %s23, 1
      %p58 = por %p56, %p57
      %p60 = scmp.ne.s32.totalorder %s43, %s59
      %p61 = scmp.eq.s32.totalorder %s23, 0
      %p62 = por %p60, %p61
      %s63 = ssub.s32 %s24, %s36
      %p64 = scmp.eq.s32.totalorder %s63, 0
      %s66 = sadd.s32 %s65, 1
      %s67 = scalar_select %p64, %s65, %s66
      %p70 = pneg %p64
      %p71 = scmp.eq.s32.totalorder %s17, 1
      %p72 = por %p70, %p71
      %p73 = scmp.ne.s32.totalorder %s65, %s68
      %p74 = scmp.eq.s32.totalorder %s17, 0
      %p75 = por %p73, %p74
      %p76 = scmp.ne.s32.totalorder %s65, %s68
      %p77 = scmp.eq.s32.totalorder %s22, 1
      %p78 = por %p76, %p77
      %p79 = scmp.ne.s32.totalorder %s68, %s69
      %p80 = scmp.eq.s32.totalorder %s22, 0
      %p81 = por %p79, %p80
      %p82 = scmp.ne.s32.totalorder %s68, %s69
      %p83 = scmp.eq.s32.totalorder %s23, 1
      %p84 = por %p82, %p83
      %p86 = scmp.ne.s32.totalorder %s69, %s85
      %p87 = scmp.eq.s32.totalorder %s23, 0
      %p88 = por %p86, %p87
      %s89 = ssub.s32 %s25, %s32
      %p90 = scmp.eq.s32.totalorder %s89, 0
      %s92 = sadd.s32 %s91, 1
      %s93 = scalar_select %p90, %s91, %s92
      %p96 = pneg %p90
      %p97 = scmp.eq.s32.totalorder %s17, 1
      %p98 = por %p96, %p97
      %p99 = scmp.ne.s32.totalorder %s91, %s94
      %p100 = scmp.eq.s32.totalorder %s17, 0
      %p101 = por %p99, %p100
      %p102 = scmp.ne.s32.totalorder %s91, %s94
      %p103 = scmp.eq.s32.totalorder %s22, 1
      %p104 = por %p102, %p103
      %p105 = scmp.ne.s32.totalorder %s94, %s95
      %p106 = scmp.eq.s32.totalorder %s22, 0
      %p107 = por %p105, %p106
      %p108 = scmp.ne.s32.totalorder %s94, %s95
      %p109 = scmp.eq.s32.totalorder %s23, 1
      %p110 = por %p108, %p109
      %p112 = scmp.ne.s32.totalorder %s95, %s111
      %p113 = scmp.eq.s32.totalorder %s23, 0
      %p114 = por %p112, %p113
      %s115 = ssub.s32 %s25, %s32
      %p116 = scmp.eq.s32.totalorder %s115, 0
      %s118 = sadd.s32 %s117, 1
      %s119 = scalar_select %p116, %s117, %s118
      %p122 = pneg %p116
      %p123 = scmp.eq.s32.totalorder %s17, 1
      %p124 = por %p122, %p123
      %p125 = scmp.ne.s32.totalorder %s117, %s120
      %p126 = scmp.eq.s32.totalorder %s17, 0
      %p127 = por %p125, %p126
      %p128 = scmp.ne.s32.totalorder %s117, %s120
      %p129 = scmp.eq.s32.totalorder %s22, 1
      %p130 = por %p128, %p129
      %p131 = scmp.ne.s32.totalorder %s120, %s121
      %p132 = scmp.eq.s32.totalorder %s22, 0
      %p133 = por %p131, %p132
      %p134 = scmp.ne.s32.totalorder %s120, %s121
      %p135 = scmp.eq.s32.totalorder %s23, 1
      %p136 = por %p134, %p135
      %p138 = scmp.ne.s32.totalorder %s121, %s137
      %p139 = scmp.eq.s32.totalorder %s23, 0
      %p140 = por %p138, %p139
      %s141 = ssub.s32 %s25, %s32
      %p142 = scmp.eq.s32.totalorder %s141, 0
      %s144 = sadd.s32 %s143, 1
      %s145 = scalar_select %p142, %s143, %s144
      %p148 = pneg %p142
      %p149 = scmp.eq.s32.totalorder %s17, 1
      %p150 = por %p148, %p149
      %p151 = scmp.ne.s32.totalorder %s143, %s146
      %p152 = scmp.eq.s32.totalorder %s17, 0
      %p153 = por %p151, %p152
      %p154 = scmp.ne.s32.totalorder %s143, %s146
      %p155 = scmp.eq.s32.totalorder %s22, 1
      %p156 = por %p154, %p155
      %p157 = scmp.ne.s32.totalorder %s146, %s147
      %p158 = scmp.eq.s32.totalorder %s22, 0
      %p159 = por %p157, %p158
      %p160 = scmp.ne.s32.totalorder %s146, %s147
      %p161 = scmp.eq.s32.totalorder %s23, 1
      %p162 = por %p160, %p161
      %p164 = scmp.ne.s32.totalorder %s147, %s163
      %p165 = scmp.eq.s32.totalorder %s23, 0
      %p166 = por %p164, %p165
      %s167 = ssub.s32 %s24, %s36
      %p168 = scmp.eq.s32.totalorder %s167, 0
      %s170 = sadd.s32 %s169, 1
      %s171 = scalar_select %p168, %s169, %s170
      %p174 = pneg %p168
      %p175 = scmp.eq.s32.totalorder %s17, 1
      %p176 = por %p174, %p175
      %p177 = scmp.ne.s32.totalorder %s169, %s172
      %p178 = scmp.eq.s32.totalorder %s17, 0
      %p179 = por %p177, %p178
      %p180 = scmp.ne.s32.totalorder %s169, %s172
      %p181 = scmp.eq.s32.totalorder %s22, 1
      %p182 = por %p180, %p181
      %p183 = scmp.ne.s32.totalorder %s172, %s173
      %p184 = scmp.eq.s32.totalorder %s22, 0
      %p185 = por %p183, %p184
      %p186 = scmp.ne.s32.totalorder %s172, %s173
      %p187 = scmp.eq.s32.totalorder %s23, 1
      %p188 = por %p186, %p187
      %p190 = scmp.ne.s32.totalorder %s173, %s189
      %p191 = scmp.eq.s32.totalorder %s23, 0
      %p192 = por %p190, %p191
      %s194 = sadd.s32 %s193, 1
      %p197 = scmp.eq.s32.totalorder %s17, 1
      %p198 = scmp.ne.s32.totalorder %s193, %s195
      %p199 = scmp.eq.s32.totalorder %s17, 0
      %p200 = por %p198, %p199
      %p201 = scmp.ne.s32.totalorder %s193, %s195
      %p202 = scmp.eq.s32.totalorder %s22, 1
      %p203 = por %p201, %p202
      %p204 = scmp.ne.s32.totalorder %s195, %s196
      %p205 = scmp.eq.s32.totalorder %s22, 0
      %p206 = por %p204, %p205
      %p207 = scmp.ne.s32.totalorder %s195, %s196
      %p208 = scmp.eq.s32.totalorder %s23, 1
      %p209 = por %p207, %p208
      %p211 = scmp.ne.s32.totalorder %s196, %s210
      %p212 = scmp.eq.s32.totalorder %s23, 0
      %p213 = por %p211, %p212
      %s214 = ssub.s32 %s25, %s32
      %p215 = scmp.eq.s32.totalorder %s214, 0
      %s217 = sadd.s32 %s216, 1
      %s218 = scalar_select %p215, %s216, %s217
      %p221 = pneg %p215
      %p222 = scmp.eq.s32.totalorder %s17, 1
      %p223 = por %p221, %p222
      %p224 = scmp.ne.s32.totalorder %s216, %s219
      %p225 = scmp.eq.s32.totalorder %s17, 0
      %p226 = por %p224, %p225
      %p227 = scmp.ne.s32.totalorder %s216, %s219
      %p228 = scmp.eq.s32.totalorder %s22, 1
      %p229 = por %p227, %p228
      %p230 = scmp.ne.s32.totalorder %s219, %s220
      %p231 = scmp.eq.s32.totalorder %s22, 0
      %p232 = por %p230, %p231
      %p233 = scmp.ne.s32.totalorder %s219, %s220
      %p234 = scmp.eq.s32.totalorder %s23, 1
      %p235 = por %p233, %p234
      %p237 = scmp.ne.s32.totalorder %s220, %s236
      %p238 = scmp.eq.s32.totalorder %s23, 0
      %p239 = por %p237, %p238
      %s240 = ssub.s32 %s25, %s32
      %s241 = ssub.s32 %s24, %s36
      %s242 = sor.u32 %s240, %s241
      %p243 = scmp.eq.s32.totalorder %s242, 0
      %s245 = sadd.s32 %s244, 1
      %s246 = scalar_select %p243, %s244, %s245
      %p249 = pneg %p243
      %p250 = scmp.eq.s32.totalorder %s17, 1
      %p251 = por %p249, %p250
      %p252 = scmp.ne.s32.totalorder %s244, %s247
      %p253 = scmp.eq.s32.totalorder %s17, 0
      %p254 = por %p252, %p253
      %p255 = scmp.ne.s32.totalorder %s244, %s247
      %p256 = scmp.eq.s32.totalorder %s22, 1
      %p257 = por %p255, %p256
      %p258 = scmp.ne.s32.totalorder %s247, %s248
      %p259 = scmp.eq.s32.totalorder %s22, 0
      %p260 = por %p258, %p259
      %p261 = scmp.ne.s32.totalorder %s247, %s248
      %p262 = scmp.eq.s32.totalorder %s23, 1
      %p263 = por %p261, %p262
      %p265 = scmp.ne.s32.totalorder %s248, %s264
      %p266 = scmp.eq.s32.totalorder %s23, 0
      %p267 = por %p265, %p266
      %p268 = scmp.le.s32.totalorder 1, %s17
      %p269 = scmp.lt.s32.totalorder %s17, 3
      %p270 = pnand %p268, %p269
      %p271 = pneg %p270
      // Predicated region
      $region9: #{tpu_custom_call.1} parent=5 // pred_check
        _
      $region10: #{tpu_custom_call.1} parent=5 // pred_check_branch
        %273 = sbr.rel (%p270) target = $region12
      $region11: #{tpu_custom_call.1} parent=5 // pred_region
        %s274 = ssub.s32 %s17, 1
        // Predicated region
        $region13: #{tpu_custom_call.1} parent=11 // pred_check
          %p275 = pneg %p55
        $region14: #{tpu_custom_call.1} parent=11 // pred_check_branch
          %277 = sbr.rel (%p275) target = $region16
        $region15: #{tpu_custom_call.1} parent=11 // pred_region
          %s278 = smul.u32 32, %s26
          %p279 = scmp.lt.s32.totalorder %s278, 31
          %s280 = scalar_select %p279, %s278, 31
          %s281 = smul.addr %s280, 4
          %s282 = scalar_lea.vmem %s0, %s281
          %s283 = smul.u32 32, %s26
        $region16: #{tpu_custom_call.1} parent=11 // pred_fallthru
          _
        // Predicated region
        $region17: #{tpu_custom_call.1} parent=11 // pred_check
          %p284 = pneg %p81
        $region18: #{tpu_custom_call.1} parent=11 // pred_check_branch
          %286 = sbr.rel (%p284) target = $region20
        $region19: #{tpu_custom_call.1} parent=11 // pred_region
          %s287 = smul.u32 32, %s26
          %p288 = scmp.lt.s32.totalorder %s287, 31
          %s289 = scalar_select %p288, %s287, 31
          %s290 = smul.addr %s289, 8
          %s291 = scalar_lea.vmem %s1, %s290
          %s292 = smul.u32 32, %s26
        $region20: #{tpu_custom_call.1} parent=11 // pred_fallthru
          _
        // Predicated region
        $region21: #{tpu_custom_call.1} parent=11 // pred_check
          %p293 = pneg %p185
        $region22: #{tpu_custom_call.1} parent=11 // pred_check_branch
          %295 = sbr.rel (%p293) target = $region24
        $region23: #{tpu_custom_call.1} parent=11 // pred_region
          %s296 = smul.u32 4, %s26
          %p297 = scmp.lt.s32.totalorder %s296, 3
          %s298 = scalar_select %p297, %s296, 3
          %s299 = smul.addr %s298, 8
          %s300 = scalar_lea.vmem %s5, %s299
          %s301 = smul.u32 4, %s26
        $region24: #{tpu_custom_call.1} parent=11 // pred_fallthru
          _
        // Predicated region
        $region25: #{tpu_custom_call.1} parent=11 // pred_check
          %p302 = pneg %p206
        $region26: #{tpu_custom_call.1} parent=11 // pred_check_branch
          %304 = sbr.rel (%p302) target = $region28
        $region27: #{tpu_custom_call.1} parent=11 // pred_region
          _
        $region28: #{tpu_custom_call.1} parent=11 // pred_fallthru
          _
      $region12: #{tpu_custom_call.1} parent=5 // pred_fallthru
        _
      %p305 = scmp.lt.s32.totalorder %s17, 2
      // Predicated region
      $region29: #{tpu_custom_call.1} parent=5 // pred_check
        %p306 = pneg %p305
      $region30: #{tpu_custom_call.1} parent=5 // pred_check_branch
        %308 = sbr.rel (%p306) target = $region32
      $region31: #{tpu_custom_call.1} parent=5 // pred_region
        // Predicated region
        $region33: #{tpu_custom_call.1} parent=31 // pred_check
          %p309 = pneg %p101
        $region34: #{tpu_custom_call.1} parent=31 // pred_check_branch
          %311 = sbr.rel (%p309) target = $region36
        $region35: #{tpu_custom_call.1} parent=31 // pred_region
          %s312 = smul.u32 16, %s25
          %p313 = scmp.lt.s32.totalorder %s312, 31
          %s314 = scalar_select %p313, %s312, 31
          %s315 = smul.addr %s314, 4
          %s316 = scalar_lea.vmem %s2, %s315
          %s317 = smul.u32 16, %s25
        $region36: #{tpu_custom_call.1} parent=31 // pred_fallthru
          _
        // Predicated region
        $region37: #{tpu_custom_call.1} parent=31 // pred_check
          %p318 = pneg %p127
        $region38: #{tpu_custom_call.1} parent=31 // pred_check_branch
          %320 = sbr.rel (%p318) target = $region40
        $region39: #{tpu_custom_call.1} parent=31 // pred_region
          %p321 = scmp.lt.s32.totalorder %s25, 1
          %s322 = scalar_select %p321, %s25, 1
          %s323 = scalar_lea.vmem %s3, %s322
        $region40: #{tpu_custom_call.1} parent=31 // pred_fallthru
          _
        // Predicated region
        $region41: #{tpu_custom_call.1} parent=31 // pred_check
          %p324 = pneg %p153
        $region42: #{tpu_custom_call.1} parent=31 // pred_check_branch
          %326 = sbr.rel (%p324) target = $region44
        $region43: #{tpu_custom_call.1} parent=31 // pred_region
          %p327 = scmp.lt.s32.totalorder %s25, 1
          %s328 = scalar_select %p327, %s25, 1
          %s329 = scalar_lea.vmem %s4, %s328
        $region44: #{tpu_custom_call.1} parent=31 // pred_fallthru
          _
        // Predicated region
        $region45: #{tpu_custom_call.1} parent=31 // pred_check
          %p330 = pneg %p226
        $region46: #{tpu_custom_call.1} parent=31 // pred_check_branch
          %332 = sbr.rel (%p330) target = $region48
        $region47: #{tpu_custom_call.1} parent=31 // pred_region
          %s333 = smul.u32 16, %s25
          %p334 = scmp.lt.s32.totalorder %s333, 31
          %s335 = scalar_select %p334, %s333, 31
          %s336 = smul.addr %s335, 8
          %s337 = scalar_lea.vmem %s7, %s336
          %s338 = smul.u32 16, %s25
        $region48: #{tpu_custom_call.1} parent=31 // pred_fallthru
          _
      $region32: #{tpu_custom_call.1} parent=5 // pred_fallthru
        _
      %p339 = scmp.le.s32.totalorder 1, %s17
      %p340 = scmp.lt.s32.totalorder %s17, 3
      %p341 = pnand %p339, %p340
      %p342 = pneg %p341
      // Predicated region
      $region49: #{tpu_custom_call.1} parent=5 // pred_check
        _
      $region50: #{tpu_custom_call.1} parent=5 // pred_check_branch
        %344 = sbr.rel (%p341) target = $region52
      $region51: #{tpu_custom_call.1} parent=5 // pred_region
        %s345 = ssub.s32 %s17, 1
        %s346 = smul.u32 32, %s26
        %p347 = scmp.lt.s32.totalorder %s346, 31
        %s348 = scalar_select %p347, %s346, 31
        %s349 = smul.addr %s348, 4
        %s350 = scalar_lea.vmem %s0, %s349
        %p351 = pneg %p55
        %p352 = pneg %p52
        %s353 = smul.u32 32, %s26
        %p354 = scmp.lt.s32.totalorder %s353, 31
        %s355 = scalar_select %p354, %s353, 31
        %s356 = smul.addr %s355, 8
        %s357 = scalar_lea.vmem %s1, %s356
        %p358 = pneg %p81
        %p359 = pneg %p78
        %s360 = smul.u32 16, %s27
        %p361 = scmp.lt.s32.totalorder %s360, 31
        %s362 = scalar_select %p361, %s360, 31
        %s363 = smul.addr %s362, 4
        %s364 = scalar_lea.vmem %s2, %s363
        %p365 = pneg %p107
        %p366 = pneg %p104
        %p367 = scmp.lt.s32.totalorder %s27, 1
        %s368 = scalar_select %p367, %s27, 1
        %s369 = scalar_lea.vmem %s3, %s368
        %p370 = pneg %p133
        %p371 = pneg %p130
        %p372 = scmp.lt.s32.totalorder %s27, 1
        %s373 = scalar_select %p372, %s27, 1
        %s374 = scalar_lea.vmem %s4, %s373
        %p375 = pneg %p159
        %p376 = pneg %p156
        %s377 = smul.u32 4, %s26
        %p378 = scmp.lt.s32.totalorder %s377, 3
        %s379 = scalar_select %p378, %s377, 3
        %s380 = smul.addr %s379, 8
        %s381 = scalar_lea.vmem %s5, %s380
        %p382 = pneg %p185
        %p383 = pneg %p182
        %p384 = pneg %p206
        %p385 = pneg %p203
        %s386 = smul.u32 16, %s27
        %p387 = scmp.lt.s32.totalorder %s386, 31
        %s388 = scalar_select %p387, %s386, 31
        %s389 = smul.addr %s388, 8
        %s390 = scalar_lea.vmem %s7, %s389
        %p391 = pneg %p232
        %p392 = pneg %p229
        %p393 = pneg %p260
        %p394 = pneg %p257
        %s395 = sand.u32 %s247, 1
        %s396 = scalar_lea.sflag [#allocation3], %s395
        %s397 = sand.u32 %s247, 1
        %s398 = smul.addr %s397, 16
        %s399 = scalar_lea.vmem [#allocation2], %s398
        %s400 = smul.u32 32, %s26
        %p401 = scmp.lt.s32.totalorder %s400, 31
        %s402 = scalar_select %p401, %s400, 31
        %s403 = smul.addr %s402, 4
        %s404 = scalar_lea.vmem %s0, %s403
        %s405 = smul.u32 32, %s26
        %s406 = smul.u32 32, %s26
        %p407 = scmp.lt.s32.totalorder %s406, 31
        %s408 = scalar_select %p407, %s406, 31
        %s409 = smul.addr %s408, 8
        %s410 = scalar_lea.vmem %s1, %s409
        %s411 = smul.u32 32, %s26
        %s412 = smul.u32 16, %s27
        %p413 = scmp.lt.s32.totalorder %s412, 31
        %s414 = scalar_select %p413, %s412, 31
        %s415 = smul.addr %s414, 4
        %s416 = scalar_lea.vmem %s2, %s415
        %s417 = smul.u32 16, %s27
        %p418 = scmp.lt.s32.totalorder %s27, 1
        %s419 = scalar_select %p418, %s27, 1
        %s420 = scalar_lea.vmem %s3, %s419
        %p421 = scmp.lt.s32.totalorder %s27, 1
        %s422 = scalar_select %p421, %s27, 1
        %s423 = scalar_lea.vmem %s4, %s422
        %s424 = smul.u32 4, %s26
        %p425 = scmp.lt.s32.totalorder %s424, 3
        %s426 = scalar_select %p425, %s424, 3
        %s427 = smul.addr %s426, 8
        %s428 = scalar_lea.vmem %s5, %s427
        %s429 = smul.u32 4, %s26
        %s430 = smul.u32 16, %s27
        %p431 = scmp.lt.s32.totalorder %s430, 31
        %s432 = scalar_select %p431, %s430, 31
        %s433 = smul.addr %s432, 8
        %s434 = scalar_lea.vmem %s7, %s433
        %s435 = smul.u32 16, %s27
        %s436 = smul.u32 2, %s27
        %v437 = vld [vmem:[%s404] sm:$0xf]
        %v438 = vld [vmem:[%s404 + $0x4] sm:$0xf]
        %v439 = vld [vmem:[%s404 + $0x8] sm:$0xf]
        %v440 = vld [vmem:[%s404 + $0xc] sm:$0xf]
        %v441 = vld [vmem:[%s404 + $0x10] sm:$0xf]
        %v442 = vld [vmem:[%s404 + $0x14] sm:$0xf]
        %v443 = vld [vmem:[%s404 + $0x18] sm:$0xf]
        %v444 = vld [vmem:[%s404 + $0x1c] sm:$0xf]
        %v445 = vld [vmem:[%s404 + $0x20] sm:$0xf]
        %v446 = vld [vmem:[%s404 + $0x24] sm:$0xf]
        %v447 = vld [vmem:[%s404 + $0x28] sm:$0xf]
        %v448 = vld [vmem:[%s404 + $0x2c] sm:$0xf]
        %v449 = vld [vmem:[%s404 + $0x30] sm:$0xf]
        %v450 = vld [vmem:[%s404 + $0x34] sm:$0xf]
        %v451 = vld [vmem:[%s404 + $0x38] sm:$0xf]
        %v452 = vld [vmem:[%s404 + $0x3c] sm:$0xf]
        %v453 = vld [vmem:[%s404 + $0x40] sm:$0xf]
        %v454 = vld [vmem:[%s404 + $0x44] sm:$0xf]
        %v455 = vld [vmem:[%s404 + $0x48] sm:$0xf]
        %v456 = vld [vmem:[%s404 + $0x4c] sm:$0xf]
        %v457 = vld [vmem:[%s404 + $0x50] sm:$0xf]
        %v458 = vld [vmem:[%s404 + $0x54] sm:$0xf]
        %v459 = vld [vmem:[%s404 + $0x58] sm:$0xf]
        %v460 = vld [vmem:[%s404 + $0x5c] sm:$0xf]
        %v461 = vld [vmem:[%s404 + $0x60] sm:$0xf]
        %v462 = vld [vmem:[%s404 + $0x64] sm:$0xf]
        %v463 = vld [vmem:[%s404 + $0x68] sm:$0xf]
        %v464 = vld [vmem:[%s404 + $0x6c] sm:$0xf]
        %v465 = vld [vmem:[%s404 + $0x70] sm:$0xf]
        %v466 = vld [vmem:[%s404 + $0x74] sm:$0xf]
        %v467 = vld [vmem:[%s404 + $0x78] sm:$0xf]
        %v468 = vld [vmem:[%s404 + $0x7c] sm:$0xf]
        %v469 = vld [vmem:[%s416] sm:$0xf]
        %v470 = vld [vmem:[%s416 + $0x4] sm:$0xf]
        %v471 = vld [vmem:[%s416 + $0x8] sm:$0xf]
        %v472 = vld [vmem:[%s416 + $0xc] sm:$0xf]
        %v473 = vld [vmem:[%s416 + $0x10] sm:$0xf]
        %v474 = vld [vmem:[%s416 + $0x14] sm:$0xf]
        %v475 = vld [vmem:[%s416 + $0x18] sm:$0xf]
        %v476 = vld [vmem:[%s416 + $0x1c] sm:$0xf]
        %v477 = vld [vmem:[%s416 + $0x20] sm:$0xf]
        %v478 = vld [vmem:[%s416 + $0x24] sm:$0xf]
        %v479 = vld [vmem:[%s416 + $0x28] sm:$0xf]
        %v480 = vld [vmem:[%s416 + $0x2c] sm:$0xf]
        %v481 = vld [vmem:[%s416 + $0x30] sm:$0xf]
        %v482 = vld [vmem:[%s416 + $0x34] sm:$0xf]
        %v483 = vld [vmem:[%s416 + $0x38] sm:$0xf]
        %v484 = vld [vmem:[%s416 + $0x3c] sm:$0xf]
        %v517 = vunpack.c.l.b16 %v437
        %v518 = vunpack.c.l.b16 %v438
        %v519 = vunpack.c.l.b16 %v439
        %v520 = vunpack.c.l.b16 %v440
        %v521 = vunpack.c.l.b16 %v441
        %v522 = vunpack.c.l.b16 %v442
        %v523 = vunpack.c.l.b16 %v443
        %v524 = vunpack.c.l.b16 %v444
        %v525 = vunpack.c.l.b16 %v445
        %v526 = vunpack.c.l.b16 %v446
        %v527 = vunpack.c.l.b16 %v447
        %v528 = vunpack.c.l.b16 %v448
        %v529 = vunpack.c.l.b16 %v449
        %v530 = vunpack.c.l.b16 %v450
        %v531 = vunpack.c.l.b16 %v451
        %v532 = vunpack.c.l.b16 %v452
        %v533 = vunpack.c.l.b16 %v453
        %v534 = vunpack.c.l.b16 %v454
        %v535 = vunpack.c.l.b16 %v455
        %v536 = vunpack.c.l.b16 %v456
        %v537 = vunpack.c.l.b16 %v457
        %v538 = vunpack.c.l.b16 %v458
        %v539 = vunpack.c.l.b16 %v459
        %v540 = vunpack.c.l.b16 %v460
        %v541 = vunpack.c.l.b16 %v461
        %v542 = vunpack.c.l.b16 %v462
        %v543 = vunpack.c.l.b16 %v463
        %v544 = vunpack.c.l.b16 %v464
        %v545 = vunpack.c.l.b16 %v465
        %v546 = vunpack.c.l.b16 %v466
        %v547 = vunpack.c.l.b16 %v467
        %v548 = vunpack.c.l.b16 %v468
        %v549 = vpack.c.b16 %v518, %v517
        %v550 = vpack.c.b16 %v520, %v519
        %v551 = vpack.c.b16 %v522, %v521
        %v552 = vpack.c.b16 %v524, %v523
        %v553 = vpack.c.b16 %v526, %v525
        %v554 = vpack.c.b16 %v528, %v527
        %v555 = vpack.c.b16 %v530, %v529
        %v556 = vpack.c.b16 %v532, %v531
        %v557 = vpack.c.b16 %v534, %v533
        %v558 = vpack.c.b16 %v536, %v535
        %v559 = vpack.c.b16 %v538, %v537
        %v560 = vpack.c.b16 %v540, %v539
        %v561 = vpack.c.b16 %v542, %v541
        %v562 = vpack.c.b16 %v544, %v543
        %v563 = vpack.c.b16 %v546, %v545
        %v564 = vpack.c.b16 %v548, %v547
        %v597 = vunpack.c.l.b16 %v469
        %v598 = vunpack.c.l.b16 %v470
        %v599 = vunpack.c.l.b16 %v471
        %v600 = vunpack.c.l.b16 %v472
        %v601 = vunpack.c.l.b16 %v473
        %v602 = vunpack.c.l.b16 %v474
        %v603 = vunpack.c.l.b16 %v475
        %v604 = vunpack.c.l.b16 %v476
        %v605 = vunpack.c.l.b16 %v477
        %v606 = vunpack.c.l.b16 %v478
        %v607 = vunpack.c.l.b16 %v479
        %v608 = vunpack.c.l.b16 %v480
        %v609 = vunpack.c.l.b16 %v481
        %v610 = vunpack.c.l.b16 %v482
        %v611 = vunpack.c.l.b16 %v483
        %v612 = vunpack.c.l.b16 %v484
        %v613 = vpack.c.b16 %v598, %v597
        %v614 = vpack.c.b16 %v600, %v599
        %v615 = vpack.c.b16 %v602, %v601
        %v616 = vpack.c.b16 %v604, %v603
        %v617 = vpack.c.b16 %v606, %v605
        %v618 = vpack.c.b16 %v608, %v607
        %v619 = vpack.c.b16 %v610, %v609
        %v620 = vpack.c.b16 %v612, %v611
        %629 = vmatpush.bf16.xpose.msra.mxu0 %v620
        %630 = vmatpush.bf16.xpose.msra.mxu0 %v619
        %631 = vmatpush.bf16.xpose.msra.mxu0 %v618
        %632 = vmatpush.bf16.xpose.msra.mxu0 %v617
        %633 = vmatpush.bf16.xpose.msra.mxu0 %v616
        %634 = vmatpush.bf16.xpose.msra.mxu0 %v615
        %635 = vmatpush.bf16.xpose.msra.mxu0 %v614
        %636 = vmatpush.bf16.xpose.msra.mxu0 %v613
        %637 = vmatmul.bf16.gmra.mxu0 %v549
        %v638 = vpop.f32.mrf.mxu0
        %v639 = vadd.f32 0.0, %v638
        %v640 = vpop.f32.mrf.mxu0
        %v641 = vadd.f32 0.0, %v640
        %642 = vmatmul.bf16.gmra.mxu0 %v550
        %v643 = vpop.f32.mrf.mxu0
        %v644 = vadd.f32 0.0, %v643
        %v645 = vpop.f32.mrf.mxu0
        %v646 = vadd.f32 0.0, %v645
        %647 = vmatmul.bf16.gmra.mxu0 %v551
        %v648 = vpop.f32.mrf.mxu0
        %v649 = vadd.f32 0.0, %v648
        %v650 = vpop.f32.mrf.mxu0
        %v651 = vadd.f32 0.0, %v650
        %652 = vmatmul.bf16.gmra.mxu0 %v552
        %v653 = vpop.f32.mrf.mxu0
        %v654 = vadd.f32 0.0, %v653
        %v655 = vpop.f32.mrf.mxu0
        %v656 = vadd.f32 0.0, %v655
        %657 = vmatmul.bf16.gmra.mxu0 %v553
        %v658 = vpop.f32.mrf.mxu0
        %v659 = vadd.f32 0.0, %v658
        %v660 = vpop.f32.mrf.mxu0
        %v661 = vadd.f32 0.0, %v660
        %662 = vmatmul.bf16.gmra.mxu0 %v554
        %v663 = vpop.f32.mrf.mxu0
        %v664 = vadd.f32 0.0, %v663
        %v665 = vpop.f32.mrf.mxu0
        %v666 = vadd.f32 0.0, %v665
        %667 = vmatmul.bf16.gmra.mxu0 %v555
        %v668 = vpop.f32.mrf.mxu0
        %v669 = vadd.f32 0.0, %v668
        %v670 = vpop.f32.mrf.mxu0
        %v671 = vadd.f32 0.0, %v670
        %672 = vmatmul.bf16.gmra.mxu0 %v556
        %v673 = vpop.f32.mrf.mxu0
        %v674 = vadd.f32 0.0, %v673
        %v675 = vpop.f32.mrf.mxu0
        %v676 = vadd.f32 0.0, %v675
        %677 = vmatmul.bf16.gmra.mxu0 %v557
        %v678 = vpop.f32.mrf.mxu0
        %v679 = vadd.f32 0.0, %v678
        %v680 = vpop.f32.mrf.mxu0
        %v681 = vadd.f32 0.0, %v680
        %682 = vmatmul.bf16.gmra.mxu0 %v558
        %v683 = vpop.f32.mrf.mxu0
        %v684 = vadd.f32 0.0, %v683
        %v685 = vpop.f32.mrf.mxu0
        %v686 = vadd.f32 0.0, %v685
        %687 = vmatmul.bf16.gmra.mxu0 %v559
        %v688 = vpop.f32.mrf.mxu0
        %v689 = vadd.f32 0.0, %v688
        %v690 = vpop.f32.mrf.mxu0
        %v691 = vadd.f32 0.0, %v690
        %692 = vmatmul.bf16.gmra.mxu0 %v560
        %v693 = vpop.f32.mrf.mxu0
        %v694 = vadd.f32 0.0, %v693
        %v695 = vpop.f32.mrf.mxu0
        %v696 = vadd.f32 0.0, %v695
        %697 = vmatmul.bf16.gmra.mxu0 %v561
        %v698 = vpop.f32.mrf.mxu0
        %v699 = vadd.f32 0.0, %v698
        %v700 = vpop.f32.mrf.mxu0
        %v701 = vadd.f32 0.0, %v700
        %702 = vmatmul.bf16.gmra.mxu0 %v562
        %v703 = vpop.f32.mrf.mxu0
        %v704 = vadd.f32 0.0, %v703
        %v705 = vpop.f32.mrf.mxu0
        %v706 = vadd.f32 0.0, %v705
        %707 = vmatmul.bf16.gmra.mxu0 %v563
        %v708 = vpop.f32.mrf.mxu0
        %v709 = vadd.f32 0.0, %v708
        %v710 = vpop.f32.mrf.mxu0
        %v711 = vadd.f32 0.0, %v710
        %712 = vmatmul.bf16.gmra.mxu0 %v564
        %v713 = vpop.f32.mrf.mxu0
        %v714 = vadd.f32 0.0, %v713
        %v715 = vpop.f32.mrf.mxu0
        %v716 = vadd.f32 0.0, %v715
        %717 = vdwg.mxu0
        %v718 = vld [vmem:[%s420] sm:$0x1]
        %v720 = vperm.slane %v718, 0
        %v722 = vmul.f32 %v639, %v720
        %v723 = vmul.f32 %v641, %v720
        %v724 = vmul.f32 %v644, %v720
        %v725 = vmul.f32 %v646, %v720
        %v726 = vmul.f32 %v649, %v720
        %v727 = vmul.f32 %v651, %v720
        %v728 = vmul.f32 %v654, %v720
        %v729 = vmul.f32 %v656, %v720
        %v730 = vmul.f32 %v659, %v720
        %v731 = vmul.f32 %v661, %v720
        %v732 = vmul.f32 %v664, %v720
        %v733 = vmul.f32 %v666, %v720
        %v734 = vmul.f32 %v669, %v720
        %v735 = vmul.f32 %v671, %v720
        %v736 = vmul.f32 %v674, %v720
        %v737 = vmul.f32 %v676, %v720
        %v738 = vmul.f32 %v679, %v720
        %v739 = vmul.f32 %v681, %v720
        %v740 = vmul.f32 %v684, %v720
        %v741 = vmul.f32 %v686, %v720
        %v742 = vmul.f32 %v689, %v720
        %v743 = vmul.f32 %v691, %v720
        %v744 = vmul.f32 %v694, %v720
        %v745 = vmul.f32 %v696, %v720
        %v746 = vmul.f32 %v699, %v720
        %v747 = vmul.f32 %v701, %v720
        %v748 = vmul.f32 %v704, %v720
        %v749 = vmul.f32 %v706, %v720
        %v750 = vmul.f32 %v709, %v720
        %v751 = vmul.f32 %v711, %v720
        %v752 = vmul.f32 %v714, %v720
        %v753 = vmul.f32 %v716, %v720
        %vm754 = vcmp.gt.f32.partialorder %v722, 0.0
        %vm755 = vcmp.gt.f32.partialorder %v723, 0.0
        %vm756 = vcmp.gt.f32.partialorder %v724, 0.0
        %vm757 = vcmp.gt.f32.partialorder %v725, 0.0
        %vm758 = vcmp.gt.f32.partialorder %v726, 0.0
        %vm759 = vcmp.gt.f32.partialorder %v727, 0.0
        %vm760 = vcmp.gt.f32.partialorder %v728, 0.0
        %vm761 = vcmp.gt.f32.partialorder %v729, 0.0
        %vm762 = vcmp.gt.f32.partialorder %v730, 0.0
        %vm763 = vcmp.gt.f32.partialorder %v731, 0.0
        %vm764 = vcmp.gt.f32.partialorder %v732, 0.0
        %vm765 = vcmp.gt.f32.partialorder %v733, 0.0
        %vm766 = vcmp.gt.f32.partialorder %v734, 0.0
        %vm767 = vcmp.gt.f32.partialorder %v735, 0.0
        %vm768 = vcmp.gt.f32.partialorder %v736, 0.0
        %vm769 = vcmp.gt.f32.partialorder %v737, 0.0
        %vm770 = vcmp.gt.f32.partialorder %v738, 0.0
        %vm771 = vcmp.gt.f32.partialorder %v739, 0.0
        %vm772 = vcmp.gt.f32.partialorder %v740, 0.0
        %vm773 = vcmp.gt.f32.partialorder %v741, 0.0
        %vm774 = vcmp.gt.f32.partialorder %v742, 0.0
        %vm775 = vcmp.gt.f32.partialorder %v743, 0.0
        %vm776 = vcmp.gt.f32.partialorder %v744, 0.0
        %vm777 = vcmp.gt.f32.partialorder %v745, 0.0
        %vm778 = vcmp.gt.f32.partialorder %v746, 0.0
        %vm779 = vcmp.gt.f32.partialorder %v747, 0.0
        %vm780 = vcmp.gt.f32.partialorder %v748, 0.0
        %vm781 = vcmp.gt.f32.partialorder %v749, 0.0
        %vm782 = vcmp.gt.f32.partialorder %v750, 0.0
        %vm783 = vcmp.gt.f32.partialorder %v751, 0.0
        %vm784 = vcmp.gt.f32.partialorder %v752, 0.0
        %vm785 = vcmp.gt.f32.partialorder %v753, 0.0
        %v786 = vmul.f32 %v722, 0.1
        %v787 = vmul.f32 %v723, 0.1
        %v788 = vmul.f32 %v724, 0.1
        %v789 = vmul.f32 %v725, 0.1
        %v790 = vmul.f32 %v726, 0.1
        %v791 = vmul.f32 %v727, 0.1
        %v792 = vmul.f32 %v728, 0.1
        %v793 = vmul.f32 %v729, 0.1
        %v794 = vmul.f32 %v730, 0.1
        %v795 = vmul.f32 %v731, 0.1
        %v796 = vmul.f32 %v732, 0.1
        %v797 = vmul.f32 %v733, 0.1
        %v798 = vmul.f32 %v734, 0.1
        %v799 = vmul.f32 %v735, 0.1
        %v800 = vmul.f32 %v736, 0.1
        %v801 = vmul.f32 %v737, 0.1
        %v802 = vmul.f32 %v738, 0.1
        %v803 = vmul.f32 %v739, 0.1
        %v804 = vmul.f32 %v740, 0.1
        %v805 = vmul.f32 %v741, 0.1
        %v806 = vmul.f32 %v742, 0.1
        %v807 = vmul.f32 %v743, 0.1
        %v808 = vmul.f32 %v744, 0.1
        %v809 = vmul.f32 %v745, 0.1
        %v810 = vmul.f32 %v746, 0.1
        %v811 = vmul.f32 %v747, 0.1
        %v812 = vmul.f32 %v748, 0.1
        %v813 = vmul.f32 %v749, 0.1
        %v814 = vmul.f32 %v750, 0.1
        %v815 = vmul.f32 %v751, 0.1
        %v816 = vmul.f32 %v752, 0.1
        %v817 = vmul.f32 %v753, 0.1
        %v818 = vsel %vm754, %v722, %v786
        %v819 = vsel %vm755, %v723, %v787
        %v820 = vsel %vm756, %v724, %v788
        %v821 = vsel %vm757, %v725, %v789
        %v822 = vsel %vm758, %v726, %v790
        %v823 = vsel %vm759, %v727, %v791
        %v824 = vsel %vm760, %v728, %v792
        %v825 = vsel %vm761, %v729, %v793
        %v826 = vsel %vm762, %v730, %v794
        %v827 = vsel %vm763, %v731, %v795
        %v828 = vsel %vm764, %v732, %v796
        %v829 = vsel %vm765, %v733, %v797
        %v830 = vsel %vm766, %v734, %v798
        %v831 = vsel %vm767, %v735, %v799
        %v832 = vsel %vm768, %v736, %v800
        %v833 = vsel %vm769, %v737, %v801
        %v834 = vsel %vm770, %v738, %v802
        %v835 = vsel %vm771, %v739, %v803
        %v836 = vsel %vm772, %v740, %v804
        %v837 = vsel %vm773, %v741, %v805
        %v838 = vsel %vm774, %v742, %v806
        %v839 = vsel %vm775, %v743, %v807
        %v840 = vsel %vm776, %v744, %v808
        %v841 = vsel %vm777, %v745, %v809
        %v842 = vsel %vm778, %v746, %v810
        %v843 = vsel %vm779, %v747, %v811
        %v844 = vsel %vm780, %v748, %v812
        %v845 = vsel %vm781, %v749, %v813
        %v846 = vsel %vm782, %v750, %v814
        %v847 = vsel %vm783, %v751, %v815
        %v848 = vsel %vm784, %v752, %v816
        %v849 = vsel %vm785, %v753, %v817
        %v850 = vld [vmem:[%s6] sm:$0xff]
        %v851 = vld [vmem:[%s6 + $0x8] sm:$0xff]
        %v852 = vld [vmem:[%s6 + $0x10] sm:$0xff]
        %v853 = vld [vmem:[%s6 + $0x18] sm:$0xff]
        %v854 = vld [vmem:[%s6 + $0x20] sm:$0xff]
        %v855 = vld [vmem:[%s6 + $0x28] sm:$0xff]
        %v856 = vld [vmem:[%s6 + $0x30] sm:$0xff]
        %v857 = vld [vmem:[%s6 + $0x38] sm:$0xff]
        %v858 = vld [vmem:[%s6 + $0x40] sm:$0xff]
        %v859 = vld [vmem:[%s6 + $0x48] sm:$0xff]
        %v860 = vld [vmem:[%s6 + $0x50] sm:$0xff]
        %v861 = vld [vmem:[%s6 + $0x58] sm:$0xff]
        %v862 = vld [vmem:[%s6 + $0x60] sm:$0xff]
        %v863 = vld [vmem:[%s6 + $0x68] sm:$0xff]
        %v864 = vld [vmem:[%s6 + $0x70] sm:$0xff]
        %v865 = vld [vmem:[%s6 + $0x78] sm:$0xff]
        %v866 = vmul.f32 %v818, %v818
        %v867 = vmul.f32 %v819, %v819
        %v868 = vmul.f32 %v820, %v820
        %v869 = vmul.f32 %v821, %v821
        %v870 = vmul.f32 %v822, %v822
        %v871 = vmul.f32 %v823, %v823
        %v872 = vmul.f32 %v824, %v824
        %v873 = vmul.f32 %v825, %v825
        %v874 = vmul.f32 %v826, %v826
        %v875 = vmul.f32 %v827, %v827
        %v876 = vmul.f32 %v828, %v828
        %v877 = vmul.f32 %v829, %v829
        %v878 = vmul.f32 %v830, %v830
        %v879 = vmul.f32 %v831, %v831
        %v880 = vmul.f32 %v832, %v832
        %v881 = vmul.f32 %v833, %v833
        %v882 = vmul.f32 %v834, %v834
        %v883 = vmul.f32 %v835, %v835
        %v884 = vmul.f32 %v836, %v836
        %v885 = vmul.f32 %v837, %v837
        %v886 = vmul.f32 %v838, %v838
        %v887 = vmul.f32 %v839, %v839
        %v888 = vmul.f32 %v840, %v840
        %v889 = vmul.f32 %v841, %v841
        %v890 = vmul.f32 %v842, %v842
        %v891 = vmul.f32 %v843, %v843
        %v892 = vmul.f32 %v844, %v844
        %v893 = vmul.f32 %v845, %v845
        %v894 = vmul.f32 %v846, %v846
        %v895 = vmul.f32 %v847, %v847
        %v896 = vmul.f32 %v848, %v848
        %v897 = vmul.f32 %v849, %v849
        %898 = vmatpush.msra.mxu0 %v865
        %899 = vmatpush.msra.mxu0 %v864
        %900 = vmatpush.msra.mxu0 %v863
        %901 = vmatpush.msra.mxu0 %v862
        %902 = vmatpush.msra.mxu0 %v861
        %903 = vmatpush.msra.mxu0 %v860
        %904 = vmatpush.msra.mxu0 %v859
        %905 = vmatpush.msra.mxu0 %v858
        %906 = vmatpush.msra.mxu0 %v857
        %907 = vmatpush.msra.mxu0 %v856
        %908 = vmatpush.msra.mxu0 %v855
        %909 = vmatpush.msra.mxu0 %v854
        %910 = vmatpush.msra.mxu0 %v853
        %911 = vmatpush.msra.mxu0 %v852
        %912 = vmatpush.msra.mxu0 %v851
        %913 = vmatpush.msra.mxu0 %v850
        %914 = vmatmul.f32.gmra.mxu0 %v866
        %v915 = vpop.f32.mrf.mxu0
        %v916 = vadd.f32 1e-16, %v915
        %917 = vmatmul.f32.gmra.mxu0 %v867
        %v918 = vpop.f32.mrf.mxu0
        %v919 = vadd.f32 1e-16, %v918
        %920 = vmatmul.f32.gmra.mxu0 %v868
        %v921 = vpop.f32.mrf.mxu0
        %v922 = vadd.f32 1e-16, %v921
        %923 = vmatmul.f32.gmra.mxu0 %v869
        %v924 = vpop.f32.mrf.mxu0
        %v925 = vadd.f32 1e-16, %v924
        %926 = vmatmul.f32.gmra.mxu0 %v870
        %v927 = vpop.f32.mrf.mxu0
        %v928 = vadd.f32 1e-16, %v927
        %929 = vmatmul.f32.gmra.mxu0 %v871
        %v930 = vpop.f32.mrf.mxu0
        %v931 = vadd.f32 1e-16, %v930
        %932 = vmatmul.f32.gmra.mxu0 %v872
        %v933 = vpop.f32.mrf.mxu0
        %v934 = vadd.f32 1e-16, %v933
        %935 = vmatmul.f32.gmra.mxu0 %v873
        %v936 = vpop.f32.mrf.mxu0
        %v937 = vadd.f32 1e-16, %v936
        %938 = vmatmul.f32.gmra.mxu0 %v874
        %v939 = vpop.f32.mrf.mxu0
        %v940 = vadd.f32 1e-16, %v939
        %941 = vmatmul.f32.gmra.mxu0 %v875
        %v942 = vpop.f32.mrf.mxu0
        %v943 = vadd.f32 1e-16, %v942
        %944 = vmatmul.f32.gmra.mxu0 %v876
        %v945 = vpop.f32.mrf.mxu0
        %v946 = vadd.f32 1e-16, %v945
        %947 = vmatmul.f32.gmra.mxu0 %v877
        %v948 = vpop.f32.mrf.mxu0
        %v949 = vadd.f32 1e-16, %v948
        %950 = vmatmul.f32.gmra.mxu0 %v878
        %v951 = vpop.f32.mrf.mxu0
        %v952 = vadd.f32 1e-16, %v951
        %953 = vmatmul.f32.gmra.mxu0 %v879
        %v954 = vpop.f32.mrf.mxu0
        %v955 = vadd.f32 1e-16, %v954
        %956 = vmatmul.f32.gmra.mxu0 %v880
        %v957 = vpop.f32.mrf.mxu0
        %v958 = vadd.f32 1e-16, %v957
        %959 = vmatmul.f32.gmra.mxu0 %v881
        %v960 = vpop.f32.mrf.mxu0
        %v961 = vadd.f32 1e-16, %v960
        %962 = vmatmul.f32.gmra.mxu0 %v882
        %v963 = vpop.f32.mrf.mxu0
        %v964 = vadd.f32 1e-16, %v963
        %965 = vmatmul.f32.gmra.mxu0 %v883
        %v966 = vpop.f32.mrf.mxu0
        %v967 = vadd.f32 1e-16, %v966
        %968 = vmatmul.f32.gmra.mxu0 %v884
        %v969 = vpop.f32.mrf.mxu0
        %v970 = vadd.f32 1e-16, %v969
        %971 = vmatmul.f32.gmra.mxu0 %v885
        %v972 = vpop.f32.mrf.mxu0
        %v973 = vadd.f32 1e-16, %v972
        %974 = vmatmul.f32.gmra.mxu0 %v886
        %v975 = vpop.f32.mrf.mxu0
        %v976 = vadd.f32 1e-16, %v975
        %977 = vmatmul.f32.gmra.mxu0 %v887
        %v978 = vpop.f32.mrf.mxu0
        %v979 = vadd.f32 1e-16, %v978
        %980 = vmatmul.f32.gmra.mxu0 %v888
        %v981 = vpop.f32.mrf.mxu0
        %v982 = vadd.f32 1e-16, %v981
        %983 = vmatmul.f32.gmra.mxu0 %v889
        %v984 = vpop.f32.mrf.mxu0
        %v985 = vadd.f32 1e-16, %v984
        %986 = vmatmul.f32.gmra.mxu0 %v890
        %v987 = vpop.f32.mrf.mxu0
        %v988 = vadd.f32 1e-16, %v987
        %989 = vmatmul.f32.gmra.mxu0 %v891
        %v990 = vpop.f32.mrf.mxu0
        %v991 = vadd.f32 1e-16, %v990
        %992 = vmatmul.f32.gmra.mxu0 %v892
        %v993 = vpop.f32.mrf.mxu0
        %v994 = vadd.f32 1e-16, %v993
        %995 = vmatmul.f32.gmra.mxu0 %v893
        %v996 = vpop.f32.mrf.mxu0
        %v997 = vadd.f32 1e-16, %v996
        %998 = vmatmul.f32.gmra.mxu0 %v894
        %v999 = vpop.f32.mrf.mxu0
        %v1000 = vadd.f32 1e-16, %v999
        %1001 = vmatmul.f32.gmra.mxu0 %v895
        %v1002 = vpop.f32.mrf.mxu0
        %v1003 = vadd.f32 1e-16, %v1002
        %1004 = vmatmul.f32.gmra.mxu0 %v896
        %v1005 = vpop.f32.mrf.mxu0
        %v1006 = vadd.f32 1e-16, %v1005
        %1007 = vmatmul.f32.gmra.mxu0 %v897
        %v1008 = vpop.f32.mrf.mxu0
        %v1009 = vadd.f32 1e-16, %v1008
        %1010 = vdwg.mxu0
        %v1011 = vrsqrt.pop %v916
        %v1012 = vmul.f32 %v1011, %v916
        %v1013 = vmul.f32 %v1012, %v1011
        %v1014 = vmul.f32 0.5, %v1013
        %v1015 = vsub.f32 1.5, %v1014
        %v1016 = vmul.f32 %v1011, %v1015
        %vm1017 = vweird.f32 %v916
        %vm1018 = vweird.f32 %v1011
        %vm1019 = vmor %vm1017, %vm1018
        %v1020 = vsel %vm1019, %v1011, %v1016
        %v1021 = vrsqrt.pop %v919
        %v1022 = vmul.f32 %v1021, %v919
        %v1023 = vmul.f32 %v1022, %v1021
        %v1024 = vmul.f32 0.5, %v1023
        %v1025 = vsub.f32 1.5, %v1024
        %v1026 = vmul.f32 %v1021, %v1025
        %vm1027 = vweird.f32 %v919
        %vm1028 = vweird.f32 %v1021
        %vm1029 = vmor %vm1027, %vm1028
        %v1030 = vsel %vm1029, %v1021, %v1026
        %v1031 = vrsqrt.pop %v922
        %v1032 = vmul.f32 %v1031, %v922
        %v1033 = vmul.f32 %v1032, %v1031
        %v1034 = vmul.f32 0.5, %v1033
        %v1035 = vsub.f32 1.5, %v1034
        %v1036 = vmul.f32 %v1031, %v1035
        %vm1037 = vweird.f32 %v922
        %vm1038 = vweird.f32 %v1031
        %vm1039 = vmor %vm1037, %vm1038
        %v1040 = vsel %vm1039, %v1031, %v1036
        %v1041 = vrsqrt.pop %v925
        %v1042 = vmul.f32 %v1041, %v925
        %v1043 = vmul.f32 %v1042, %v1041
        %v1044 = vmul.f32 0.5, %v1043
        %v1045 = vsub.f32 1.5, %v1044
        %v1046 = vmul.f32 %v1041, %v1045
        %vm1047 = vweird.f32 %v925
        %vm1048 = vweird.f32 %v1041
        %vm1049 = vmor %vm1047, %vm1048
        %v1050 = vsel %vm1049, %v1041, %v1046
        %v1051 = vrsqrt.pop %v928
        %v1052 = vmul.f32 %v1051, %v928
        %v1053 = vmul.f32 %v1052, %v1051
        %v1054 = vmul.f32 0.5, %v1053
        %v1055 = vsub.f32 1.5, %v1054
        %v1056 = vmul.f32 %v1051, %v1055
        %vm1057 = vweird.f32 %v928
        %vm1058 = vweird.f32 %v1051
        %vm1059 = vmor %vm1057, %vm1058
        %v1060 = vsel %vm1059, %v1051, %v1056
        %v1061 = vrsqrt.pop %v931
        %v1062 = vmul.f32 %v1061, %v931
        %v1063 = vmul.f32 %v1062, %v1061
        %v1064 = vmul.f32 0.5, %v1063
        %v1065 = vsub.f32 1.5, %v1064
        %v1066 = vmul.f32 %v1061, %v1065
        %vm1067 = vweird.f32 %v931
        %vm1068 = vweird.f32 %v1061
        %vm1069 = vmor %vm1067, %vm1068
        %v1070 = vsel %vm1069, %v1061, %v1066
        %v1071 = vrsqrt.pop %v934
        %v1072 = vmul.f32 %v1071, %v934
        %v1073 = vmul.f32 %v1072, %v1071
        %v1074 = vmul.f32 0.5, %v1073
        %v1075 = vsub.f32 1.5, %v1074
        %v1076 = vmul.f32 %v1071, %v1075
        %vm1077 = vweird.f32 %v934
        %vm1078 = vweird.f32 %v1071
        %vm1079 = vmor %vm1077, %vm1078
        %v1080 = vsel %vm1079, %v1071, %v1076
        %v1081 = vrsqrt.pop %v937
        %v1082 = vmul.f32 %v1081, %v937
        %v1083 = vmul.f32 %v1082, %v1081
        %v1084 = vmul.f32 0.5, %v1083
        %v1085 = vsub.f32 1.5, %v1084
        %v1086 = vmul.f32 %v1081, %v1085
        %vm1087 = vweird.f32 %v937
        %vm1088 = vweird.f32 %v1081
        %vm1089 = vmor %vm1087, %vm1088
        %v1090 = vsel %vm1089, %v1081, %v1086
        %v1091 = vrsqrt.pop %v940
        %v1092 = vmul.f32 %v1091, %v940
        %v1093 = vmul.f32 %v1092, %v1091
        %v1094 = vmul.f32 0.5, %v1093
        %v1095 = vsub.f32 1.5, %v1094
        %v1096 = vmul.f32 %v1091, %v1095
        %vm1097 = vweird.f32 %v940
        %vm1098 = vweird.f32 %v1091
        %vm1099 = vmor %vm1097, %vm1098
        %v1100 = vsel %vm1099, %v1091, %v1096
        %v1101 = vrsqrt.pop %v943
        %v1102 = vmul.f32 %v1101, %v943
        %v1103 = vmul.f32 %v1102, %v1101
        %v1104 = vmul.f32 0.5, %v1103
        %v1105 = vsub.f32 1.5, %v1104
        %v1106 = vmul.f32 %v1101, %v1105
        %vm1107 = vweird.f32 %v943
        %vm1108 = vweird.f32 %v1101
        %vm1109 = vmor %vm1107, %vm1108
        %v1110 = vsel %vm1109, %v1101, %v1106
        %v1111 = vrsqrt.pop %v946
        %v1112 = vmul.f32 %v1111, %v946
        %v1113 = vmul.f32 %v1112, %v1111
        %v1114 = vmul.f32 0.5, %v1113
        %v1115 = vsub.f32 1.5, %v1114
        %v1116 = vmul.f32 %v1111, %v1115
        %vm1117 = vweird.f32 %v946
        %vm1118 = vweird.f32 %v1111
        %vm1119 = vmor %vm1117, %vm1118
        %v1120 = vsel %vm1119, %v1111, %v1116
        %v1121 = vrsqrt.pop %v949
        %v1122 = vmul.f32 %v1121, %v949
        %v1123 = vmul.f32 %v1122, %v1121
        %v1124 = vmul.f32 0.5, %v1123
        %v1125 = vsub.f32 1.5, %v1124
        %v1126 = vmul.f32 %v1121, %v1125
        %vm1127 = vweird.f32 %v949
        %vm1128 = vweird.f32 %v1121
        %vm1129 = vmor %vm1127, %vm1128
        %v1130 = vsel %vm1129, %v1121, %v1126
        %v1131 = vrsqrt.pop %v952
        %v1132 = vmul.f32 %v1131, %v952
        %v1133 = vmul.f32 %v1132, %v1131
        %v1134 = vmul.f32 0.5, %v1133
        %v1135 = vsub.f32 1.5, %v1134
        %v1136 = vmul.f32 %v1131, %v1135
        %vm1137 = vweird.f32 %v952
        %vm1138 = vweird.f32 %v1131
        %vm1139 = vmor %vm1137, %vm1138
        %v1140 = vsel %vm1139, %v1131, %v1136
        %v1141 = vrsqrt.pop %v955
        %v1142 = vmul.f32 %v1141, %v955
        %v1143 = vmul.f32 %v1142, %v1141
        %v1144 = vmul.f32 0.5, %v1143
        %v1145 = vsub.f32 1.5, %v1144
        %v1146 = vmul.f32 %v1141, %v1145
        %vm1147 = vweird.f32 %v955
        %vm1148 = vweird.f32 %v1141
        %vm1149 = vmor %vm1147, %vm1148
        %v1150 = vsel %vm1149, %v1141, %v1146
        %v1151 = vrsqrt.pop %v958
        %v1152 = vmul.f32 %v1151, %v958
        %v1153 = vmul.f32 %v1152, %v1151
        %v1154 = vmul.f32 0.5, %v1153
        %v1155 = vsub.f32 1.5, %v1154
        %v1156 = vmul.f32 %v1151, %v1155
        %vm1157 = vweird.f32 %v958
        %vm1158 = vweird.f32 %v1151
        %vm1159 = vmor %vm1157, %vm1158
        %v1160 = vsel %vm1159, %v1151, %v1156
        %v1161 = vrsqrt.pop %v961
        %v1162 = vmul.f32 %v1161, %v961
        %v1163 = vmul.f32 %v1162, %v1161
        %v1164 = vmul.f32 0.5, %v1163
        %v1165 = vsub.f32 1.5, %v1164
        %v1166 = vmul.f32 %v1161, %v1165
        %vm1167 = vweird.f32 %v961
        %vm1168 = vweird.f32 %v1161
        %vm1169 = vmor %vm1167, %vm1168
        %v1170 = vsel %vm1169, %v1161, %v1166
        %v1171 = vrsqrt.pop %v964
        %v1172 = vmul.f32 %v1171, %v964
        %v1173 = vmul.f32 %v1172, %v1171
        %v1174 = vmul.f32 0.5, %v1173
        %v1175 = vsub.f32 1.5, %v1174
        %v1176 = vmul.f32 %v1171, %v1175
        %vm1177 = vweird.f32 %v964
        %vm1178 = vweird.f32 %v1171
        %vm1179 = vmor %vm1177, %vm1178
        %v1180 = vsel %vm1179, %v1171, %v1176
        %v1181 = vrsqrt.pop %v967
        %v1182 = vmul.f32 %v1181, %v967
        %v1183 = vmul.f32 %v1182, %v1181
        %v1184 = vmul.f32 0.5, %v1183
        %v1185 = vsub.f32 1.5, %v1184
        %v1186 = vmul.f32 %v1181, %v1185
        %vm1187 = vweird.f32 %v967
        %vm1188 = vweird.f32 %v1181
        %vm1189 = vmor %vm1187, %vm1188
        %v1190 = vsel %vm1189, %v1181, %v1186
        %v1191 = vrsqrt.pop %v970
        %v1192 = vmul.f32 %v1191, %v970
        %v1193 = vmul.f32 %v1192, %v1191
        %v1194 = vmul.f32 0.5, %v1193
        %v1195 = vsub.f32 1.5, %v1194
        %v1196 = vmul.f32 %v1191, %v1195
        %vm1197 = vweird.f32 %v970
        %vm1198 = vweird.f32 %v1191
        %vm1199 = vmor %vm1197, %vm1198
        %v1200 = vsel %vm1199, %v1191, %v1196
        %v1201 = vrsqrt.pop %v973
        %v1202 = vmul.f32 %v1201, %v973
        %v1203 = vmul.f32 %v1202, %v1201
        %v1204 = vmul.f32 0.5, %v1203
        %v1205 = vsub.f32 1.5, %v1204
        %v1206 = vmul.f32 %v1201, %v1205
        %vm1207 = vweird.f32 %v973
        %vm1208 = vweird.f32 %v1201
        %vm1209 = vmor %vm1207, %vm1208
        %v1210 = vsel %vm1209, %v1201, %v1206
        %v1211 = vrsqrt.pop %v976
        %v1212 = vmul.f32 %v1211, %v976
        %v1213 = vmul.f32 %v1212, %v1211
        %v1214 = vmul.f32 0.5, %v1213
        %v1215 = vsub.f32 1.5, %v1214
        %v1216 = vmul.f32 %v1211, %v1215
        %vm1217 = vweird.f32 %v976
        %vm1218 = vweird.f32 %v1211
        %vm1219 = vmor %vm1217, %vm1218
        %v1220 = vsel %vm1219, %v1211, %v1216
        %v1221 = vrsqrt.pop %v979
        %v1222 = vmul.f32 %v1221, %v979
        %v1223 = vmul.f32 %v1222, %v1221
        %v1224 = vmul.f32 0.5, %v1223
        %v1225 = vsub.f32 1.5, %v1224
        %v1226 = vmul.f32 %v1221, %v1225
        %vm1227 = vweird.f32 %v979
        %vm1228 = vweird.f32 %v1221
        %vm1229 = vmor %vm1227, %vm1228
        %v1230 = vsel %vm1229, %v1221, %v1226
        %v1231 = vrsqrt.pop %v982
        %v1232 = vmul.f32 %v1231, %v982
        %v1233 = vmul.f32 %v1232, %v1231
        %v1234 = vmul.f32 0.5, %v1233
        %v1235 = vsub.f32 1.5, %v1234
        %v1236 = vmul.f32 %v1231, %v1235
        %vm1237 = vweird.f32 %v982
        %vm1238 = vweird.f32 %v1231
        %vm1239 = vmor %vm1237, %vm1238
        %v1240 = vsel %vm1239, %v1231, %v1236
        %v1241 = vrsqrt.pop %v985
        %v1242 = vmul.f32 %v1241, %v985
        %v1243 = vmul.f32 %v1242, %v1241
        %v1244 = vmul.f32 0.5, %v1243
        %v1245 = vsub.f32 1.5, %v1244
        %v1246 = vmul.f32 %v1241, %v1245
        %vm1247 = vweird.f32 %v985
        %vm1248 = vweird.f32 %v1241
        %vm1249 = vmor %vm1247, %vm1248
        %v1250 = vsel %vm1249, %v1241, %v1246
        %v1251 = vrsqrt.pop %v988
        %v1252 = vmul.f32 %v1251, %v988
        %v1253 = vmul.f32 %v1252, %v1251
        %v1254 = vmul.f32 0.5, %v1253
        %v1255 = vsub.f32 1.5, %v1254
        %v1256 = vmul.f32 %v1251, %v1255
        %vm1257 = vweird.f32 %v988
        %vm1258 = vweird.f32 %v1251
        %vm1259 = vmor %vm1257, %vm1258
        %v1260 = vsel %vm1259, %v1251, %v1256
        %v1261 = vrsqrt.pop %v991
        %v1262 = vmul.f32 %v1261, %v991
        %v1263 = vmul.f32 %v1262, %v1261
        %v1264 = vmul.f32 0.5, %v1263
        %v1265 = vsub.f32 1.5, %v1264
        %v1266 = vmul.f32 %v1261, %v1265
        %vm1267 = vweird.f32 %v991
        %vm1268 = vweird.f32 %v1261
        %vm1269 = vmor %vm1267, %vm1268
        %v1270 = vsel %vm1269, %v1261, %v1266
        %v1271 = vrsqrt.pop %v994
        %v1272 = vmul.f32 %v1271, %v994
        %v1273 = vmul.f32 %v1272, %v1271
        %v1274 = vmul.f32 0.5, %v1273
        %v1275 = vsub.f32 1.5, %v1274
        %v1276 = vmul.f32 %v1271, %v1275
        %vm1277 = vweird.f32 %v994
        %vm1278 = vweird.f32 %v1271
        %vm1279 = vmor %vm1277, %vm1278
        %v1280 = vsel %vm1279, %v1271, %v1276
        %v1281 = vrsqrt.pop %v997
        %v1282 = vmul.f32 %v1281, %v997
        %v1283 = vmul.f32 %v1282, %v1281
        %v1284 = vmul.f32 0.5, %v1283
        %v1285 = vsub.f32 1.5, %v1284
        %v1286 = vmul.f32 %v1281, %v1285
        %vm1287 = vweird.f32 %v997
        %vm1288 = vweird.f32 %v1281
        %vm1289 = vmor %vm1287, %vm1288
        %v1290 = vsel %vm1289, %v1281, %v1286
        %v1291 = vrsqrt.pop %v1000
        %v1292 = vmul.f32 %v1291, %v1000
        %v1293 = vmul.f32 %v1292, %v1291
        %v1294 = vmul.f32 0.5, %v1293
        %v1295 = vsub.f32 1.5, %v1294
        %v1296 = vmul.f32 %v1291, %v1295
        %vm1297 = vweird.f32 %v1000
        %vm1298 = vweird.f32 %v1291
        %vm1299 = vmor %vm1297, %vm1298
        %v1300 = vsel %vm1299, %v1291, %v1296
        %v1301 = vrsqrt.pop %v1003
        %v1302 = vmul.f32 %v1301, %v1003
        %v1303 = vmul.f32 %v1302, %v1301
        %v1304 = vmul.f32 0.5, %v1303
        %v1305 = vsub.f32 1.5, %v1304
        %v1306 = vmul.f32 %v1301, %v1305
        %vm1307 = vweird.f32 %v1003
        %vm1308 = vweird.f32 %v1301
        %vm1309 = vmor %vm1307, %vm1308
        %v1310 = vsel %vm1309, %v1301, %v1306
        %v1311 = vrsqrt.pop %v1006
        %v1312 = vmul.f32 %v1311, %v1006
        %v1313 = vmul.f32 %v1312, %v1311
        %v1314 = vmul.f32 0.5, %v1313
        %v1315 = vsub.f32 1.5, %v1314
        %v1316 = vmul.f32 %v1311, %v1315
        %vm1317 = vweird.f32 %v1006
        %vm1318 = vweird.f32 %v1311
        %vm1319 = vmor %vm1317, %vm1318
        %v1320 = vsel %vm1319, %v1311, %v1316
        %v1321 = vrsqrt.pop %v1009
        %v1322 = vmul.f32 %v1321, %v1009
        %v1323 = vmul.f32 %v1322, %v1321
        %v1324 = vmul.f32 0.5, %v1323
        %v1325 = vsub.f32 1.5, %v1324
        %v1326 = vmul.f32 %v1321, %v1325
        %vm1327 = vweird.f32 %v1009
        %vm1328 = vweird.f32 %v1321
        %vm1329 = vmor %vm1327, %vm1328
        %v1330 = vsel %vm1329, %v1321, %v1326
        %vm1331 = vcmask 130048
        %v1333 = vsel %vm1331, %v1020, 0
        %v1336 = vsel %vm1331, %v1030, 0
        %v1339 = vsel %vm1331, %v1040, 0
        %v1342 = vsel %vm1331, %v1050, 0
        %v1345 = vsel %vm1331, %v1060, 0
        %v1348 = vsel %vm1331, %v1070, 0
        %v1351 = vsel %vm1331, %v1080, 0
        %v1354 = vsel %vm1331, %v1090, 0
        %v1357 = vsel %vm1331, %v1100, 0
        %v1360 = vsel %vm1331, %v1110, 0
        %v1363 = vsel %vm1331, %v1120, 0
        %v1366 = vsel %vm1331, %v1130, 0
        %v1369 = vsel %vm1331, %v1140, 0
        %v1372 = vsel %vm1331, %v1150, 0
        %v1375 = vsel %vm1331, %v1160, 0
        %v1378 = vsel %vm1331, %v1170, 0
        %v1381 = vsel %vm1331, %v1180, 0
        %v1384 = vsel %vm1331, %v1190, 0
        %v1387 = vsel %vm1331, %v1200, 0
        %v1390 = vsel %vm1331, %v1210, 0
        %v1393 = vsel %vm1331, %v1220, 0
        %v1396 = vsel %vm1331, %v1230, 0
        %v1399 = vsel %vm1331, %v1240, 0
        %v1402 = vsel %vm1331, %v1250, 0
        %v1405 = vsel %vm1331, %v1260, 0
        %v1408 = vsel %vm1331, %v1270, 0
        %v1411 = vsel %vm1331, %v1280, 0
        %v1414 = vsel %vm1331, %v1290, 0
        %v1417 = vsel %vm1331, %v1300, 0
        %v1420 = vsel %vm1331, %v1310, 0
        %v1423 = vsel %vm1331, %v1320, 0
        %v1426 = vsel %vm1331, %v1330, 0
        %v1429 = vsel %vm1331, %v850, 0
        %v1432 = vsel %vm1331, %v851, 0
        %v1435 = vsel %vm1331, %v852, 0
        %v1438 = vsel %vm1331, %v853, 0
        %v1441 = vsel %vm1331, %v854, 0
        %v1444 = vsel %vm1331, %v855, 0
        %v1447 = vsel %vm1331, %v856, 0
        %v1450 = vsel %vm1331, %v857, 0
        %v1453 = vsel %vm1331, %v858, 0
        %v1456 = vsel %vm1331, %v859, 0
        %v1459 = vsel %vm1331, %v860, 0
        %v1462 = vsel %vm1331, %v861, 0
        %v1465 = vsel %vm1331, %v862, 0
        %v1468 = vsel %vm1331, %v863, 0
        %v1471 = vsel %vm1331, %v864, 0
        %v1474 = vsel %vm1331, %v865, 0
        %1476 = vmatpush.xpose.msra.mxu0 %v1474
        %1477 = vmatpush.xpose.msra.mxu0 %v1471
        %1478 = vmatpush.xpose.msra.mxu0 %v1468
        %1479 = vmatpush.xpose.msra.mxu0 %v1465
        %1480 = vmatpush.xpose.msra.mxu0 %v1462
        %1481 = vmatpush.xpose.msra.mxu0 %v1459
        %1482 = vmatpush.xpose.msra.mxu0 %v1456
        %1483 = vmatpush.xpose.msra.mxu0 %v1453
        %1484 = vmatpush.xpose.msra.mxu0 %v1450
        %1485 = vmatpush.xpose.msra.mxu0 %v1447
        %1486 = vmatpush.xpose.msra.mxu0 %v1444
        %1487 = vmatpush.xpose.msra.mxu0 %v1441
        %1488 = vmatpush.xpose.msra.mxu0 %v1438
        %1489 = vmatpush.xpose.msra.mxu0 %v1435
        %1490 = vmatpush.xpose.msra.mxu0 %v1432
        %1491 = vmatpush.xpose.msra.mxu0 %v1429
        %1492 = vmatmul.f32.gmra.mxu0 %v1333
        %v1493 = vpop.f32.mrf.mxu0
        %v1494 = vadd.f32 0.0, %v1493
        %1495 = vmatmul.f32.gmra.mxu0 %v1336
        %v1496 = vpop.f32.mrf.mxu0
        %v1497 = vadd.f32 0.0, %v1496
        %1498 = vmatmul.f32.gmra.mxu0 %v1339
        %v1499 = vpop.f32.mrf.mxu0
        %v1500 = vadd.f32 0.0, %v1499
        %1501 = vmatmul.f32.gmra.mxu0 %v1342
        %v1502 = vpop.f32.mrf.mxu0
        %v1503 = vadd.f32 0.0, %v1502
        %1504 = vmatmul.f32.gmra.mxu0 %v1345
        %v1505 = vpop.f32.mrf.mxu0
        %v1506 = vadd.f32 0.0, %v1505
        %1507 = vmatmul.f32.gmra.mxu0 %v1348
        %v1508 = vpop.f32.mrf.mxu0
        %v1509 = vadd.f32 0.0, %v1508
        %1510 = vmatmul.f32.gmra.mxu0 %v1351
        %v1511 = vpop.f32.mrf.mxu0
        %v1512 = vadd.f32 0.0, %v1511
        %1513 = vmatmul.f32.gmra.mxu0 %v1354
        %v1514 = vpop.f32.mrf.mxu0
        %v1515 = vadd.f32 0.0, %v1514
        %1516 = vmatmul.f32.gmra.mxu0 %v1357
        %v1517 = vpop.f32.mrf.mxu0
        %v1518 = vadd.f32 0.0, %v1517
        %1519 = vmatmul.f32.gmra.mxu0 %v1360
        %v1520 = vpop.f32.mrf.mxu0
        %v1521 = vadd.f32 0.0, %v1520
        %1522 = vmatmul.f32.gmra.mxu0 %v1363
        %v1523 = vpop.f32.mrf.mxu0
        %v1524 = vadd.f32 0.0, %v1523
        %1525 = vmatmul.f32.gmra.mxu0 %v1366
        %v1526 = vpop.f32.mrf.mxu0
        %v1527 = vadd.f32 0.0, %v1526
        %1528 = vmatmul.f32.gmra.mxu0 %v1369
        %v1529 = vpop.f32.mrf.mxu0
        %v1530 = vadd.f32 0.0, %v1529
        %1531 = vmatmul.f32.gmra.mxu0 %v1372
        %v1532 = vpop.f32.mrf.mxu0
        %v1533 = vadd.f32 0.0, %v1532
        %1534 = vmatmul.f32.gmra.mxu0 %v1375
        %v1535 = vpop.f32.mrf.mxu0
        %v1536 = vadd.f32 0.0, %v1535
        %1537 = vmatmul.f32.gmra.mxu0 %v1378
        %v1538 = vpop.f32.mrf.mxu0
        %v1539 = vadd.f32 0.0, %v1538
        %1540 = vmatmul.f32.gmra.mxu0 %v1381
        %v1541 = vpop.f32.mrf.mxu0
        %v1542 = vadd.f32 0.0, %v1541
        %1543 = vmatmul.f32.gmra.mxu0 %v1384
        %v1544 = vpop.f32.mrf.mxu0
        %v1545 = vadd.f32 0.0, %v1544
        %1546 = vmatmul.f32.gmra.mxu0 %v1387
        %v1547 = vpop.f32.mrf.mxu0
        %v1548 = vadd.f32 0.0, %v1547
        %1549 = vmatmul.f32.gmra.mxu0 %v1390
        %v1550 = vpop.f32.mrf.mxu0
        %v1551 = vadd.f32 0.0, %v1550
        %1552 = vmatmul.f32.gmra.mxu0 %v1393
        %v1553 = vpop.f32.mrf.mxu0
        %v1554 = vadd.f32 0.0, %v1553
        %1555 = vmatmul.f32.gmra.mxu0 %v1396
        %v1556 = vpop.f32.mrf.mxu0
        %v1557 = vadd.f32 0.0, %v1556
        %1558 = vmatmul.f32.gmra.mxu0 %v1399
        %v1559 = vpop.f32.mrf.mxu0
        %v1560 = vadd.f32 0.0, %v1559
        %1561 = vmatmul.f32.gmra.mxu0 %v1402
        %v1562 = vpop.f32.mrf.mxu0
        %v1563 = vadd.f32 0.0, %v1562
        %1564 = vmatmul.f32.gmra.mxu0 %v1405
        %v1565 = vpop.f32.mrf.mxu0
        %v1566 = vadd.f32 0.0, %v1565
        %1567 = vmatmul.f32.gmra.mxu0 %v1408
        %v1568 = vpop.f32.mrf.mxu0
        %v1569 = vadd.f32 0.0, %v1568
        %1570 = vmatmul.f32.gmra.mxu0 %v1411
        %v1571 = vpop.f32.mrf.mxu0
        %v1572 = vadd.f32 0.0, %v1571
        %1573 = vmatmul.f32.gmra.mxu0 %v1414
        %v1574 = vpop.f32.mrf.mxu0
        %v1575 = vadd.f32 0.0, %v1574
        %1576 = vmatmul.f32.gmra.mxu0 %v1417
        %v1577 = vpop.f32.mrf.mxu0
        %v1578 = vadd.f32 0.0, %v1577
        %1579 = vmatmul.f32.gmra.mxu0 %v1420
        %v1580 = vpop.f32.mrf.mxu0
        %v1581 = vadd.f32 0.0, %v1580
        %1582 = vmatmul.f32.gmra.mxu0 %v1423
        %v1583 = vpop.f32.mrf.mxu0
        %v1584 = vadd.f32 0.0, %v1583
        %1585 = vmatmul.f32.gmra.mxu0 %v1426
        %v1586 = vpop.f32.mrf.mxu0
        %v1587 = vadd.f32 0.0, %v1586
        %1588 = vdwg.mxu0
        %v1589 = vmul.f32 %v818, %v1494
        %v1590 = vmul.f32 %v819, %v1497
        %v1591 = vmul.f32 %v820, %v1500
        %v1592 = vmul.f32 %v821, %v1503
        %v1593 = vmul.f32 %v822, %v1506
        %v1594 = vmul.f32 %v823, %v1509
        %v1595 = vmul.f32 %v824, %v1512
        %v1596 = vmul.f32 %v825, %v1515
        %v1597 = vmul.f32 %v826, %v1518
        %v1598 = vmul.f32 %v827, %v1521
        %v1599 = vmul.f32 %v828, %v1524
        %v1600 = vmul.f32 %v829, %v1527
        %v1601 = vmul.f32 %v830, %v1530
        %v1602 = vmul.f32 %v831, %v1533
        %v1603 = vmul.f32 %v832, %v1536
        %v1604 = vmul.f32 %v833, %v1539
        %v1605 = vmul.f32 %v834, %v1542
        %v1606 = vmul.f32 %v835, %v1545
        %v1607 = vmul.f32 %v836, %v1548
        %v1608 = vmul.f32 %v837, %v1551
        %v1609 = vmul.f32 %v838, %v1554
        %v1610 = vmul.f32 %v839, %v1557
        %v1611 = vmul.f32 %v840, %v1560
        %v1612 = vmul.f32 %v841, %v1563
        %v1613 = vmul.f32 %v842, %v1566
        %v1614 = vmul.f32 %v843, %v1569
        %v1615 = vmul.f32 %v844, %v1572
        %v1616 = vmul.f32 %v845, %v1575
        %v1617 = vmul.f32 %v846, %v1578
        %v1618 = vmul.f32 %v847, %v1581
        %v1619 = vmul.f32 %v848, %v1584
        %v1620 = vmul.f32 %v849, %v1587
        %v1621 = vld [vmem:[%s428] sm:$0xff]
        %v1622 = vld [vmem:[%s428 + $0x8] sm:$0xff]
        %v1623 = vld [vmem:[%s428 + $0x10] sm:$0xff]
        %v1624 = vld [vmem:[%s428 + $0x18] sm:$0xff]
        %v1625 = vlaneseq
        %v1626 = vand.u32 %v1625, 127
        %1627 = vset.pattern.permute.xlu0 0
        %1628 = vperm.xlu0 %1627, %v1621
        %v1629 = vpop.permute.xlu0 %1628
        %1630 = vset.pattern.permute.xlu0 0
        %1631 = vperm.xlu0 %1630, %v1622
        %v1632 = vpop.permute.xlu0 %1631
        %1633 = vset.pattern.permute.xlu0 0
        %1634 = vperm.xlu0 %1633, %v1623
        %v1635 = vpop.permute.xlu0 %1634
        %1636 = vset.pattern.permute.xlu0 0
        %1637 = vperm.xlu0 %1636, %v1624
        %v1638 = vpop.permute.xlu0 %1637
        %vm1639 = vcmp.lt.s32.totalorder %v1626, %v1629
        %vm1640 = vcmp.lt.s32.totalorder %v1626, %v1632
        %vm1641 = vcmp.lt.s32.totalorder %v1626, %v1635
        %vm1642 = vcmp.lt.s32.totalorder %v1626, %v1638
        %v1643 = vsel %vm1639, 1, 0
        %v1644 = vsel %vm1640, 1, 0
        %v1645 = vsel %vm1641, 1, 0
        %v1646 = vsel %vm1642, 1, 0
        %v1647 = vcvt.s32.f32 %v1643
        %v1648 = vcvt.s32.f32 %v1644
        %v1649 = vcvt.s32.f32 %v1645
        %v1650 = vcvt.s32.f32 %v1646
        %v1651 = vmul.f32 %v1589, 4.0
        %v1652 = vmul.f32 %v1590, 4.0
        %v1653 = vmul.f32 %v1591, 4.0
        %v1654 = vmul.f32 %v1592, 4.0
        %v1655 = vmul.f32 %v1593, 4.0
        %v1656 = vmul.f32 %v1594, 4.0
        %v1657 = vmul.f32 %v1595, 4.0
        %v1658 = vmul.f32 %v1596, 4.0
        %v1659 = vmul.f32 %v1597, 4.0
        %v1660 = vmul.f32 %v1598, 4.0
        %v1661 = vmul.f32 %v1599, 4.0
        %v1662 = vmul.f32 %v1600, 4.0
        %v1663 = vmul.f32 %v1601, 4.0
        %v1664 = vmul.f32 %v1602, 4.0
        %v1665 = vmul.f32 %v1603, 4.0
        %v1666 = vmul.f32 %v1604, 4.0
        %v1667 = vmul.f32 %v1605, 4.0
        %v1668 = vmul.f32 %v1606, 4.0
        %v1669 = vmul.f32 %v1607, 4.0
        %v1670 = vmul.f32 %v1608, 4.0
        %v1671 = vmul.f32 %v1609, 4.0
        %v1672 = vmul.f32 %v1610, 4.0
        %v1673 = vmul.f32 %v1611, 4.0
        %v1674 = vmul.f32 %v1612, 4.0
        %v1675 = vmul.f32 %v1613, 4.0
        %v1676 = vmul.f32 %v1614, 4.0
        %v1677 = vmul.f32 %v1615, 4.0
        %v1678 = vmul.f32 %v1616, 4.0
        %v1679 = vmul.f32 %v1617, 4.0
        %v1680 = vmul.f32 %v1618, 4.0
        %v1681 = vmul.f32 %v1619, 4.0
        %v1682 = vmul.f32 %v1620, 4.0
        %v1683 = vmul.f32 %v1651, 1.442695
        %v1684 = vpow.pop %v1683
        %v1685 = vmul.f32 %v1652, 1.442695
        %v1686 = vpow.pop %v1685
        %v1687 = vmul.f32 %v1653, 1.442695
        %v1688 = vpow.pop %v1687
        %v1689 = vmul.f32 %v1654, 1.442695
        %v1690 = vpow.pop %v1689
        %v1691 = vmul.f32 %v1655, 1.442695
        %v1692 = vpow.pop %v1691
        %v1693 = vmul.f32 %v1656, 1.442695
        %v1694 = vpow.pop %v1693
        %v1695 = vmul.f32 %v1657, 1.442695
        %v1696 = vpow.pop %v1695
        %v1697 = vmul.f32 %v1658, 1.442695
        %v1698 = vpow.pop %v1697
        %v1699 = vmul.f32 %v1659, 1.442695
        %v1700 = vpow.pop %v1699
        %v1701 = vmul.f32 %v1660, 1.442695
        %v1702 = vpow.pop %v1701
        %v1703 = vmul.f32 %v1661, 1.442695
        %v1704 = vpow.pop %v1703
        %v1705 = vmul.f32 %v1662, 1.442695
        %v1706 = vpow.pop %v1705
        %v1707 = vmul.f32 %v1663, 1.442695
        %v1708 = vpow.pop %v1707
        %v1709 = vmul.f32 %v1664, 1.442695
        %v1710 = vpow.pop %v1709
        %v1711 = vmul.f32 %v1665, 1.442695
        %v1712 = vpow.pop %v1711
        %v1713 = vmul.f32 %v1666, 1.442695
        %v1714 = vpow.pop %v1713
        %v1715 = vmul.f32 %v1667, 1.442695
        %v1716 = vpow.pop %v1715
        %v1717 = vmul.f32 %v1668, 1.442695
        %v1718 = vpow.pop %v1717
        %v1719 = vmul.f32 %v1669, 1.442695
        %v1720 = vpow.pop %v1719
        %v1721 = vmul.f32 %v1670, 1.442695
        %v1722 = vpow.pop %v1721
        %v1723 = vmul.f32 %v1671, 1.442695
        %v1724 = vpow.pop %v1723
        %v1725 = vmul.f32 %v1672, 1.442695
        %v1726 = vpow.pop %v1725
        %v1727 = vmul.f32 %v1673, 1.442695
        %v1728 = vpow.pop %v1727
        %v1729 = vmul.f32 %v1674, 1.442695
        %v1730 = vpow.pop %v1729
        %v1731 = vmul.f32 %v1675, 1.442695
        %v1732 = vpow.pop %v1731
        %v1733 = vmul.f32 %v1676, 1.442695
        %v1734 = vpow.pop %v1733
        %v1735 = vmul.f32 %v1677, 1.442695
        %v1736 = vpow.pop %v1735
        %v1737 = vmul.f32 %v1678, 1.442695
        %v1738 = vpow.pop %v1737
        %v1739 = vmul.f32 %v1679, 1.442695
        %v1740 = vpow.pop %v1739
        %v1741 = vmul.f32 %v1680, 1.442695
        %v1742 = vpow.pop %v1741
        %v1743 = vmul.f32 %v1681, 1.442695
        %v1744 = vpow.pop %v1743
        %v1745 = vmul.f32 %v1682, 1.442695
        %v1746 = vpow.pop %v1745
        %v1747 = vperm.slane %v1647, 0
        %v1748 = vlaneseq
        %v1749 = vshrl.u32 %v1748, 7
        %1751 = vset.pattern.permute.xlu0 %v1749
        %1752 = vperm.xlu0 %1751, %v1747
        %v1753 = vpop.permute.xlu0 %1752
        %v1754 = vperm.slane %v1647, 1
        %v1755 = vlaneseq
        %v1756 = vshrl.u32 %v1755, 7
        %1758 = vset.pattern.permute.xlu0 %v1756
        %1759 = vperm.xlu0 %1758, %v1754
        %v1760 = vpop.permute.xlu0 %1759
        %v1761 = vperm.slane %v1647, 2
        %v1762 = vlaneseq
        %v1763 = vshrl.u32 %v1762, 7
        %1765 = vset.pattern.permute.xlu0 %v1763
        %1766 = vperm.xlu0 %1765, %v1761
        %v1767 = vpop.permute.xlu0 %1766
        %v1768 = vperm.slane %v1647, 3
        %v1769 = vlaneseq
        %v1770 = vshrl.u32 %v1769, 7
        %1772 = vset.pattern.permute.xlu0 %v1770
        %1773 = vperm.xlu0 %1772, %v1768
        %v1774 = vpop.permute.xlu0 %1773
        %v1775 = vperm.slane %v1647, 4
        %v1776 = vlaneseq
        %v1777 = vshrl.u32 %v1776, 7
        %1779 = vset.pattern.permute.xlu0 %v1777
        %1780 = vperm.xlu0 %1779, %v1775
        %v1781 = vpop.permute.xlu0 %1780
        %v1782 = vperm.slane %v1647, 5
        %v1783 = vlaneseq
        %v1784 = vshrl.u32 %v1783, 7
        %1786 = vset.pattern.permute.xlu0 %v1784
        %1787 = vperm.xlu0 %1786, %v1782
        %v1788 = vpop.permute.xlu0 %1787
        %v1789 = vperm.slane %v1647, 6
        %v1790 = vlaneseq
        %v1791 = vshrl.u32 %v1790, 7
        %1793 = vset.pattern.permute.xlu0 %v1791
        %1794 = vperm.xlu0 %1793, %v1789
        %v1795 = vpop.permute.xlu0 %1794
        %v1796 = vperm.slane %v1647, 7
        %v1797 = vlaneseq
        %v1798 = vshrl.u32 %v1797, 7
        %1800 = vset.pattern.permute.xlu0 %v1798
        %1801 = vperm.xlu0 %1800, %v1796
        %v1802 = vpop.permute.xlu0 %1801
        %v1803 = vperm.slane %v1648, 0
        %v1804 = vlaneseq
        %v1805 = vshrl.u32 %v1804, 7
        %1807 = vset.pattern.permute.xlu0 %v1805
        %1808 = vperm.xlu0 %1807, %v1803
        %v1809 = vpop.permute.xlu0 %1808
        %v1810 = vperm.slane %v1648, 1
        %v1811 = vlaneseq
        %v1812 = vshrl.u32 %v1811, 7
        %1814 = vset.pattern.permute.xlu0 %v1812
        %1815 = vperm.xlu0 %1814, %v1810
        %v1816 = vpop.permute.xlu0 %1815
        %v1817 = vperm.slane %v1648, 2
        %v1818 = vlaneseq
        %v1819 = vshrl.u32 %v1818, 7
        %1821 = vset.pattern.permute.xlu0 %v1819
        %1822 = vperm.xlu0 %1821, %v1817
        %v1823 = vpop.permute.xlu0 %1822
        %v1824 = vperm.slane %v1648, 3
        %v1825 = vlaneseq
        %v1826 = vshrl.u32 %v1825, 7
        %1828 = vset.pattern.permute.xlu0 %v1826
        %1829 = vperm.xlu0 %1828, %v1824
        %v1830 = vpop.permute.xlu0 %1829
        %v1831 = vperm.slane %v1648, 4
        %v1832 = vlaneseq
        %v1833 = vshrl.u32 %v1832, 7
        %1835 = vset.pattern.permute.xlu0 %v1833
        %1836 = vperm.xlu0 %1835, %v1831
        %v1837 = vpop.permute.xlu0 %1836
        %v1838 = vperm.slane %v1648, 5
        %v1839 = vlaneseq
        %v1840 = vshrl.u32 %v1839, 7
        %1842 = vset.pattern.permute.xlu0 %v1840
        %1843 = vperm.xlu0 %1842, %v1838
        %v1844 = vpop.permute.xlu0 %1843
        %v1845 = vperm.slane %v1648, 6
        %v1846 = vlaneseq
        %v1847 = vshrl.u32 %v1846, 7
        %1849 = vset.pattern.permute.xlu0 %v1847
        %1850 = vperm.xlu0 %1849, %v1845
        %v1851 = vpop.permute.xlu0 %1850
        %v1852 = vperm.slane %v1648, 7
        %v1853 = vlaneseq
        %v1854 = vshrl.u32 %v1853, 7
        %1856 = vset.pattern.permute.xlu0 %v1854
        %1857 = vperm.xlu0 %1856, %v1852
        %v1858 = vpop.permute.xlu0 %1857
        %v1859 = vperm.slane %v1649, 0
        %v1860 = vlaneseq
        %v1861 = vshrl.u32 %v1860, 7
        %1863 = vset.pattern.permute.xlu0 %v1861
        %1864 = vperm.xlu0 %1863, %v1859
        %v1865 = vpop.permute.xlu0 %1864
        %v1866 = vperm.slane %v1649, 1
        %v1867 = vlaneseq
        %v1868 = vshrl.u32 %v1867, 7
        %1870 = vset.pattern.permute.xlu0 %v1868
        %1871 = vperm.xlu0 %1870, %v1866
        %v1872 = vpop.permute.xlu0 %1871
        %v1873 = vperm.slane %v1649, 2
        %v1874 = vlaneseq
        %v1875 = vshrl.u32 %v1874, 7
        %1877 = vset.pattern.permute.xlu0 %v1875
        %1878 = vperm.xlu0 %1877, %v1873
        %v1879 = vpop.permute.xlu0 %1878
        %v1880 = vperm.slane %v1649, 3
        %v1881 = vlaneseq
        %v1882 = vshrl.u32 %v1881, 7
        %1884 = vset.pattern.permute.xlu0 %v1882
        %1885 = vperm.xlu0 %1884, %v1880
        %v1886 = vpop.permute.xlu0 %1885
        %v1887 = vperm.slane %v1649, 4
        %v1888 = vlaneseq
        %v1889 = vshrl.u32 %v1888, 7
        %1891 = vset.pattern.permute.xlu0 %v1889
        %1892 = vperm.xlu0 %1891, %v1887
        %v1893 = vpop.permute.xlu0 %1892
        %v1894 = vperm.slane %v1649, 5
        %v1895 = vlaneseq
        %v1896 = vshrl.u32 %v1895, 7
        %1898 = vset.pattern.permute.xlu0 %v1896
        %1899 = vperm.xlu0 %1898, %v1894
        %v1900 = vpop.permute.xlu0 %1899
        %v1901 = vperm.slane %v1649, 6
        %v1902 = vlaneseq
        %v1903 = vshrl.u32 %v1902, 7
        %1905 = vset.pattern.permute.xlu0 %v1903
        %1906 = vperm.xlu0 %1905, %v1901
        %v1907 = vpop.permute.xlu0 %1906
        %v1908 = vperm.slane %v1649, 7
        %v1909 = vlaneseq
        %v1910 = vshrl.u32 %v1909, 7
        %1912 = vset.pattern.permute.xlu0 %v1910
        %1913 = vperm.xlu0 %1912, %v1908
        %v1914 = vpop.permute.xlu0 %1913
        %v1915 = vperm.slane %v1650, 0
        %v1916 = vlaneseq
        %v1917 = vshrl.u32 %v1916, 7
        %1919 = vset.pattern.permute.xlu0 %v1917
        %1920 = vperm.xlu0 %1919, %v1915
        %v1921 = vpop.permute.xlu0 %1920
        %v1922 = vperm.slane %v1650, 1
        %v1923 = vlaneseq
        %v1924 = vshrl.u32 %v1923, 7
        %1926 = vset.pattern.permute.xlu0 %v1924
        %1927 = vperm.xlu0 %1926, %v1922
        %v1928 = vpop.permute.xlu0 %1927
        %v1929 = vperm.slane %v1650, 2
        %v1930 = vlaneseq
        %v1931 = vshrl.u32 %v1930, 7
        %1933 = vset.pattern.permute.xlu0 %v1931
        %1934 = vperm.xlu0 %1933, %v1929
        %v1935 = vpop.permute.xlu0 %1934
        %v1936 = vperm.slane %v1650, 3
        %v1937 = vlaneseq
        %v1938 = vshrl.u32 %v1937, 7
        %1940 = vset.pattern.permute.xlu0 %v1938
        %1941 = vperm.xlu0 %1940, %v1936
        %v1942 = vpop.permute.xlu0 %1941
        %v1943 = vperm.slane %v1650, 4
        %v1944 = vlaneseq
        %v1945 = vshrl.u32 %v1944, 7
        %1947 = vset.pattern.permute.xlu0 %v1945
        %1948 = vperm.xlu0 %1947, %v1943
        %v1949 = vpop.permute.xlu0 %1948
        %v1950 = vperm.slane %v1650, 5
        %v1951 = vlaneseq
        %v1952 = vshrl.u32 %v1951, 7
        %1954 = vset.pattern.permute.xlu0 %v1952
        %1955 = vperm.xlu0 %1954, %v1950
        %v1956 = vpop.permute.xlu0 %1955
        %v1957 = vperm.slane %v1650, 6
        %v1958 = vlaneseq
        %v1959 = vshrl.u32 %v1958, 7
        %1961 = vset.pattern.permute.xlu0 %v1959
        %1962 = vperm.xlu0 %1961, %v1957
        %v1963 = vpop.permute.xlu0 %1962
        %v1964 = vperm.slane %v1650, 7
        %v1965 = vlaneseq
        %v1966 = vshrl.u32 %v1965, 7
        %1968 = vset.pattern.permute.xlu0 %v1966
        %1969 = vperm.xlu0 %1968, %v1964
        %v1970 = vpop.permute.xlu0 %1969
        %v1971 = vmul.f32 %v1684, %v1753
        %v1972 = vmul.f32 %v1686, %v1760
        %v1973 = vmul.f32 %v1688, %v1767
        %v1974 = vmul.f32 %v1690, %v1774
        %v1975 = vmul.f32 %v1692, %v1781
        %v1976 = vmul.f32 %v1694, %v1788
        %v1977 = vmul.f32 %v1696, %v1795
        %v1978 = vmul.f32 %v1698, %v1802
        %v1979 = vmul.f32 %v1700, %v1809
        %v1980 = vmul.f32 %v1702, %v1816
        %v1981 = vmul.f32 %v1704, %v1823
        %v1982 = vmul.f32 %v1706, %v1830
        %v1983 = vmul.f32 %v1708, %v1837
        %v1984 = vmul.f32 %v1710, %v1844
        %v1985 = vmul.f32 %v1712, %v1851
        %v1986 = vmul.f32 %v1714, %v1858
        %v1987 = vmul.f32 %v1716, %v1865
        %v1988 = vmul.f32 %v1718, %v1872
        %v1989 = vmul.f32 %v1720, %v1879
        %v1990 = vmul.f32 %v1722, %v1886
        %v1991 = vmul.f32 %v1724, %v1893
        %v1992 = vmul.f32 %v1726, %v1900
        %v1993 = vmul.f32 %v1728, %v1907
        %v1994 = vmul.f32 %v1730, %v1914
        %v1995 = vmul.f32 %v1732, %v1921
        %v1996 = vmul.f32 %v1734, %v1928
        %v1997 = vmul.f32 %v1736, %v1935
        %v1998 = vmul.f32 %v1738, %v1942
        %v1999 = vmul.f32 %v1740, %v1949
        %v2000 = vmul.f32 %v1742, %v1956
        %v2001 = vmul.f32 %v1744, %v1963
        %v2002 = vmul.f32 %v1746, %v1970
        %v2003 = vrot.slane %v1971, 4
        %v2004 = vadd.f32 %v1971, %v2003
        %v2005 = vrot.slane %v2004, 2
        %v2006 = vadd.f32 %v2004, %v2005
        %v2007 = vrot.slane %v2006, 1
        %v2008 = vadd.f32 %v2006, %v2007
        %v2009 = vrot.slane %v1972, 4
        %v2010 = vadd.f32 %v1972, %v2009
        %v2011 = vrot.slane %v2010, 2
        %v2012 = vadd.f32 %v2010, %v2011
        %v2013 = vrot.slane %v2012, 1
        %v2014 = vadd.f32 %v2012, %v2013
        %v2015 = vrot.slane %v1973, 4
        %v2016 = vadd.f32 %v1973, %v2015
        %v2017 = vrot.slane %v2016, 2
        %v2018 = vadd.f32 %v2016, %v2017
        %v2019 = vrot.slane %v2018, 1
        %v2020 = vadd.f32 %v2018, %v2019
        %v2021 = vrot.slane %v1974, 4
        %v2022 = vadd.f32 %v1974, %v2021
        %v2023 = vrot.slane %v2022, 2
        %v2024 = vadd.f32 %v2022, %v2023
        %v2025 = vrot.slane %v2024, 1
        %v2026 = vadd.f32 %v2024, %v2025
        %v2027 = vrot.slane %v1975, 4
        %v2028 = vadd.f32 %v1975, %v2027
        %v2029 = vrot.slane %v2028, 2
        %v2030 = vadd.f32 %v2028, %v2029
        %v2031 = vrot.slane %v2030, 1
        %v2032 = vadd.f32 %v2030, %v2031
        %v2033 = vrot.slane %v1976, 4
        %v2034 = vadd.f32 %v1976, %v2033
        %v2035 = vrot.slane %v2034, 2
        %v2036 = vadd.f32 %v2034, %v2035
        %v2037 = vrot.slane %v2036, 1
        %v2038 = vadd.f32 %v2036, %v2037
        %v2039 = vrot.slane %v1977, 4
        %v2040 = vadd.f32 %v1977, %v2039
        %v2041 = vrot.slane %v2040, 2
        %v2042 = vadd.f32 %v2040, %v2041
        %v2043 = vrot.slane %v2042, 1
        %v2044 = vadd.f32 %v2042, %v2043
        %v2045 = vrot.slane %v1978, 4
        %v2046 = vadd.f32 %v1978, %v2045
        %v2047 = vrot.slane %v2046, 2
        %v2048 = vadd.f32 %v2046, %v2047
        %v2049 = vrot.slane %v2048, 1
        %v2050 = vadd.f32 %v2048, %v2049
        %v2051 = vrot.slane %v1979, 4
        %v2052 = vadd.f32 %v1979, %v2051
        %v2053 = vrot.slane %v2052, 2
        %v2054 = vadd.f32 %v2052, %v2053
        %v2055 = vrot.slane %v2054, 1
        %v2056 = vadd.f32 %v2054, %v2055
        %v2057 = vrot.slane %v1980, 4
        %v2058 = vadd.f32 %v1980, %v2057
        %v2059 = vrot.slane %v2058, 2
        %v2060 = vadd.f32 %v2058, %v2059
        %v2061 = vrot.slane %v2060, 1
        %v2062 = vadd.f32 %v2060, %v2061
        %v2063 = vrot.slane %v1981, 4
        %v2064 = vadd.f32 %v1981, %v2063
        %v2065 = vrot.slane %v2064, 2
        %v2066 = vadd.f32 %v2064, %v2065
        %v2067 = vrot.slane %v2066, 1
        %v2068 = vadd.f32 %v2066, %v2067
        %v2069 = vrot.slane %v1982, 4
        %v2070 = vadd.f32 %v1982, %v2069
        %v2071 = vrot.slane %v2070, 2
        %v2072 = vadd.f32 %v2070, %v2071
        %v2073 = vrot.slane %v2072, 1
        %v2074 = vadd.f32 %v2072, %v2073
        %v2075 = vrot.slane %v1983, 4
        %v2076 = vadd.f32 %v1983, %v2075
        %v2077 = vrot.slane %v2076, 2
        %v2078 = vadd.f32 %v2076, %v2077
        %v2079 = vrot.slane %v2078, 1
        %v2080 = vadd.f32 %v2078, %v2079
        %v2081 = vrot.slane %v1984, 4
        %v2082 = vadd.f32 %v1984, %v2081
        %v2083 = vrot.slane %v2082, 2
        %v2084 = vadd.f32 %v2082, %v2083
        %v2085 = vrot.slane %v2084, 1
        %v2086 = vadd.f32 %v2084, %v2085
        %v2087 = vrot.slane %v1985, 4
        %v2088 = vadd.f32 %v1985, %v2087
        %v2089 = vrot.slane %v2088, 2
        %v2090 = vadd.f32 %v2088, %v2089
        %v2091 = vrot.slane %v2090, 1
        %v2092 = vadd.f32 %v2090, %v2091
        %v2093 = vrot.slane %v1986, 4
        %v2094 = vadd.f32 %v1986, %v2093
        %v2095 = vrot.slane %v2094, 2
        %v2096 = vadd.f32 %v2094, %v2095
        %v2097 = vrot.slane %v2096, 1
        %v2098 = vadd.f32 %v2096, %v2097
        %v2099 = vrot.slane %v1987, 4
        %v2100 = vadd.f32 %v1987, %v2099
        %v2101 = vrot.slane %v2100, 2
        %v2102 = vadd.f32 %v2100, %v2101
        %v2103 = vrot.slane %v2102, 1
        %v2104 = vadd.f32 %v2102, %v2103
        %v2105 = vrot.slane %v1988, 4
        %v2106 = vadd.f32 %v1988, %v2105
        %v2107 = vrot.slane %v2106, 2
        %v2108 = vadd.f32 %v2106, %v2107
        %v2109 = vrot.slane %v2108, 1
        %v2110 = vadd.f32 %v2108, %v2109
        %v2111 = vrot.slane %v1989, 4
        %v2112 = vadd.f32 %v1989, %v2111
        %v2113 = vrot.slane %v2112, 2
        %v2114 = vadd.f32 %v2112, %v2113
        %v2115 = vrot.slane %v2114, 1
        %v2116 = vadd.f32 %v2114, %v2115
        %v2117 = vrot.slane %v1990, 4
        %v2118 = vadd.f32 %v1990, %v2117
        %v2119 = vrot.slane %v2118, 2
        %v2120 = vadd.f32 %v2118, %v2119
        %v2121 = vrot.slane %v2120, 1
        %v2122 = vadd.f32 %v2120, %v2121
        %v2123 = vrot.slane %v1991, 4
        %v2124 = vadd.f32 %v1991, %v2123
        %v2125 = vrot.slane %v2124, 2
        %v2126 = vadd.f32 %v2124, %v2125
        %v2127 = vrot.slane %v2126, 1
        %v2128 = vadd.f32 %v2126, %v2127
        %v2129 = vrot.slane %v1992, 4
        %v2130 = vadd.f32 %v1992, %v2129
        %v2131 = vrot.slane %v2130, 2
        %v2132 = vadd.f32 %v2130, %v2131
        %v2133 = vrot.slane %v2132, 1
        %v2134 = vadd.f32 %v2132, %v2133
        %v2135 = vrot.slane %v1993, 4
        %v2136 = vadd.f32 %v1993, %v2135
        %v2137 = vrot.slane %v2136, 2
        %v2138 = vadd.f32 %v2136, %v2137
        %v2139 = vrot.slane %v2138, 1
        %v2140 = vadd.f32 %v2138, %v2139
        %v2141 = vrot.slane %v1994, 4
        %v2142 = vadd.f32 %v1994, %v2141
        %v2143 = vrot.slane %v2142, 2
        %v2144 = vadd.f32 %v2142, %v2143
        %v2145 = vrot.slane %v2144, 1
        %v2146 = vadd.f32 %v2144, %v2145
        %v2147 = vrot.slane %v1995, 4
        %v2148 = vadd.f32 %v1995, %v2147
        %v2149 = vrot.slane %v2148, 2
        %v2150 = vadd.f32 %v2148, %v2149
        %v2151 = vrot.slane %v2150, 1
        %v2152 = vadd.f32 %v2150, %v2151
        %v2153 = vrot.slane %v1996, 4
        %v2154 = vadd.f32 %v1996, %v2153
        %v2155 = vrot.slane %v2154, 2
        %v2156 = vadd.f32 %v2154, %v2155
        %v2157 = vrot.slane %v2156, 1
        %v2158 = vadd.f32 %v2156, %v2157
        %v2159 = vrot.slane %v1997, 4
        %v2160 = vadd.f32 %v1997, %v2159
        %v2161 = vrot.slane %v2160, 2
        %v2162 = vadd.f32 %v2160, %v2161
        %v2163 = vrot.slane %v2162, 1
        %v2164 = vadd.f32 %v2162, %v2163
        %v2165 = vrot.slane %v1998, 4
        %v2166 = vadd.f32 %v1998, %v2165
        %v2167 = vrot.slane %v2166, 2
        %v2168 = vadd.f32 %v2166, %v2167
        %v2169 = vrot.slane %v2168, 1
        %v2170 = vadd.f32 %v2168, %v2169
        %v2171 = vrot.slane %v1999, 4
        %v2172 = vadd.f32 %v1999, %v2171
        %v2173 = vrot.slane %v2172, 2
        %v2174 = vadd.f32 %v2172, %v2173
        %v2175 = vrot.slane %v2174, 1
        %v2176 = vadd.f32 %v2174, %v2175
        %v2177 = vrot.slane %v2000, 4
        %v2178 = vadd.f32 %v2000, %v2177
        %v2179 = vrot.slane %v2178, 2
        %v2180 = vadd.f32 %v2178, %v2179
        %v2181 = vrot.slane %v2180, 1
        %v2182 = vadd.f32 %v2180, %v2181
        %v2183 = vrot.slane %v2001, 4
        %v2184 = vadd.f32 %v2001, %v2183
        %v2185 = vrot.slane %v2184, 2
        %v2186 = vadd.f32 %v2184, %v2185
        %v2187 = vrot.slane %v2186, 1
        %v2188 = vadd.f32 %v2186, %v2187
        %v2189 = vrot.slane %v2002, 4
        %v2190 = vadd.f32 %v2002, %v2189
        %v2191 = vrot.slane %v2190, 2
        %v2192 = vadd.f32 %v2190, %v2191
        %v2193 = vrot.slane %v2192, 1
        %v2194 = vadd.f32 %v2192, %v2193
        %v2195 = vrcp.pop %v2008
        %v2196 = vrcp.pop %v2014
        %v2197 = vrcp.pop %v2020
        %v2198 = vrcp.pop %v2026
        %v2199 = vrcp.pop %v2032
        %v2200 = vrcp.pop %v2038
        %v2201 = vrcp.pop %v2044
        %v2202 = vrcp.pop %v2050
        %v2203 = vrcp.pop %v2056
        %v2204 = vrcp.pop %v2062
        %v2205 = vrcp.pop %v2068
        %v2206 = vrcp.pop %v2074
        %v2207 = vrcp.pop %v2080
        %v2208 = vrcp.pop %v2086
        %v2209 = vrcp.pop %v2092
        %v2210 = vrcp.pop %v2098
        %v2211 = vrcp.pop %v2104
        %v2212 = vrcp.pop %v2110
        %v2213 = vrcp.pop %v2116
        %v2214 = vrcp.pop %v2122
        %v2215 = vrcp.pop %v2128
        %v2216 = vrcp.pop %v2134
        %v2217 = vrcp.pop %v2140
        %v2218 = vrcp.pop %v2146
        %v2219 = vrcp.pop %v2152
        %v2220 = vrcp.pop %v2158
        %v2221 = vrcp.pop %v2164
        %v2222 = vrcp.pop %v2170
        %v2223 = vrcp.pop %v2176
        %v2224 = vrcp.pop %v2182
        %v2225 = vrcp.pop %v2188
        %v2226 = vrcp.pop %v2194
        %v2227 = vmul.f32 %v1971, %v2195
        %v2228 = vmul.f32 %v1972, %v2196
        %v2229 = vmul.f32 %v1973, %v2197
        %v2230 = vmul.f32 %v1974, %v2198
        %v2231 = vmul.f32 %v1975, %v2199
        %v2232 = vmul.f32 %v1976, %v2200
        %v2233 = vmul.f32 %v1977, %v2201
        %v2234 = vmul.f32 %v1978, %v2202
        %v2235 = vmul.f32 %v1979, %v2203
        %v2236 = vmul.f32 %v1980, %v2204
        %v2237 = vmul.f32 %v1981, %v2205
        %v2238 = vmul.f32 %v1982, %v2206
        %v2239 = vmul.f32 %v1983, %v2207
        %v2240 = vmul.f32 %v1984, %v2208
        %v2241 = vmul.f32 %v1985, %v2209
        %v2242 = vmul.f32 %v1986, %v2210
        %v2243 = vmul.f32 %v1987, %v2211
        %v2244 = vmul.f32 %v1988, %v2212
        %v2245 = vmul.f32 %v1989, %v2213
        %v2246 = vmul.f32 %v1990, %v2214
        %v2247 = vmul.f32 %v1991, %v2215
        %v2248 = vmul.f32 %v1992, %v2216
        %v2249 = vmul.f32 %v1993, %v2217
        %v2250 = vmul.f32 %v1994, %v2218
        %v2251 = vmul.f32 %v1995, %v2219
        %v2252 = vmul.f32 %v1996, %v2220
        %v2253 = vmul.f32 %v1997, %v2221
        %v2254 = vmul.f32 %v1998, %v2222
        %v2255 = vmul.f32 %v1999, %v2223
        %v2256 = vmul.f32 %v2000, %v2224
        %v2257 = vmul.f32 %v2001, %v2225
        %v2258 = vmul.f32 %v2002, %v2226
        %v2259 = vmul.f32 %v2227, %v722
        %v2260 = vmul.f32 %v2228, %v723
        %v2261 = vmul.f32 %v2229, %v724
        %v2262 = vmul.f32 %v2230, %v725
        %v2263 = vmul.f32 %v2231, %v726
        %v2264 = vmul.f32 %v2232, %v727
        %v2265 = vmul.f32 %v2233, %v728
        %v2266 = vmul.f32 %v2234, %v729
        %v2267 = vmul.f32 %v2235, %v730
        %v2268 = vmul.f32 %v2236, %v731
        %v2269 = vmul.f32 %v2237, %v732
        %v2270 = vmul.f32 %v2238, %v733
        %v2271 = vmul.f32 %v2239, %v734
        %v2272 = vmul.f32 %v2240, %v735
        %v2273 = vmul.f32 %v2241, %v736
        %v2274 = vmul.f32 %v2242, %v737
        %v2275 = vmul.f32 %v2243, %v738
        %v2276 = vmul.f32 %v2244, %v739
        %v2277 = vmul.f32 %v2245, %v740
        %v2278 = vmul.f32 %v2246, %v741
        %v2279 = vmul.f32 %v2247, %v742
        %v2280 = vmul.f32 %v2248, %v743
        %v2281 = vmul.f32 %v2249, %v744
        %v2282 = vmul.f32 %v2250, %v745
        %v2283 = vmul.f32 %v2251, %v746
        %v2284 = vmul.f32 %v2252, %v747
        %v2285 = vmul.f32 %v2253, %v748
        %v2286 = vmul.f32 %v2254, %v749
        %v2287 = vmul.f32 %v2255, %v750
        %v2288 = vmul.f32 %v2256, %v751
        %v2289 = vmul.f32 %v2257, %v752
        %v2290 = vmul.f32 %v2258, %v753
        %v2291 = vrot.slane %v2259, 4
        %v2292 = vadd.f32 %v2259, %v2291
        %v2293 = vrot.slane %v2292, 2
        %v2294 = vadd.f32 %v2292, %v2293
        %v2295 = vrot.slane %v2294, 1
        %v2296 = vadd.f32 %v2294, %v2295
        %v2297 = vrot.slane %v2260, 4
        %v2298 = vadd.f32 %v2260, %v2297
        %v2299 = vrot.slane %v2298, 2
        %v2300 = vadd.f32 %v2298, %v2299
        %v2301 = vrot.slane %v2300, 1
        %v2302 = vadd.f32 %v2300, %v2301
        %v2303 = vrot.slane %v2261, 4
        %v2304 = vadd.f32 %v2261, %v2303
        %v2305 = vrot.slane %v2304, 2
        %v2306 = vadd.f32 %v2304, %v2305
        %v2307 = vrot.slane %v2306, 1
        %v2308 = vadd.f32 %v2306, %v2307
        %v2309 = vrot.slane %v2262, 4
        %v2310 = vadd.f32 %v2262, %v2309
        %v2311 = vrot.slane %v2310, 2
        %v2312 = vadd.f32 %v2310, %v2311
        %v2313 = vrot.slane %v2312, 1
        %v2314 = vadd.f32 %v2312, %v2313
        %v2315 = vrot.slane %v2263, 4
        %v2316 = vadd.f32 %v2263, %v2315
        %v2317 = vrot.slane %v2316, 2
        %v2318 = vadd.f32 %v2316, %v2317
        %v2319 = vrot.slane %v2318, 1
        %v2320 = vadd.f32 %v2318, %v2319
        %v2321 = vrot.slane %v2264, 4
        %v2322 = vadd.f32 %v2264, %v2321
        %v2323 = vrot.slane %v2322, 2
        %v2324 = vadd.f32 %v2322, %v2323
        %v2325 = vrot.slane %v2324, 1
        %v2326 = vadd.f32 %v2324, %v2325
        %v2327 = vrot.slane %v2265, 4
        %v2328 = vadd.f32 %v2265, %v2327
        %v2329 = vrot.slane %v2328, 2
        %v2330 = vadd.f32 %v2328, %v2329
        %v2331 = vrot.slane %v2330, 1
        %v2332 = vadd.f32 %v2330, %v2331
        %v2333 = vrot.slane %v2266, 4
        %v2334 = vadd.f32 %v2266, %v2333
        %v2335 = vrot.slane %v2334, 2
        %v2336 = vadd.f32 %v2334, %v2335
        %v2337 = vrot.slane %v2336, 1
        %v2338 = vadd.f32 %v2336, %v2337
        %v2339 = vrot.slane %v2267, 4
        %v2340 = vadd.f32 %v2267, %v2339
        %v2341 = vrot.slane %v2340, 2
        %v2342 = vadd.f32 %v2340, %v2341
        %v2343 = vrot.slane %v2342, 1
        %v2344 = vadd.f32 %v2342, %v2343
        %v2345 = vrot.slane %v2268, 4
        %v2346 = vadd.f32 %v2268, %v2345
        %v2347 = vrot.slane %v2346, 2
        %v2348 = vadd.f32 %v2346, %v2347
        %v2349 = vrot.slane %v2348, 1
        %v2350 = vadd.f32 %v2348, %v2349
        %v2351 = vrot.slane %v2269, 4
        %v2352 = vadd.f32 %v2269, %v2351
        %v2353 = vrot.slane %v2352, 2
        %v2354 = vadd.f32 %v2352, %v2353
        %v2355 = vrot.slane %v2354, 1
        %v2356 = vadd.f32 %v2354, %v2355
        %v2357 = vrot.slane %v2270, 4
        %v2358 = vadd.f32 %v2270, %v2357
        %v2359 = vrot.slane %v2358, 2
        %v2360 = vadd.f32 %v2358, %v2359
        %v2361 = vrot.slane %v2360, 1
        %v2362 = vadd.f32 %v2360, %v2361
        %v2363 = vrot.slane %v2271, 4
        %v2364 = vadd.f32 %v2271, %v2363
        %v2365 = vrot.slane %v2364, 2
        %v2366 = vadd.f32 %v2364, %v2365
        %v2367 = vrot.slane %v2366, 1
        %v2368 = vadd.f32 %v2366, %v2367
        %v2369 = vrot.slane %v2272, 4
        %v2370 = vadd.f32 %v2272, %v2369
        %v2371 = vrot.slane %v2370, 2
        %v2372 = vadd.f32 %v2370, %v2371
        %v2373 = vrot.slane %v2372, 1
        %v2374 = vadd.f32 %v2372, %v2373
        %v2375 = vrot.slane %v2273, 4
        %v2376 = vadd.f32 %v2273, %v2375
        %v2377 = vrot.slane %v2376, 2
        %v2378 = vadd.f32 %v2376, %v2377
        %v2379 = vrot.slane %v2378, 1
        %v2380 = vadd.f32 %v2378, %v2379
        %v2381 = vrot.slane %v2274, 4
        %v2382 = vadd.f32 %v2274, %v2381
        %v2383 = vrot.slane %v2382, 2
        %v2384 = vadd.f32 %v2382, %v2383
        %v2385 = vrot.slane %v2384, 1
        %v2386 = vadd.f32 %v2384, %v2385
        %v2387 = vrot.slane %v2275, 4
        %v2388 = vadd.f32 %v2275, %v2387
        %v2389 = vrot.slane %v2388, 2
        %v2390 = vadd.f32 %v2388, %v2389
        %v2391 = vrot.slane %v2390, 1
        %v2392 = vadd.f32 %v2390, %v2391
        %v2393 = vrot.slane %v2276, 4
        %v2394 = vadd.f32 %v2276, %v2393
        %v2395 = vrot.slane %v2394, 2
        %v2396 = vadd.f32 %v2394, %v2395
        %v2397 = vrot.slane %v2396, 1
        %v2398 = vadd.f32 %v2396, %v2397
        %v2399 = vrot.slane %v2277, 4
        %v2400 = vadd.f32 %v2277, %v2399
        %v2401 = vrot.slane %v2400, 2
        %v2402 = vadd.f32 %v2400, %v2401
        %v2403 = vrot.slane %v2402, 1
        %v2404 = vadd.f32 %v2402, %v2403
        %v2405 = vrot.slane %v2278, 4
        %v2406 = vadd.f32 %v2278, %v2405
        %v2407 = vrot.slane %v2406, 2
        %v2408 = vadd.f32 %v2406, %v2407
        %v2409 = vrot.slane %v2408, 1
        %v2410 = vadd.f32 %v2408, %v2409
        %v2411 = vrot.slane %v2279, 4
        %v2412 = vadd.f32 %v2279, %v2411
        %v2413 = vrot.slane %v2412, 2
        %v2414 = vadd.f32 %v2412, %v2413
        %v2415 = vrot.slane %v2414, 1
        %v2416 = vadd.f32 %v2414, %v2415
        %v2417 = vrot.slane %v2280, 4
        %v2418 = vadd.f32 %v2280, %v2417
        %v2419 = vrot.slane %v2418, 2
        %v2420 = vadd.f32 %v2418, %v2419
        %v2421 = vrot.slane %v2420, 1
        %v2422 = vadd.f32 %v2420, %v2421
        %v2423 = vrot.slane %v2281, 4
        %v2424 = vadd.f32 %v2281, %v2423
        %v2425 = vrot.slane %v2424, 2
        %v2426 = vadd.f32 %v2424, %v2425
        %v2427 = vrot.slane %v2426, 1
        %v2428 = vadd.f32 %v2426, %v2427
        %v2429 = vrot.slane %v2282, 4
        %v2430 = vadd.f32 %v2282, %v2429
        %v2431 = vrot.slane %v2430, 2
        %v2432 = vadd.f32 %v2430, %v2431
        %v2433 = vrot.slane %v2432, 1
        %v2434 = vadd.f32 %v2432, %v2433
        %v2435 = vrot.slane %v2283, 4
        %v2436 = vadd.f32 %v2283, %v2435
        %v2437 = vrot.slane %v2436, 2
        %v2438 = vadd.f32 %v2436, %v2437
        %v2439 = vrot.slane %v2438, 1
        %v2440 = vadd.f32 %v2438, %v2439
        %v2441 = vrot.slane %v2284, 4
        %v2442 = vadd.f32 %v2284, %v2441
        %v2443 = vrot.slane %v2442, 2
        %v2444 = vadd.f32 %v2442, %v2443
        %v2445 = vrot.slane %v2444, 1
        %v2446 = vadd.f32 %v2444, %v2445
        %v2447 = vrot.slane %v2285, 4
        %v2448 = vadd.f32 %v2285, %v2447
        %v2449 = vrot.slane %v2448, 2
        %v2450 = vadd.f32 %v2448, %v2449
        %v2451 = vrot.slane %v2450, 1
        %v2452 = vadd.f32 %v2450, %v2451
        %v2453 = vrot.slane %v2286, 4
        %v2454 = vadd.f32 %v2286, %v2453
        %v2455 = vrot.slane %v2454, 2
        %v2456 = vadd.f32 %v2454, %v2455
        %v2457 = vrot.slane %v2456, 1
        %v2458 = vadd.f32 %v2456, %v2457
        %v2459 = vrot.slane %v2287, 4
        %v2460 = vadd.f32 %v2287, %v2459
        %v2461 = vrot.slane %v2460, 2
        %v2462 = vadd.f32 %v2460, %v2461
        %v2463 = vrot.slane %v2462, 1
        %v2464 = vadd.f32 %v2462, %v2463
        %v2465 = vrot.slane %v2288, 4
        %v2466 = vadd.f32 %v2288, %v2465
        %v2467 = vrot.slane %v2466, 2
        %v2468 = vadd.f32 %v2466, %v2467
        %v2469 = vrot.slane %v2468, 1
        %v2470 = vadd.f32 %v2468, %v2469
        %v2471 = vrot.slane %v2289, 4
        %v2472 = vadd.f32 %v2289, %v2471
        %v2473 = vrot.slane %v2472, 2
        %v2474 = vadd.f32 %v2472, %v2473
        %v2475 = vrot.slane %v2474, 1
        %v2476 = vadd.f32 %v2474, %v2475
        %v2477 = vrot.slane %v2290, 4
        %v2478 = vadd.f32 %v2290, %v2477
        %v2479 = vrot.slane %v2478, 2
        %v2480 = vadd.f32 %v2478, %v2479
        %v2481 = vrot.slane %v2480, 1
        %v2482 = vadd.f32 %v2480, %v2481
        %v2483 = vld [vmem:[%s410] sm:$0xff]
        %v2484 = vld [vmem:[%s410 + $0x8] sm:$0xff]
        %v2485 = vld [vmem:[%s410 + $0x10] sm:$0xff]
        %v2486 = vld [vmem:[%s410 + $0x18] sm:$0xff]
        %v2487 = vld [vmem:[%s410 + $0x20] sm:$0xff]
        %v2488 = vld [vmem:[%s410 + $0x28] sm:$0xff]
        %v2489 = vld [vmem:[%s410 + $0x30] sm:$0xff]
        %v2490 = vld [vmem:[%s410 + $0x38] sm:$0xff]
        %v2491 = vld [vmem:[%s410 + $0x40] sm:$0xff]
        %v2492 = vld [vmem:[%s410 + $0x48] sm:$0xff]
        %v2493 = vld [vmem:[%s410 + $0x50] sm:$0xff]
        %v2494 = vld [vmem:[%s410 + $0x58] sm:$0xff]
        %v2495 = vld [vmem:[%s410 + $0x60] sm:$0xff]
        %v2496 = vld [vmem:[%s410 + $0x68] sm:$0xff]
        %v2497 = vld [vmem:[%s410 + $0x70] sm:$0xff]
        %v2498 = vld [vmem:[%s410 + $0x78] sm:$0xff]
        %v2499 = vld [vmem:[%s410 + $0x80] sm:$0xff]
        %v2500 = vld [vmem:[%s410 + $0x88] sm:$0xff]
        %v2501 = vld [vmem:[%s410 + $0x90] sm:$0xff]
        %v2502 = vld [vmem:[%s410 + $0x98] sm:$0xff]
        %v2503 = vld [vmem:[%s410 + $0xa0] sm:$0xff]
        %v2504 = vld [vmem:[%s410 + $0xa8] sm:$0xff]
        %v2505 = vld [vmem:[%s410 + $0xb0] sm:$0xff]
        %v2506 = vld [vmem:[%s410 + $0xb8] sm:$0xff]
        %v2507 = vld [vmem:[%s410 + $0xc0] sm:$0xff]
        %v2508 = vld [vmem:[%s410 + $0xc8] sm:$0xff]
        %v2509 = vld [vmem:[%s410 + $0xd0] sm:$0xff]
        %v2510 = vld [vmem:[%s410 + $0xd8] sm:$0xff]
        %v2511 = vld [vmem:[%s410 + $0xe0] sm:$0xff]
        %v2512 = vld [vmem:[%s410 + $0xe8] sm:$0xff]
        %v2513 = vld [vmem:[%s410 + $0xf0] sm:$0xff]
        %v2514 = vld [vmem:[%s410 + $0xf8] sm:$0xff]
        %vm2515 = vcmask 64512
        %v2517 = vsel %vm2515, %v2483, 0
        %2519 = vmatpush.msra.mxu0 0.0
        %2520 = vmatpush.msra.mxu0 0.0
        %2521 = vmatpush.msra.mxu0 0.0
        %2522 = vmatpush.msra.mxu0 0.0
        %2523 = vmatpush.msra.mxu0 0.0
        %2524 = vmatpush.msra.mxu0 0.0
        %2525 = vmatpush.msra.mxu0 0.0
        %2526 = vmatpush.msra.mxu0 0.0
        %2527 = vmatpush.msra.mxu0 0.0
        %2528 = vmatpush.msra.mxu0 0.0
        %2529 = vmatpush.msra.mxu0 0.0
        %2530 = vmatpush.msra.mxu0 0.0
        %2531 = vmatpush.msra.mxu0 0.0
        %2532 = vmatpush.msra.mxu0 0.0
        %2533 = vmatpush.msra.mxu0 0.0
        %2534 = vmatpush.msra.mxu0 %v2227
        %2535 = vmatmul.f32.gmra.mxu0 %v2517
        %v2536 = vpop.f32.mrf.mxu0
        %v2537 = vadd.f32 0.0, %v2536
        %2538 = vdwg.mxu0
        %v2540 = vsel %vm2515, %v2484, 0
        %2542 = vmatpush.msra.mxu0 0.0
        %2543 = vmatpush.msra.mxu0 0.0
        %2544 = vmatpush.msra.mxu0 0.0
        %2545 = vmatpush.msra.mxu0 0.0
        %2546 = vmatpush.msra.mxu0 0.0
        %2547 = vmatpush.msra.mxu0 0.0
        %2548 = vmatpush.msra.mxu0 0.0
        %2549 = vmatpush.msra.mxu0 0.0
        %2550 = vmatpush.msra.mxu0 0.0
        %2551 = vmatpush.msra.mxu0 0.0
        %2552 = vmatpush.msra.mxu0 0.0
        %2553 = vmatpush.msra.mxu0 0.0
        %2554 = vmatpush.msra.mxu0 0.0
        %2555 = vmatpush.msra.mxu0 0.0
        %2556 = vmatpush.msra.mxu0 0.0
        %2557 = vmatpush.msra.mxu0 %v2228
        %2558 = vmatmul.f32.gmra.mxu0 %v2540
        %v2559 = vpop.f32.mrf.mxu0
        %v2560 = vadd.f32 0.0, %v2559
        %2561 = vdwg.mxu0
        %v2563 = vsel %vm2515, %v2485, 0
        %2565 = vmatpush.msra.mxu0 0.0
        %2566 = vmatpush.msra.mxu0 0.0
        %2567 = vmatpush.msra.mxu0 0.0
        %2568 = vmatpush.msra.mxu0 0.0
        %2569 = vmatpush.msra.mxu0 0.0
        %2570 = vmatpush.msra.mxu0 0.0
        %2571 = vmatpush.msra.mxu0 0.0
        %2572 = vmatpush.msra.mxu0 0.0
        %2573 = vmatpush.msra.mxu0 0.0
        %2574 = vmatpush.msra.mxu0 0.0
        %2575 = vmatpush.msra.mxu0 0.0
        %2576 = vmatpush.msra.mxu0 0.0
        %2577 = vmatpush.msra.mxu0 0.0
        %2578 = vmatpush.msra.mxu0 0.0
        %2579 = vmatpush.msra.mxu0 0.0
        %2580 = vmatpush.msra.mxu0 %v2229
        %2581 = vmatmul.f32.gmra.mxu0 %v2563
        %v2582 = vpop.f32.mrf.mxu0
        %v2583 = vadd.f32 0.0, %v2582
        %2584 = vdwg.mxu0
        %v2586 = vsel %vm2515, %v2486, 0
        %2588 = vmatpush.msra.mxu0 0.0
        %2589 = vmatpush.msra.mxu0 0.0
        %2590 = vmatpush.msra.mxu0 0.0
        %2591 = vmatpush.msra.mxu0 0.0
        %2592 = vmatpush.msra.mxu0 0.0
        %2593 = vmatpush.msra.mxu0 0.0
        %2594 = vmatpush.msra.mxu0 0.0
        %2595 = vmatpush.msra.mxu0 0.0
        %2596 = vmatpush.msra.mxu0 0.0
        %2597 = vmatpush.msra.mxu0 0.0
        %2598 = vmatpush.msra.mxu0 0.0
        %2599 = vmatpush.msra.mxu0 0.0
        %2600 = vmatpush.msra.mxu0 0.0
        %2601 = vmatpush.msra.mxu0 0.0
        %2602 = vmatpush.msra.mxu0 0.0
        %2603 = vmatpush.msra.mxu0 %v2230
        %2604 = vmatmul.f32.gmra.mxu0 %v2586
        %v2605 = vpop.f32.mrf.mxu0
        %v2606 = vadd.f32 0.0, %v2605
        %2607 = vdwg.mxu0
        %v2609 = vsel %vm2515, %v2487, 0
        %2611 = vmatpush.msra.mxu0 0.0
        %2612 = vmatpush.msra.mxu0 0.0
        %2613 = vmatpush.msra.mxu0 0.0
        %2614 = vmatpush.msra.mxu0 0.0
        %2615 = vmatpush.msra.mxu0 0.0
        %2616 = vmatpush.msra.mxu0 0.0
        %2617 = vmatpush.msra.mxu0 0.0
        %2618 = vmatpush.msra.mxu0 0.0
        %2619 = vmatpush.msra.mxu0 0.0
        %2620 = vmatpush.msra.mxu0 0.0
        %2621 = vmatpush.msra.mxu0 0.0
        %2622 = vmatpush.msra.mxu0 0.0
        %2623 = vmatpush.msra.mxu0 0.0
        %2624 = vmatpush.msra.mxu0 0.0
        %2625 = vmatpush.msra.mxu0 0.0
        %2626 = vmatpush.msra.mxu0 %v2231
        %2627 = vmatmul.f32.gmra.mxu0 %v2609
        %v2628 = vpop.f32.mrf.mxu0
        %v2629 = vadd.f32 0.0, %v2628
        %2630 = vdwg.mxu0
        %v2632 = vsel %vm2515, %v2488, 0
        %2634 = vmatpush.msra.mxu0 0.0
        %2635 = vmatpush.msra.mxu0 0.0
        %2636 = vmatpush.msra.mxu0 0.0
        %2637 = vmatpush.msra.mxu0 0.0
        %2638 = vmatpush.msra.mxu0 0.0
        %2639 = vmatpush.msra.mxu0 0.0
        %2640 = vmatpush.msra.mxu0 0.0
        %2641 = vmatpush.msra.mxu0 0.0
        %2642 = vmatpush.msra.mxu0 0.0
        %2643 = vmatpush.msra.mxu0 0.0
        %2644 = vmatpush.msra.mxu0 0.0
        %2645 = vmatpush.msra.mxu0 0.0
        %2646 = vmatpush.msra.mxu0 0.0
        %2647 = vmatpush.msra.mxu0 0.0
        %2648 = vmatpush.msra.mxu0 0.0
        %2649 = vmatpush.msra.mxu0 %v2232
        %2650 = vmatmul.f32.gmra.mxu0 %v2632
        %v2651 = vpop.f32.mrf.mxu0
        %v2652 = vadd.f32 0.0, %v2651
        %2653 = vdwg.mxu0
        %v2655 = vsel %vm2515, %v2489, 0
        %2657 = vmatpush.msra.mxu0 0.0
        %2658 = vmatpush.msra.mxu0 0.0
        %2659 = vmatpush.msra.mxu0 0.0
        %2660 = vmatpush.msra.mxu0 0.0
        %2661 = vmatpush.msra.mxu0 0.0
        %2662 = vmatpush.msra.mxu0 0.0
        %2663 = vmatpush.msra.mxu0 0.0
        %2664 = vmatpush.msra.mxu0 0.0
        %2665 = vmatpush.msra.mxu0 0.0
        %2666 = vmatpush.msra.mxu0 0.0
        %2667 = vmatpush.msra.mxu0 0.0
        %2668 = vmatpush.msra.mxu0 0.0
        %2669 = vmatpush.msra.mxu0 0.0
        %2670 = vmatpush.msra.mxu0 0.0
        %2671 = vmatpush.msra.mxu0 0.0
        %2672 = vmatpush.msra.mxu0 %v2233
        %2673 = vmatmul.f32.gmra.mxu0 %v2655
        %v2674 = vpop.f32.mrf.mxu0
        %v2675 = vadd.f32 0.0, %v2674
        %2676 = vdwg.mxu0
        %v2678 = vsel %vm2515, %v2490, 0
        %2680 = vmatpush.msra.mxu0 0.0
        %2681 = vmatpush.msra.mxu0 0.0
        %2682 = vmatpush.msra.mxu0 0.0
        %2683 = vmatpush.msra.mxu0 0.0
        %2684 = vmatpush.msra.mxu0 0.0
        %2685 = vmatpush.msra.mxu0 0.0
        %2686 = vmatpush.msra.mxu0 0.0
        %2687 = vmatpush.msra.mxu0 0.0
        %2688 = vmatpush.msra.mxu0 0.0
        %2689 = vmatpush.msra.mxu0 0.0
        %2690 = vmatpush.msra.mxu0 0.0
        %2691 = vmatpush.msra.mxu0 0.0
        %2692 = vmatpush.msra.mxu0 0.0
        %2693 = vmatpush.msra.mxu0 0.0
        %2694 = vmatpush.msra.mxu0 0.0
        %2695 = vmatpush.msra.mxu0 %v2234
        %2696 = vmatmul.f32.gmra.mxu0 %v2678
        %v2697 = vpop.f32.mrf.mxu0
        %v2698 = vadd.f32 0.0, %v2697
        %2699 = vdwg.mxu0
        %v2701 = vsel %vm2515, %v2491, 0
        %2703 = vmatpush.msra.mxu0 0.0
        %2704 = vmatpush.msra.mxu0 0.0
        %2705 = vmatpush.msra.mxu0 0.0
        %2706 = vmatpush.msra.mxu0 0.0
        %2707 = vmatpush.msra.mxu0 0.0
        %2708 = vmatpush.msra.mxu0 0.0
        %2709 = vmatpush.msra.mxu0 0.0
        %2710 = vmatpush.msra.mxu0 0.0
        %2711 = vmatpush.msra.mxu0 0.0
        %2712 = vmatpush.msra.mxu0 0.0
        %2713 = vmatpush.msra.mxu0 0.0
        %2714 = vmatpush.msra.mxu0 0.0
        %2715 = vmatpush.msra.mxu0 0.0
        %2716 = vmatpush.msra.mxu0 0.0
        %2717 = vmatpush.msra.mxu0 0.0
        %2718 = vmatpush.msra.mxu0 %v2235
        %2719 = vmatmul.f32.gmra.mxu0 %v2701
        %v2720 = vpop.f32.mrf.mxu0
        %v2721 = vadd.f32 0.0, %v2720
        %2722 = vdwg.mxu0
        %v2724 = vsel %vm2515, %v2492, 0
        %2726 = vmatpush.msra.mxu0 0.0
        %2727 = vmatpush.msra.mxu0 0.0
        %2728 = vmatpush.msra.mxu0 0.0
        %2729 = vmatpush.msra.mxu0 0.0
        %2730 = vmatpush.msra.mxu0 0.0
        %2731 = vmatpush.msra.mxu0 0.0
        %2732 = vmatpush.msra.mxu0 0.0
        %2733 = vmatpush.msra.mxu0 0.0
        %2734 = vmatpush.msra.mxu0 0.0
        %2735 = vmatpush.msra.mxu0 0.0
        %2736 = vmatpush.msra.mxu0 0.0
        %2737 = vmatpush.msra.mxu0 0.0
        %2738 = vmatpush.msra.mxu0 0.0
        %2739 = vmatpush.msra.mxu0 0.0
        %2740 = vmatpush.msra.mxu0 0.0
        %2741 = vmatpush.msra.mxu0 %v2236
        %2742 = vmatmul.f32.gmra.mxu0 %v2724
        %v2743 = vpop.f32.mrf.mxu0
        %v2744 = vadd.f32 0.0, %v2743
        %2745 = vdwg.mxu0
        %v2747 = vsel %vm2515, %v2493, 0
        %2749 = vmatpush.msra.mxu0 0.0
        %2750 = vmatpush.msra.mxu0 0.0
        %2751 = vmatpush.msra.mxu0 0.0
        %2752 = vmatpush.msra.mxu0 0.0
        %2753 = vmatpush.msra.mxu0 0.0
        %2754 = vmatpush.msra.mxu0 0.0
        %2755 = vmatpush.msra.mxu0 0.0
        %2756 = vmatpush.msra.mxu0 0.0
        %2757 = vmatpush.msra.mxu0 0.0
        %2758 = vmatpush.msra.mxu0 0.0
        %2759 = vmatpush.msra.mxu0 0.0
        %2760 = vmatpush.msra.mxu0 0.0
        %2761 = vmatpush.msra.mxu0 0.0
        %2762 = vmatpush.msra.mxu0 0.0
        %2763 = vmatpush.msra.mxu0 0.0
        %2764 = vmatpush.msra.mxu0 %v2237
        %2765 = vmatmul.f32.gmra.mxu0 %v2747
        %v2766 = vpop.f32.mrf.mxu0
        %v2767 = vadd.f32 0.0, %v2766
        %2768 = vdwg.mxu0
        %v2770 = vsel %vm2515, %v2494, 0
        %2772 = vmatpush.msra.mxu0 0.0
        %2773 = vmatpush.msra.mxu0 0.0
        %2774 = vmatpush.msra.mxu0 0.0
        %2775 = vmatpush.msra.mxu0 0.0
        %2776 = vmatpush.msra.mxu0 0.0
        %2777 = vmatpush.msra.mxu0 0.0
        %2778 = vmatpush.msra.mxu0 0.0
        %2779 = vmatpush.msra.mxu0 0.0
        %2780 = vmatpush.msra.mxu0 0.0
        %2781 = vmatpush.msra.mxu0 0.0
        %2782 = vmatpush.msra.mxu0 0.0
        %2783 = vmatpush.msra.mxu0 0.0
        %2784 = vmatpush.msra.mxu0 0.0
        %2785 = vmatpush.msra.mxu0 0.0
        %2786 = vmatpush.msra.mxu0 0.0
        %2787 = vmatpush.msra.mxu0 %v2238
        %2788 = vmatmul.f32.gmra.mxu0 %v2770
        %v2789 = vpop.f32.mrf.mxu0
        %v2790 = vadd.f32 0.0, %v2789
        %2791 = vdwg.mxu0
        %v2793 = vsel %vm2515, %v2495, 0
        %2795 = vmatpush.msra.mxu0 0.0
        %2796 = vmatpush.msra.mxu0 0.0
        %2797 = vmatpush.msra.mxu0 0.0
        %2798 = vmatpush.msra.mxu0 0.0
        %2799 = vmatpush.msra.mxu0 0.0
        %2800 = vmatpush.msra.mxu0 0.0
        %2801 = vmatpush.msra.mxu0 0.0
        %2802 = vmatpush.msra.mxu0 0.0
        %2803 = vmatpush.msra.mxu0 0.0
        %2804 = vmatpush.msra.mxu0 0.0
        %2805 = vmatpush.msra.mxu0 0.0
        %2806 = vmatpush.msra.mxu0 0.0
        %2807 = vmatpush.msra.mxu0 0.0
        %2808 = vmatpush.msra.mxu0 0.0
        %2809 = vmatpush.msra.mxu0 0.0
        %2810 = vmatpush.msra.mxu0 %v2239
        %2811 = vmatmul.f32.gmra.mxu0 %v2793
        %v2812 = vpop.f32.mrf.mxu0
        %v2813 = vadd.f32 0.0, %v2812
        %2814 = vdwg.mxu0
        %v2816 = vsel %vm2515, %v2496, 0
        %2818 = vmatpush.msra.mxu0 0.0
        %2819 = vmatpush.msra.mxu0 0.0
        %2820 = vmatpush.msra.mxu0 0.0
        %2821 = vmatpush.msra.mxu0 0.0
        %2822 = vmatpush.msra.mxu0 0.0
        %2823 = vmatpush.msra.mxu0 0.0
        %2824 = vmatpush.msra.mxu0 0.0
        %2825 = vmatpush.msra.mxu0 0.0
        %2826 = vmatpush.msra.mxu0 0.0
        %2827 = vmatpush.msra.mxu0 0.0
        %2828 = vmatpush.msra.mxu0 0.0
        %2829 = vmatpush.msra.mxu0 0.0
        %2830 = vmatpush.msra.mxu0 0.0
        %2831 = vmatpush.msra.mxu0 0.0
        %2832 = vmatpush.msra.mxu0 0.0
        %2833 = vmatpush.msra.mxu0 %v2240
        %2834 = vmatmul.f32.gmra.mxu0 %v2816
        %v2835 = vpop.f32.mrf.mxu0
        %v2836 = vadd.f32 0.0, %v2835
        %2837 = vdwg.mxu0
        %v2839 = vsel %vm2515, %v2497, 0
        %2841 = vmatpush.msra.mxu0 0.0
        %2842 = vmatpush.msra.mxu0 0.0
        %2843 = vmatpush.msra.mxu0 0.0
        %2844 = vmatpush.msra.mxu0 0.0
        %2845 = vmatpush.msra.mxu0 0.0
        %2846 = vmatpush.msra.mxu0 0.0
        %2847 = vmatpush.msra.mxu0 0.0
        %2848 = vmatpush.msra.mxu0 0.0
        %2849 = vmatpush.msra.mxu0 0.0
        %2850 = vmatpush.msra.mxu0 0.0
        %2851 = vmatpush.msra.mxu0 0.0
        %2852 = vmatpush.msra.mxu0 0.0
        %2853 = vmatpush.msra.mxu0 0.0
        %2854 = vmatpush.msra.mxu0 0.0
        %2855 = vmatpush.msra.mxu0 0.0
        %2856 = vmatpush.msra.mxu0 %v2241
        %2857 = vmatmul.f32.gmra.mxu0 %v2839
        %v2858 = vpop.f32.mrf.mxu0
        %v2859 = vadd.f32 0.0, %v2858
        %2860 = vdwg.mxu0
        %v2862 = vsel %vm2515, %v2498, 0
        %2864 = vmatpush.msra.mxu0 0.0
        %2865 = vmatpush.msra.mxu0 0.0
        %2866 = vmatpush.msra.mxu0 0.0
        %2867 = vmatpush.msra.mxu0 0.0
        %2868 = vmatpush.msra.mxu0 0.0
        %2869 = vmatpush.msra.mxu0 0.0
        %2870 = vmatpush.msra.mxu0 0.0
        %2871 = vmatpush.msra.mxu0 0.0
        %2872 = vmatpush.msra.mxu0 0.0
        %2873 = vmatpush.msra.mxu0 0.0
        %2874 = vmatpush.msra.mxu0 0.0
        %2875 = vmatpush.msra.mxu0 0.0
        %2876 = vmatpush.msra.mxu0 0.0
        %2877 = vmatpush.msra.mxu0 0.0
        %2878 = vmatpush.msra.mxu0 0.0
        %2879 = vmatpush.msra.mxu0 %v2242
        %2880 = vmatmul.f32.gmra.mxu0 %v2862
        %v2881 = vpop.f32.mrf.mxu0
        %v2882 = vadd.f32 0.0, %v2881
        %2883 = vdwg.mxu0
        %v2885 = vsel %vm2515, %v2499, 0
        %2887 = vmatpush.msra.mxu0 0.0
        %2888 = vmatpush.msra.mxu0 0.0
        %2889 = vmatpush.msra.mxu0 0.0
        %2890 = vmatpush.msra.mxu0 0.0
        %2891 = vmatpush.msra.mxu0 0.0
        %2892 = vmatpush.msra.mxu0 0.0
        %2893 = vmatpush.msra.mxu0 0.0
        %2894 = vmatpush.msra.mxu0 0.0
        %2895 = vmatpush.msra.mxu0 0.0
        %2896 = vmatpush.msra.mxu0 0.0
        %2897 = vmatpush.msra.mxu0 0.0
        %2898 = vmatpush.msra.mxu0 0.0
        %2899 = vmatpush.msra.mxu0 0.0
        %2900 = vmatpush.msra.mxu0 0.0
        %2901 = vmatpush.msra.mxu0 0.0
        %2902 = vmatpush.msra.mxu0 %v2243
        %2903 = vmatmul.f32.gmra.mxu0 %v2885
        %v2904 = vpop.f32.mrf.mxu0
        %v2905 = vadd.f32 0.0, %v2904
        %2906 = vdwg.mxu0
        %v2908 = vsel %vm2515, %v2500, 0
        %2910 = vmatpush.msra.mxu0 0.0
        %2911 = vmatpush.msra.mxu0 0.0
        %2912 = vmatpush.msra.mxu0 0.0
        %2913 = vmatpush.msra.mxu0 0.0
        %2914 = vmatpush.msra.mxu0 0.0
        %2915 = vmatpush.msra.mxu0 0.0
        %2916 = vmatpush.msra.mxu0 0.0
        %2917 = vmatpush.msra.mxu0 0.0
        %2918 = vmatpush.msra.mxu0 0.0
        %2919 = vmatpush.msra.mxu0 0.0
        %2920 = vmatpush.msra.mxu0 0.0
        %2921 = vmatpush.msra.mxu0 0.0
        %2922 = vmatpush.msra.mxu0 0.0
        %2923 = vmatpush.msra.mxu0 0.0
        %2924 = vmatpush.msra.mxu0 0.0
        %2925 = vmatpush.msra.mxu0 %v2244
        %2926 = vmatmul.f32.gmra.mxu0 %v2908
        %v2927 = vpop.f32.mrf.mxu0
        %v2928 = vadd.f32 0.0, %v2927
        %2929 = vdwg.mxu0
        %v2931 = vsel %vm2515, %v2501, 0
        %2933 = vmatpush.msra.mxu0 0.0
        %2934 = vmatpush.msra.mxu0 0.0
        %2935 = vmatpush.msra.mxu0 0.0
        %2936 = vmatpush.msra.mxu0 0.0
        %2937 = vmatpush.msra.mxu0 0.0
        %2938 = vmatpush.msra.mxu0 0.0
        %2939 = vmatpush.msra.mxu0 0.0
        %2940 = vmatpush.msra.mxu0 0.0
        %2941 = vmatpush.msra.mxu0 0.0
        %2942 = vmatpush.msra.mxu0 0.0
        %2943 = vmatpush.msra.mxu0 0.0
        %2944 = vmatpush.msra.mxu0 0.0
        %2945 = vmatpush.msra.mxu0 0.0
        %2946 = vmatpush.msra.mxu0 0.0
        %2947 = vmatpush.msra.mxu0 0.0
        %2948 = vmatpush.msra.mxu0 %v2245
        %2949 = vmatmul.f32.gmra.mxu0 %v2931
        %v2950 = vpop.f32.mrf.mxu0
        %v2951 = vadd.f32 0.0, %v2950
        %2952 = vdwg.mxu0
        %v2954 = vsel %vm2515, %v2502, 0
        %2956 = vmatpush.msra.mxu0 0.0
        %2957 = vmatpush.msra.mxu0 0.0
        %2958 = vmatpush.msra.mxu0 0.0
        %2959 = vmatpush.msra.mxu0 0.0
        %2960 = vmatpush.msra.mxu0 0.0
        %2961 = vmatpush.msra.mxu0 0.0
        %2962 = vmatpush.msra.mxu0 0.0
        %2963 = vmatpush.msra.mxu0 0.0
        %2964 = vmatpush.msra.mxu0 0.0
        %2965 = vmatpush.msra.mxu0 0.0
        %2966 = vmatpush.msra.mxu0 0.0
        %2967 = vmatpush.msra.mxu0 0.0
        %2968 = vmatpush.msra.mxu0 0.0
        %2969 = vmatpush.msra.mxu0 0.0
        %2970 = vmatpush.msra.mxu0 0.0
        %2971 = vmatpush.msra.mxu0 %v2246
        %2972 = vmatmul.f32.gmra.mxu0 %v2954
        %v2973 = vpop.f32.mrf.mxu0
        %v2974 = vadd.f32 0.0, %v2973
        %2975 = vdwg.mxu0
        %v2977 = vsel %vm2515, %v2503, 0
        %2979 = vmatpush.msra.mxu0 0.0
        %2980 = vmatpush.msra.mxu0 0.0
        %2981 = vmatpush.msra.mxu0 0.0
        %2982 = vmatpush.msra.mxu0 0.0
        %2983 = vmatpush.msra.mxu0 0.0
        %2984 = vmatpush.msra.mxu0 0.0
        %2985 = vmatpush.msra.mxu0 0.0
        %2986 = vmatpush.msra.mxu0 0.0
        %2987 = vmatpush.msra.mxu0 0.0
        %2988 = vmatpush.msra.mxu0 0.0
        %2989 = vmatpush.msra.mxu0 0.0
        %2990 = vmatpush.msra.mxu0 0.0
        %2991 = vmatpush.msra.mxu0 0.0
        %2992 = vmatpush.msra.mxu0 0.0
        %2993 = vmatpush.msra.mxu0 0.0
        %2994 = vmatpush.msra.mxu0 %v2247
        %2995 = vmatmul.f32.gmra.mxu0 %v2977
        %v2996 = vpop.f32.mrf.mxu0
        %v2997 = vadd.f32 0.0, %v2996
        %2998 = vdwg.mxu0
        %v3000 = vsel %vm2515, %v2504, 0
        %3002 = vmatpush.msra.mxu0 0.0
        %3003 = vmatpush.msra.mxu0 0.0
        %3004 = vmatpush.msra.mxu0 0.0
        %3005 = vmatpush.msra.mxu0 0.0
        %3006 = vmatpush.msra.mxu0 0.0
        %3007 = vmatpush.msra.mxu0 0.0
        %3008 = vmatpush.msra.mxu0 0.0
        %3009 = vmatpush.msra.mxu0 0.0
        %3010 = vmatpush.msra.mxu0 0.0
        %3011 = vmatpush.msra.mxu0 0.0
        %3012 = vmatpush.msra.mxu0 0.0
        %3013 = vmatpush.msra.mxu0 0.0
        %3014 = vmatpush.msra.mxu0 0.0
        %3015 = vmatpush.msra.mxu0 0.0
        %3016 = vmatpush.msra.mxu0 0.0
        %3017 = vmatpush.msra.mxu0 %v2248
        %3018 = vmatmul.f32.gmra.mxu0 %v3000
        %v3019 = vpop.f32.mrf.mxu0
        %v3020 = vadd.f32 0.0, %v3019
        %3021 = vdwg.mxu0
        %v3023 = vsel %vm2515, %v2505, 0
        %3025 = vmatpush.msra.mxu0 0.0
        %3026 = vmatpush.msra.mxu0 0.0
        %3027 = vmatpush.msra.mxu0 0.0
        %3028 = vmatpush.msra.mxu0 0.0
        %3029 = vmatpush.msra.mxu0 0.0
        %3030 = vmatpush.msra.mxu0 0.0
        %3031 = vmatpush.msra.mxu0 0.0
        %3032 = vmatpush.msra.mxu0 0.0
        %3033 = vmatpush.msra.mxu0 0.0
        %3034 = vmatpush.msra.mxu0 0.0
        %3035 = vmatpush.msra.mxu0 0.0
        %3036 = vmatpush.msra.mxu0 0.0
        %3037 = vmatpush.msra.mxu0 0.0
        %3038 = vmatpush.msra.mxu0 0.0
        %3039 = vmatpush.msra.mxu0 0.0
        %3040 = vmatpush.msra.mxu0 %v2249
        %3041 = vmatmul.f32.gmra.mxu0 %v3023
        %v3042 = vpop.f32.mrf.mxu0
        %v3043 = vadd.f32 0.0, %v3042
        %3044 = vdwg.mxu0
        %v3046 = vsel %vm2515, %v2506, 0
        %3048 = vmatpush.msra.mxu0 0.0
        %3049 = vmatpush.msra.mxu0 0.0
        %3050 = vmatpush.msra.mxu0 0.0
        %3051 = vmatpush.msra.mxu0 0.0
        %3052 = vmatpush.msra.mxu0 0.0
        %3053 = vmatpush.msra.mxu0 0.0
        %3054 = vmatpush.msra.mxu0 0.0
        %3055 = vmatpush.msra.mxu0 0.0
        %3056 = vmatpush.msra.mxu0 0.0
        %3057 = vmatpush.msra.mxu0 0.0
        %3058 = vmatpush.msra.mxu0 0.0
        %3059 = vmatpush.msra.mxu0 0.0
        %3060 = vmatpush.msra.mxu0 0.0
        %3061 = vmatpush.msra.mxu0 0.0
        %3062 = vmatpush.msra.mxu0 0.0
        %3063 = vmatpush.msra.mxu0 %v2250
        %3064 = vmatmul.f32.gmra.mxu0 %v3046
        %v3065 = vpop.f32.mrf.mxu0
        %v3066 = vadd.f32 0.0, %v3065
        %3067 = vdwg.mxu0
        %v3069 = vsel %vm2515, %v2507, 0
        %3071 = vmatpush.msra.mxu0 0.0
        %3072 = vmatpush.msra.mxu0 0.0
        %3073 = vmatpush.msra.mxu0 0.0
        %3074 = vmatpush.msra.mxu0 0.0
        %3075 = vmatpush.msra.mxu0 0.0
        %3076 = vmatpush.msra.mxu0 0.0
        %3077 = vmatpush.msra.mxu0 0.0
        %3078 = vmatpush.msra.mxu0 0.0
        %3079 = vmatpush.msra.mxu0 0.0
        %3080 = vmatpush.msra.mxu0 0.0
        %3081 = vmatpush.msra.mxu0 0.0
        %3082 = vmatpush.msra.mxu0 0.0
        %3083 = vmatpush.msra.mxu0 0.0
        %3084 = vmatpush.msra.mxu0 0.0
        %3085 = vmatpush.msra.mxu0 0.0
        %3086 = vmatpush.msra.mxu0 %v2251
        %3087 = vmatmul.f32.gmra.mxu0 %v3069
        %v3088 = vpop.f32.mrf.mxu0
        %v3089 = vadd.f32 0.0, %v3088
        %3090 = vdwg.mxu0
        %v3092 = vsel %vm2515, %v2508, 0
        %3094 = vmatpush.msra.mxu0 0.0
        %3095 = vmatpush.msra.mxu0 0.0
        %3096 = vmatpush.msra.mxu0 0.0
        %3097 = vmatpush.msra.mxu0 0.0
        %3098 = vmatpush.msra.mxu0 0.0
        %3099 = vmatpush.msra.mxu0 0.0
        %3100 = vmatpush.msra.mxu0 0.0
        %3101 = vmatpush.msra.mxu0 0.0
        %3102 = vmatpush.msra.mxu0 0.0
        %3103 = vmatpush.msra.mxu0 0.0
        %3104 = vmatpush.msra.mxu0 0.0
        %3105 = vmatpush.msra.mxu0 0.0
        %3106 = vmatpush.msra.mxu0 0.0
        %3107 = vmatpush.msra.mxu0 0.0
        %3108 = vmatpush.msra.mxu0 0.0
        %3109 = vmatpush.msra.mxu0 %v2252
        %3110 = vmatmul.f32.gmra.mxu0 %v3092
        %v3111 = vpop.f32.mrf.mxu0
        %v3112 = vadd.f32 0.0, %v3111
        %3113 = vdwg.mxu0
        %v3115 = vsel %vm2515, %v2509, 0
        %3117 = vmatpush.msra.mxu0 0.0
        %3118 = vmatpush.msra.mxu0 0.0
        %3119 = vmatpush.msra.mxu0 0.0
        %3120 = vmatpush.msra.mxu0 0.0
        %3121 = vmatpush.msra.mxu0 0.0
        %3122 = vmatpush.msra.mxu0 0.0
        %3123 = vmatpush.msra.mxu0 0.0
        %3124 = vmatpush.msra.mxu0 0.0
        %3125 = vmatpush.msra.mxu0 0.0
        %3126 = vmatpush.msra.mxu0 0.0
        %3127 = vmatpush.msra.mxu0 0.0
        %3128 = vmatpush.msra.mxu0 0.0
        %3129 = vmatpush.msra.mxu0 0.0
        %3130 = vmatpush.msra.mxu0 0.0
        %3131 = vmatpush.msra.mxu0 0.0
        %3132 = vmatpush.msra.mxu0 %v2253
        %3133 = vmatmul.f32.gmra.mxu0 %v3115
        %v3134 = vpop.f32.mrf.mxu0
        %v3135 = vadd.f32 0.0, %v3134
        %3136 = vdwg.mxu0
        %v3138 = vsel %vm2515, %v2510, 0
        %3140 = vmatpush.msra.mxu0 0.0
        %3141 = vmatpush.msra.mxu0 0.0
        %3142 = vmatpush.msra.mxu0 0.0
        %3143 = vmatpush.msra.mxu0 0.0
        %3144 = vmatpush.msra.mxu0 0.0
        %3145 = vmatpush.msra.mxu0 0.0
        %3146 = vmatpush.msra.mxu0 0.0
        %3147 = vmatpush.msra.mxu0 0.0
        %3148 = vmatpush.msra.mxu0 0.0
        %3149 = vmatpush.msra.mxu0 0.0
        %3150 = vmatpush.msra.mxu0 0.0
        %3151 = vmatpush.msra.mxu0 0.0
        %3152 = vmatpush.msra.mxu0 0.0
        %3153 = vmatpush.msra.mxu0 0.0
        %3154 = vmatpush.msra.mxu0 0.0
        %3155 = vmatpush.msra.mxu0 %v2254
        %3156 = vmatmul.f32.gmra.mxu0 %v3138
        %v3157 = vpop.f32.mrf.mxu0
        %v3158 = vadd.f32 0.0, %v3157
        %3159 = vdwg.mxu0
        %v3161 = vsel %vm2515, %v2511, 0
        %3163 = vmatpush.msra.mxu0 0.0
        %3164 = vmatpush.msra.mxu0 0.0
        %3165 = vmatpush.msra.mxu0 0.0
        %3166 = vmatpush.msra.mxu0 0.0
        %3167 = vmatpush.msra.mxu0 0.0
        %3168 = vmatpush.msra.mxu0 0.0
        %3169 = vmatpush.msra.mxu0 0.0
        %3170 = vmatpush.msra.mxu0 0.0
        %3171 = vmatpush.msra.mxu0 0.0
        %3172 = vmatpush.msra.mxu0 0.0
        %3173 = vmatpush.msra.mxu0 0.0
        %3174 = vmatpush.msra.mxu0 0.0
        %3175 = vmatpush.msra.mxu0 0.0
        %3176 = vmatpush.msra.mxu0 0.0
        %3177 = vmatpush.msra.mxu0 0.0
        %3178 = vmatpush.msra.mxu0 %v2255
        %3179 = vmatmul.f32.gmra.mxu0 %v3161
        %v3180 = vpop.f32.mrf.mxu0
        %v3181 = vadd.f32 0.0, %v3180
        %3182 = vdwg.mxu0
        %v3184 = vsel %vm2515, %v2512, 0
        %3186 = vmatpush.msra.mxu0 0.0
        %3187 = vmatpush.msra.mxu0 0.0
        %3188 = vmatpush.msra.mxu0 0.0
        %3189 = vmatpush.msra.mxu0 0.0
        %3190 = vmatpush.msra.mxu0 0.0
        %3191 = vmatpush.msra.mxu0 0.0
        %3192 = vmatpush.msra.mxu0 0.0
        %3193 = vmatpush.msra.mxu0 0.0
        %3194 = vmatpush.msra.mxu0 0.0
        %3195 = vmatpush.msra.mxu0 0.0
        %3196 = vmatpush.msra.mxu0 0.0
        %3197 = vmatpush.msra.mxu0 0.0
        %3198 = vmatpush.msra.mxu0 0.0
        %3199 = vmatpush.msra.mxu0 0.0
        %3200 = vmatpush.msra.mxu0 0.0
        %3201 = vmatpush.msra.mxu0 %v2256
        %3202 = vmatmul.f32.gmra.mxu0 %v3184
        %v3203 = vpop.f32.mrf.mxu0
        %v3204 = vadd.f32 0.0, %v3203
        %3205 = vdwg.mxu0
        %v3207 = vsel %vm2515, %v2513, 0
        %3209 = vmatpush.msra.mxu0 0.0
        %3210 = vmatpush.msra.mxu0 0.0
        %3211 = vmatpush.msra.mxu0 0.0
        %3212 = vmatpush.msra.mxu0 0.0
        %3213 = vmatpush.msra.mxu0 0.0
        %3214 = vmatpush.msra.mxu0 0.0
        %3215 = vmatpush.msra.mxu0 0.0
        %3216 = vmatpush.msra.mxu0 0.0
        %3217 = vmatpush.msra.mxu0 0.0
        %3218 = vmatpush.msra.mxu0 0.0
        %3219 = vmatpush.msra.mxu0 0.0
        %3220 = vmatpush.msra.mxu0 0.0
        %3221 = vmatpush.msra.mxu0 0.0
        %3222 = vmatpush.msra.mxu0 0.0
        %3223 = vmatpush.msra.mxu0 0.0
        %3224 = vmatpush.msra.mxu0 %v2257
        %3225 = vmatmul.f32.gmra.mxu0 %v3207
        %v3226 = vpop.f32.mrf.mxu0
        %v3227 = vadd.f32 0.0, %v3226
        %3228 = vdwg.mxu0
        %v3230 = vsel %vm2515, %v2514, 0
        %3232 = vmatpush.msra.mxu0 0.0
        %3233 = vmatpush.msra.mxu0 0.0
        %3234 = vmatpush.msra.mxu0 0.0
        %3235 = vmatpush.msra.mxu0 0.0
        %3236 = vmatpush.msra.mxu0 0.0
        %3237 = vmatpush.msra.mxu0 0.0
        %3238 = vmatpush.msra.mxu0 0.0
        %3239 = vmatpush.msra.mxu0 0.0
        %3240 = vmatpush.msra.mxu0 0.0
        %3241 = vmatpush.msra.mxu0 0.0
        %3242 = vmatpush.msra.mxu0 0.0
        %3243 = vmatpush.msra.mxu0 0.0
        %3244 = vmatpush.msra.mxu0 0.0
        %3245 = vmatpush.msra.mxu0 0.0
        %3246 = vmatpush.msra.mxu0 0.0
        %3247 = vmatpush.msra.mxu0 %v2258
        %3248 = vmatmul.f32.gmra.mxu0 %v3230
        %v3249 = vpop.f32.mrf.mxu0
        %v3250 = vadd.f32 0.0, %v3249
        %3251 = vdwg.mxu0
        %v3252 = vmul.f32 %v2227, %v2537
        %v3253 = vmul.f32 %v2228, %v2560
        %v3254 = vmul.f32 %v2229, %v2583
        %v3255 = vmul.f32 %v2230, %v2606
        %v3256 = vmul.f32 %v2231, %v2629
        %v3257 = vmul.f32 %v2232, %v2652
        %v3258 = vmul.f32 %v2233, %v2675
        %v3259 = vmul.f32 %v2234, %v2698
        %v3260 = vmul.f32 %v2235, %v2721
        %v3261 = vmul.f32 %v2236, %v2744
        %v3262 = vmul.f32 %v2237, %v2767
        %v3263 = vmul.f32 %v2238, %v2790
        %v3264 = vmul.f32 %v2239, %v2813
        %v3265 = vmul.f32 %v2240, %v2836
        %v3266 = vmul.f32 %v2241, %v2859
        %v3267 = vmul.f32 %v2242, %v2882
        %v3268 = vmul.f32 %v2243, %v2905
        %v3269 = vmul.f32 %v2244, %v2928
        %v3270 = vmul.f32 %v2245, %v2951
        %v3271 = vmul.f32 %v2246, %v2974
        %v3272 = vmul.f32 %v2247, %v2997
        %v3273 = vmul.f32 %v2248, %v3020
        %v3274 = vmul.f32 %v2249, %v3043
        %v3275 = vmul.f32 %v2250, %v3066
        %v3276 = vmul.f32 %v2251, %v3089
        %v3277 = vmul.f32 %v2252, %v3112
        %v3278 = vmul.f32 %v2253, %v3135
        %v3279 = vmul.f32 %v2254, %v3158
        %v3280 = vmul.f32 %v2255, %v3181
        %v3281 = vmul.f32 %v2256, %v3204
        %v3282 = vmul.f32 %v2257, %v3227
        %v3283 = vmul.f32 %v2258, %v3250
        %v3284 = vrot.slane %v3252, 4
        %v3285 = vadd.f32 %v3252, %v3284
        %v3286 = vrot.slane %v3285, 2
        %v3287 = vadd.f32 %v3285, %v3286
        %v3288 = vrot.slane %v3287, 1
        %v3289 = vadd.f32 %v3287, %v3288
        %v3290 = vrot.slane %v3253, 4
        %v3291 = vadd.f32 %v3253, %v3290
        %v3292 = vrot.slane %v3291, 2
        %v3293 = vadd.f32 %v3291, %v3292
        %v3294 = vrot.slane %v3293, 1
        %v3295 = vadd.f32 %v3293, %v3294
        %v3296 = vrot.slane %v3254, 4
        %v3297 = vadd.f32 %v3254, %v3296
        %v3298 = vrot.slane %v3297, 2
        %v3299 = vadd.f32 %v3297, %v3298
        %v3300 = vrot.slane %v3299, 1
        %v3301 = vadd.f32 %v3299, %v3300
        %v3302 = vrot.slane %v3255, 4
        %v3303 = vadd.f32 %v3255, %v3302
        %v3304 = vrot.slane %v3303, 2
        %v3305 = vadd.f32 %v3303, %v3304
        %v3306 = vrot.slane %v3305, 1
        %v3307 = vadd.f32 %v3305, %v3306
        %v3308 = vrot.slane %v3256, 4
        %v3309 = vadd.f32 %v3256, %v3308
        %v3310 = vrot.slane %v3309, 2
        %v3311 = vadd.f32 %v3309, %v3310
        %v3312 = vrot.slane %v3311, 1
        %v3313 = vadd.f32 %v3311, %v3312
        %v3314 = vrot.slane %v3257, 4
        %v3315 = vadd.f32 %v3257, %v3314
        %v3316 = vrot.slane %v3315, 2
        %v3317 = vadd.f32 %v3315, %v3316
        %v3318 = vrot.slane %v3317, 1
        %v3319 = vadd.f32 %v3317, %v3318
        %v3320 = vrot.slane %v3258, 4
        %v3321 = vadd.f32 %v3258, %v3320
        %v3322 = vrot.slane %v3321, 2
        %v3323 = vadd.f32 %v3321, %v3322
        %v3324 = vrot.slane %v3323, 1
        %v3325 = vadd.f32 %v3323, %v3324
        %v3326 = vrot.slane %v3259, 4
        %v3327 = vadd.f32 %v3259, %v3326
        %v3328 = vrot.slane %v3327, 2
        %v3329 = vadd.f32 %v3327, %v3328
        %v3330 = vrot.slane %v3329, 1
        %v3331 = vadd.f32 %v3329, %v3330
        %v3332 = vrot.slane %v3260, 4
        %v3333 = vadd.f32 %v3260, %v3332
        %v3334 = vrot.slane %v3333, 2
        %v3335 = vadd.f32 %v3333, %v3334
        %v3336 = vrot.slane %v3335, 1
        %v3337 = vadd.f32 %v3335, %v3336
        %v3338 = vrot.slane %v3261, 4
        %v3339 = vadd.f32 %v3261, %v3338
        %v3340 = vrot.slane %v3339, 2
        %v3341 = vadd.f32 %v3339, %v3340
        %v3342 = vrot.slane %v3341, 1
        %v3343 = vadd.f32 %v3341, %v3342
        %v3344 = vrot.slane %v3262, 4
        %v3345 = vadd.f32 %v3262, %v3344
        %v3346 = vrot.slane %v3345, 2
        %v3347 = vadd.f32 %v3345, %v3346
        %v3348 = vrot.slane %v3347, 1
        %v3349 = vadd.f32 %v3347, %v3348
        %v3350 = vrot.slane %v3263, 4
        %v3351 = vadd.f32 %v3263, %v3350
        %v3352 = vrot.slane %v3351, 2
        %v3353 = vadd.f32 %v3351, %v3352
        %v3354 = vrot.slane %v3353, 1
        %v3355 = vadd.f32 %v3353, %v3354
        %v3356 = vrot.slane %v3264, 4
        %v3357 = vadd.f32 %v3264, %v3356
        %v3358 = vrot.slane %v3357, 2
        %v3359 = vadd.f32 %v3357, %v3358
        %v3360 = vrot.slane %v3359, 1
        %v3361 = vadd.f32 %v3359, %v3360
        %v3362 = vrot.slane %v3265, 4
        %v3363 = vadd.f32 %v3265, %v3362
        %v3364 = vrot.slane %v3363, 2
        %v3365 = vadd.f32 %v3363, %v3364
        %v3366 = vrot.slane %v3365, 1
        %v3367 = vadd.f32 %v3365, %v3366
        %v3368 = vrot.slane %v3266, 4
        %v3369 = vadd.f32 %v3266, %v3368
        %v3370 = vrot.slane %v3369, 2
        %v3371 = vadd.f32 %v3369, %v3370
        %v3372 = vrot.slane %v3371, 1
        %v3373 = vadd.f32 %v3371, %v3372
        %v3374 = vrot.slane %v3267, 4
        %v3375 = vadd.f32 %v3267, %v3374
        %v3376 = vrot.slane %v3375, 2
        %v3377 = vadd.f32 %v3375, %v3376
        %v3378 = vrot.slane %v3377, 1
        %v3379 = vadd.f32 %v3377, %v3378
        %v3380 = vrot.slane %v3268, 4
        %v3381 = vadd.f32 %v3268, %v3380
        %v3382 = vrot.slane %v3381, 2
        %v3383 = vadd.f32 %v3381, %v3382
        %v3384 = vrot.slane %v3383, 1
        %v3385 = vadd.f32 %v3383, %v3384
        %v3386 = vrot.slane %v3269, 4
        %v3387 = vadd.f32 %v3269, %v3386
        %v3388 = vrot.slane %v3387, 2
        %v3389 = vadd.f32 %v3387, %v3388
        %v3390 = vrot.slane %v3389, 1
        %v3391 = vadd.f32 %v3389, %v3390
        %v3392 = vrot.slane %v3270, 4
        %v3393 = vadd.f32 %v3270, %v3392
        %v3394 = vrot.slane %v3393, 2
        %v3395 = vadd.f32 %v3393, %v3394
        %v3396 = vrot.slane %v3395, 1
        %v3397 = vadd.f32 %v3395, %v3396
        %v3398 = vrot.slane %v3271, 4
        %v3399 = vadd.f32 %v3271, %v3398
        %v3400 = vrot.slane %v3399, 2
        %v3401 = vadd.f32 %v3399, %v3400
        %v3402 = vrot.slane %v3401, 1
        %v3403 = vadd.f32 %v3401, %v3402
        %v3404 = vrot.slane %v3272, 4
        %v3405 = vadd.f32 %v3272, %v3404
        %v3406 = vrot.slane %v3405, 2
        %v3407 = vadd.f32 %v3405, %v3406
        %v3408 = vrot.slane %v3407, 1
        %v3409 = vadd.f32 %v3407, %v3408
        %v3410 = vrot.slane %v3273, 4
        %v3411 = vadd.f32 %v3273, %v3410
        %v3412 = vrot.slane %v3411, 2
        %v3413 = vadd.f32 %v3411, %v3412
        %v3414 = vrot.slane %v3413, 1
        %v3415 = vadd.f32 %v3413, %v3414
        %v3416 = vrot.slane %v3274, 4
        %v3417 = vadd.f32 %v3274, %v3416
        %v3418 = vrot.slane %v3417, 2
        %v3419 = vadd.f32 %v3417, %v3418
        %v3420 = vrot.slane %v3419, 1
        %v3421 = vadd.f32 %v3419, %v3420
        %v3422 = vrot.slane %v3275, 4
        %v3423 = vadd.f32 %v3275, %v3422
        %v3424 = vrot.slane %v3423, 2
        %v3425 = vadd.f32 %v3423, %v3424
        %v3426 = vrot.slane %v3425, 1
        %v3427 = vadd.f32 %v3425, %v3426
        %v3428 = vrot.slane %v3276, 4
        %v3429 = vadd.f32 %v3276, %v3428
        %v3430 = vrot.slane %v3429, 2
        %v3431 = vadd.f32 %v3429, %v3430
        %v3432 = vrot.slane %v3431, 1
        %v3433 = vadd.f32 %v3431, %v3432
        %v3434 = vrot.slane %v3277, 4
        %v3435 = vadd.f32 %v3277, %v3434
        %v3436 = vrot.slane %v3435, 2
        %v3437 = vadd.f32 %v3435, %v3436
        %v3438 = vrot.slane %v3437, 1
        %v3439 = vadd.f32 %v3437, %v3438
        %v3440 = vrot.slane %v3278, 4
        %v3441 = vadd.f32 %v3278, %v3440
        %v3442 = vrot.slane %v3441, 2
        %v3443 = vadd.f32 %v3441, %v3442
        %v3444 = vrot.slane %v3443, 1
        %v3445 = vadd.f32 %v3443, %v3444
        %v3446 = vrot.slane %v3279, 4
        %v3447 = vadd.f32 %v3279, %v3446
        %v3448 = vrot.slane %v3447, 2
        %v3449 = vadd.f32 %v3447, %v3448
        %v3450 = vrot.slane %v3449, 1
        %v3451 = vadd.f32 %v3449, %v3450
        %v3452 = vrot.slane %v3280, 4
        %v3453 = vadd.f32 %v3280, %v3452
        %v3454 = vrot.slane %v3453, 2
        %v3455 = vadd.f32 %v3453, %v3454
        %v3456 = vrot.slane %v3455, 1
        %v3457 = vadd.f32 %v3455, %v3456
        %v3458 = vrot.slane %v3281, 4
        %v3459 = vadd.f32 %v3281, %v3458
        %v3460 = vrot.slane %v3459, 2
        %v3461 = vadd.f32 %v3459, %v3460
        %v3462 = vrot.slane %v3461, 1
        %v3463 = vadd.f32 %v3461, %v3462
        %v3464 = vrot.slane %v3282, 4
        %v3465 = vadd.f32 %v3282, %v3464
        %v3466 = vrot.slane %v3465, 2
        %v3467 = vadd.f32 %v3465, %v3466
        %v3468 = vrot.slane %v3467, 1
        %v3469 = vadd.f32 %v3467, %v3468
        %v3470 = vrot.slane %v3283, 4
        %v3471 = vadd.f32 %v3283, %v3470
        %v3472 = vrot.slane %v3471, 2
        %v3473 = vadd.f32 %v3471, %v3472
        %v3474 = vrot.slane %v3473, 1
        %v3475 = vadd.f32 %v3473, %v3474
        %v3476 = vmax.f32 %v3289, 0.0
        %v3477 = vmax.f32 %v3295, 0.0
        %v3478 = vmax.f32 %v3301, 0.0
        %v3479 = vmax.f32 %v3307, 0.0
        %v3480 = vmax.f32 %v3313, 0.0
        %v3481 = vmax.f32 %v3319, 0.0
        %v3482 = vmax.f32 %v3325, 0.0
        %v3483 = vmax.f32 %v3331, 0.0
        %v3484 = vmax.f32 %v3337, 0.0
        %v3485 = vmax.f32 %v3343, 0.0
        %v3486 = vmax.f32 %v3349, 0.0
        %v3487 = vmax.f32 %v3355, 0.0
        %v3488 = vmax.f32 %v3361, 0.0
        %v3489 = vmax.f32 %v3367, 0.0
        %v3490 = vmax.f32 %v3373, 0.0
        %v3491 = vmax.f32 %v3379, 0.0
        %v3492 = vmax.f32 %v3385, 0.0
        %v3493 = vmax.f32 %v3391, 0.0
        %v3494 = vmax.f32 %v3397, 0.0
        %v3495 = vmax.f32 %v3403, 0.0
        %v3496 = vmax.f32 %v3409, 0.0
        %v3497 = vmax.f32 %v3415, 0.0
        %v3498 = vmax.f32 %v3421, 0.0
        %v3499 = vmax.f32 %v3427, 0.0
        %v3500 = vmax.f32 %v3433, 0.0
        %v3501 = vmax.f32 %v3439, 0.0
        %v3502 = vmax.f32 %v3445, 0.0
        %v3503 = vmax.f32 %v3451, 0.0
        %v3504 = vmax.f32 %v3457, 0.0
        %v3505 = vmax.f32 %v3463, 0.0
        %v3506 = vmax.f32 %v3469, 0.0
        %v3507 = vmax.f32 %v3475, 0.0
        %v3508 = vld [vmem:[%s423] sm:$0x1]
        %v3510 = vperm.slane %v3508, 0
        %vm3544 = vcmask 1041409
        %v3545 = vsel %vm3544, %v3477, %v3476
        %vm3546 = vcmask 1042434
        %v3547 = vsel %vm3546, %v3478, %v3545
        %vm3548 = vcmask 1043459
        %v3549 = vsel %vm3548, %v3479, %v3547
        %vm3550 = vcmask 1044484
        %v3551 = vsel %vm3550, %v3480, %v3549
        %vm3552 = vcmask 1045509
        %v3553 = vsel %vm3552, %v3481, %v3551
        %vm3554 = vcmask 1046534
        %v3555 = vsel %vm3554, %v3482, %v3553
        %vm3556 = vcmask 1047559
        %v3557 = vsel %vm3556, %v3483, %v3555
        %v3558 = vsel %vm3544, %v3485, %v3484
        %v3559 = vsel %vm3546, %v3486, %v3558
        %v3560 = vsel %vm3548, %v3487, %v3559
        %v3561 = vsel %vm3550, %v3488, %v3560
        %v3562 = vsel %vm3552, %v3489, %v3561
        %v3563 = vsel %vm3554, %v3490, %v3562
        %v3564 = vsel %vm3556, %v3491, %v3563
        %v3565 = vsel %vm3544, %v3493, %v3492
        %v3566 = vsel %vm3546, %v3494, %v3565
        %v3567 = vsel %vm3548, %v3495, %v3566
        %v3568 = vsel %vm3550, %v3496, %v3567
        %v3569 = vsel %vm3552, %v3497, %v3568
        %v3570 = vsel %vm3554, %v3498, %v3569
        %v3571 = vsel %vm3556, %v3499, %v3570
        %v3572 = vsel %vm3544, %v3501, %v3500
        %v3573 = vsel %vm3546, %v3502, %v3572
        %v3574 = vsel %vm3548, %v3503, %v3573
        %v3575 = vsel %vm3550, %v3504, %v3574
        %v3576 = vsel %vm3552, %v3505, %v3575
        %v3577 = vsel %vm3554, %v3506, %v3576
        %v3578 = vsel %vm3556, %v3507, %v3577
        %v3583 = vmul.f32 %v3510, %v3557
        %v3584 = vmul.f32 %v3510, %v3564
        %v3585 = vmul.f32 %v3510, %v3571
        %v3586 = vmul.f32 %v3510, %v3578
        %v3587 = vmax.f32 %v3583, 1e-16
        %v3588 = vmax.f32 %v3584, 1e-16
        %v3589 = vmax.f32 %v3585, 1e-16
        %v3590 = vmax.f32 %v3586, 1e-16
        %v3591 = vrsqrt.pop %v3587
        %v3592 = vmul.f32 %v3591, %v3587
        %v3593 = vmul.f32 %v3592, %v3591
        %v3594 = vmul.f32 0.5, %v3593
        %v3595 = vsub.f32 1.5, %v3594
        %v3596 = vmul.f32 %v3591, %v3595
        %vm3597 = vweird.f32 %v3587
        %vm3598 = vweird.f32 %v3591
        %vm3599 = vmor %vm3597, %vm3598
        %v3600 = vsel %vm3599, %v3591, %v3596
        %v3601 = vrsqrt.pop %v3588
        %v3602 = vmul.f32 %v3601, %v3588
        %v3603 = vmul.f32 %v3602, %v3601
        %v3604 = vmul.f32 0.5, %v3603
        %v3605 = vsub.f32 1.5, %v3604
        %v3606 = vmul.f32 %v3601, %v3605
        %vm3607 = vweird.f32 %v3588
        %vm3608 = vweird.f32 %v3601
        %vm3609 = vmor %vm3607, %vm3608
        %v3610 = vsel %vm3609, %v3601, %v3606
        %v3611 = vrsqrt.pop %v3589
        %v3612 = vmul.f32 %v3611, %v3589
        %v3613 = vmul.f32 %v3612, %v3611
        %v3614 = vmul.f32 0.5, %v3613
        %v3615 = vsub.f32 1.5, %v3614
        %v3616 = vmul.f32 %v3611, %v3615
        %vm3617 = vweird.f32 %v3589
        %vm3618 = vweird.f32 %v3611
        %vm3619 = vmor %vm3617, %vm3618
        %v3620 = vsel %vm3619, %v3611, %v3616
        %v3621 = vrsqrt.pop %v3590
        %v3622 = vmul.f32 %v3621, %v3590
        %v3623 = vmul.f32 %v3622, %v3621
        %v3624 = vmul.f32 0.5, %v3623
        %v3625 = vsub.f32 1.5, %v3624
        %v3626 = vmul.f32 %v3621, %v3625
        %vm3627 = vweird.f32 %v3590
        %vm3628 = vweird.f32 %v3621
        %vm3629 = vmor %vm3627, %vm3628
        %v3630 = vsel %vm3629, %v3621, %v3626
        %v3635 = vrot.slane %v3600, 1
        %v3636 = vrot.slane %v3600, 2
        %v3637 = vrot.slane %v3600, 3
        %v3638 = vrot.slane %v3600, 4
        %v3639 = vrot.slane %v3600, 5
        %v3640 = vrot.slane %v3600, 6
        %v3641 = vrot.slane %v3600, 7
        %v3642 = vrot.slane %v3610, 1
        %v3643 = vrot.slane %v3610, 2
        %v3644 = vrot.slane %v3610, 3
        %v3645 = vrot.slane %v3610, 4
        %v3646 = vrot.slane %v3610, 5
        %v3647 = vrot.slane %v3610, 6
        %v3648 = vrot.slane %v3610, 7
        %v3649 = vrot.slane %v3620, 1
        %v3650 = vrot.slane %v3620, 2
        %v3651 = vrot.slane %v3620, 3
        %v3652 = vrot.slane %v3620, 4
        %v3653 = vrot.slane %v3620, 5
        %v3654 = vrot.slane %v3620, 6
        %v3655 = vrot.slane %v3620, 7
        %v3656 = vrot.slane %v3630, 1
        %v3657 = vrot.slane %v3630, 2
        %v3658 = vrot.slane %v3630, 3
        %v3659 = vrot.slane %v3630, 4
        %v3660 = vrot.slane %v3630, 5
        %v3661 = vrot.slane %v3630, 6
        %v3662 = vrot.slane %v3630, 7
        %v3695 = vmul.f32 %v2296, %v3600
        %v3696 = vmul.f32 %v2302, %v3635
        %v3697 = vmul.f32 %v2308, %v3636
        %v3698 = vmul.f32 %v2314, %v3637
        %v3699 = vmul.f32 %v2320, %v3638
        %v3700 = vmul.f32 %v2326, %v3639
        %v3701 = vmul.f32 %v2332, %v3640
        %v3702 = vmul.f32 %v2338, %v3641
        %v3703 = vmul.f32 %v2344, %v3610
        %v3704 = vmul.f32 %v2350, %v3642
        %v3705 = vmul.f32 %v2356, %v3643
        %v3706 = vmul.f32 %v2362, %v3644
        %v3707 = vmul.f32 %v2368, %v3645
        %v3708 = vmul.f32 %v2374, %v3646
        %v3709 = vmul.f32 %v2380, %v3647
        %v3710 = vmul.f32 %v2386, %v3648
        %v3711 = vmul.f32 %v2392, %v3620
        %v3712 = vmul.f32 %v2398, %v3649
        %v3713 = vmul.f32 %v2404, %v3650
        %v3714 = vmul.f32 %v2410, %v3651
        %v3715 = vmul.f32 %v2416, %v3652
        %v3716 = vmul.f32 %v2422, %v3653
        %v3717 = vmul.f32 %v2428, %v3654
        %v3718 = vmul.f32 %v2434, %v3655
        %v3719 = vmul.f32 %v2440, %v3630
        %v3720 = vmul.f32 %v2446, %v3656
        %v3721 = vmul.f32 %v2452, %v3657
        %v3722 = vmul.f32 %v2458, %v3658
        %v3723 = vmul.f32 %v2464, %v3659
        %v3724 = vmul.f32 %v2470, %v3660
        %v3725 = vmul.f32 %v2476, %v3661
        %v3726 = vmul.f32 %v2482, %v3662
        %v3727 = vld [vmem:[%s434] sm:$0xff]
        %v3728 = vld [vmem:[%s434 + $0x8] sm:$0xff]
        %v3729 = vld [vmem:[%s434 + $0x10] sm:$0xff]
        %v3730 = vld [vmem:[%s434 + $0x18] sm:$0xff]
        %v3731 = vld [vmem:[%s434 + $0x20] sm:$0xff]
        %v3732 = vld [vmem:[%s434 + $0x28] sm:$0xff]
        %v3733 = vld [vmem:[%s434 + $0x30] sm:$0xff]
        %v3734 = vld [vmem:[%s434 + $0x38] sm:$0xff]
        %v3735 = vld [vmem:[%s434 + $0x40] sm:$0xff]
        %v3736 = vld [vmem:[%s434 + $0x48] sm:$0xff]
        %v3737 = vld [vmem:[%s434 + $0x50] sm:$0xff]
        %v3738 = vld [vmem:[%s434 + $0x58] sm:$0xff]
        %v3739 = vld [vmem:[%s434 + $0x60] sm:$0xff]
        %v3740 = vld [vmem:[%s434 + $0x68] sm:$0xff]
        %v3741 = vld [vmem:[%s434 + $0x70] sm:$0xff]
        %v3742 = vld [vmem:[%s434 + $0x78] sm:$0xff]
        %3743 = vxpose.xlu0.b32.start [1/16] %v3727, 128
        %3744 = vxpose.xlu0.b32.cont [2/16] %v3728, 128
        %3745 = vxpose.xlu0.b32.cont [3/16] %v3729, 128
        %3746 = vxpose.xlu0.b32.cont [4/16] %v3730, 128
        %3747 = vxpose.xlu0.b32.cont [5/16] %v3731, 128
        %3748 = vxpose.xlu0.b32.cont [6/16] %v3732, 128
        %3749 = vxpose.xlu0.b32.cont [7/16] %v3733, 128
        %3750 = vxpose.xlu0.b32.cont [8/16] %v3734, 128
        %3751 = vxpose.xlu0.b32.cont [9/16] %v3735, 128
        %3752 = vxpose.xlu0.b32.cont [10/16] %v3736, 128
        %3753 = vxpose.xlu0.b32.cont [11/16] %v3737, 128
        %3754 = vxpose.xlu0.b32.cont [12/16] %v3738, 128
        %3755 = vxpose.xlu0.b32.cont [13/16] %v3739, 128
        %3756 = vxpose.xlu0.b32.cont [14/16] %v3740, 128
        %3757 = vxpose.xlu0.b32.cont [15/16] %v3741, 128
        %3758 = vxpose.xlu0.b32.end [16/16] %v3742, 128
        %v3759 = vpop.trf.xlu0
        %v3760 = vpop.trf.xlu0
        %v3761 = vpop.trf.xlu0
        %v3762 = vpop.trf.xlu0
        %v3763 = vpop.trf.xlu0
        %v3764 = vpop.trf.xlu0
        %v3765 = vpop.trf.xlu0
        %v3766 = vpop.trf.xlu0
        %v3767 = vpop.trf.xlu0
        %v3768 = vpop.trf.xlu0
        %v3769 = vpop.trf.xlu0
        %v3770 = vpop.trf.xlu0
        %v3771 = vpop.trf.xlu0
        %v3772 = vpop.trf.xlu0
        %v3773 = vpop.trf.xlu0
        %v3774 = vpop.trf.xlu0
        %v3807 = vrot.slane %v3696, 7
        %v3808 = vsel %vm3544, %v3807, %v3695
        %v3809 = vrot.slane %v3697, 6
        %v3810 = vsel %vm3546, %v3809, %v3808
        %v3811 = vrot.slane %v3698, 5
        %v3812 = vsel %vm3548, %v3811, %v3810
        %v3813 = vrot.slane %v3699, 4
        %v3814 = vsel %vm3550, %v3813, %v3812
        %v3815 = vrot.slane %v3700, 3
        %v3816 = vsel %vm3552, %v3815, %v3814
        %v3817 = vrot.slane %v3701, 2
        %v3818 = vsel %vm3554, %v3817, %v3816
        %v3819 = vrot.slane %v3702, 1
        %v3820 = vsel %vm3556, %v3819, %v3818
        %v3821 = vrot.slane %v3704, 7
        %v3822 = vsel %vm3544, %v3821, %v3703
        %v3823 = vrot.slane %v3705, 6
        %v3824 = vsel %vm3546, %v3823, %v3822
        %v3825 = vrot.slane %v3706, 5
        %v3826 = vsel %vm3548, %v3825, %v3824
        %v3827 = vrot.slane %v3707, 4
        %v3828 = vsel %vm3550, %v3827, %v3826
        %v3829 = vrot.slane %v3708, 3
        %v3830 = vsel %vm3552, %v3829, %v3828
        %v3831 = vrot.slane %v3709, 2
        %v3832 = vsel %vm3554, %v3831, %v3830
        %v3833 = vrot.slane %v3710, 1
        %v3834 = vsel %vm3556, %v3833, %v3832
        %v3835 = vrot.slane %v3712, 7
        %v3836 = vsel %vm3544, %v3835, %v3711
        %v3837 = vrot.slane %v3713, 6
        %v3838 = vsel %vm3546, %v3837, %v3836
        %v3839 = vrot.slane %v3714, 5
        %v3840 = vsel %vm3548, %v3839, %v3838
        %v3841 = vrot.slane %v3715, 4
        %v3842 = vsel %vm3550, %v3841, %v3840
        %v3843 = vrot.slane %v3716, 3
        %v3844 = vsel %vm3552, %v3843, %v3842
        %v3845 = vrot.slane %v3717, 2
        %v3846 = vsel %vm3554, %v3845, %v3844
        %v3847 = vrot.slane %v3718, 1
        %v3848 = vsel %vm3556, %v3847, %v3846
        %v3849 = vrot.slane %v3720, 7
        %v3850 = vsel %vm3544, %v3849, %v3719
        %v3851 = vrot.slane %v3721, 6
        %v3852 = vsel %vm3546, %v3851, %v3850
        %v3853 = vrot.slane %v3722, 5
        %v3854 = vsel %vm3548, %v3853, %v3852
        %v3855 = vrot.slane %v3723, 4
        %v3856 = vsel %vm3550, %v3855, %v3854
        %v3857 = vrot.slane %v3724, 3
        %v3858 = vsel %vm3552, %v3857, %v3856
        %v3859 = vrot.slane %v3725, 2
        %v3860 = vsel %vm3554, %v3859, %v3858
        %v3861 = vrot.slane %v3726, 1
        %v3862 = vsel %vm3556, %v3861, %v3860
        %3867 = vmatpush.xpose.msra.mxu0 0.0
        %3868 = vmatpush.xpose.msra.mxu0 0.0
        %3869 = vmatpush.xpose.msra.mxu0 0.0
        %3870 = vmatpush.xpose.msra.mxu0 0.0
        %3871 = vmatpush.xpose.msra.mxu0 0.0
        %3872 = vmatpush.xpose.msra.mxu0 0.0
        %3873 = vmatpush.xpose.msra.mxu0 0.0
        %3874 = vmatpush.xpose.msra.mxu0 0.0
        %3875 = vmatpush.xpose.msra.mxu0 0.0
        %3876 = vmatpush.xpose.msra.mxu0 0.0
        %3877 = vmatpush.xpose.msra.mxu0 0.0
        %3878 = vmatpush.xpose.msra.mxu0 0.0
        %3879 = vmatpush.xpose.msra.mxu0 %v3862
        %3880 = vmatpush.xpose.msra.mxu0 %v3848
        %3881 = vmatpush.xpose.msra.mxu0 %v3834
        %3882 = vmatpush.xpose.msra.mxu0 %v3820
        %3883 = vmatmul.f32.gmra.mxu0 %v3759
        %v3884 = vpop.f32.mrf.mxu0
        %v3885 = vadd.f32 0.0, %v3884
        %3886 = vmatmul.f32.gmra.mxu0 %v3760
        %v3887 = vpop.f32.mrf.mxu0
        %v3888 = vadd.f32 0.0, %v3887
        %3889 = vdwg.mxu0
        %vm3890 = vcmask 261120
        %3891 = vst.msk [vmem:[%s399] sm:$0xff] %vm3890, %v3885
        %3892 = vst.msk [vmem:[%s399 + $0x8] sm:$0xff] %vm3890, %v3888
        %s3893 = sand.u32 %s247, 1
        %s3894 = scalar_lea.sflag [#allocation3], %s3893
        %s3895 = sand.u32 %s247, 1
        %s3896 = smul.addr %s3895, 16
        %s3897 = scalar_lea.vmem [#allocation2], %s3896
        // Predicated region
        $region53: #{tpu_custom_call.1} parent=51 // pred_check
          %p3898 = pneg %p257
        $region54: #{tpu_custom_call.1} parent=51 // pred_check_branch
          %3900 = sbr.rel (%p3898) target = $region56
        $region55: #{tpu_custom_call.1} parent=51 // pred_region
          %s3901 = smul.u32 2, %s27
          %3903 = vsyncadd %s3894, 0
          %s3904 = sadd.s32 %s26, %s3901
          %s3905 = smul.addr %s3904, 8
          %s3906 = scalar_lea.hbm %s8, %s3905
          %s3907 = sshll.u32 %s3897, 4
          %s3908 = int_to_ptr.vmem [resolvable:$true] %s3907
          %s3909 = sshll.u32 %s3906, 4
          %s3910 = int_to_ptr.hbm [resolvable:$true] %s3909
          %3915 = dma.vmem_to_hbm [thread:$0]  %s3908, 256, %s3910, %s3894, 128, 128, 8
        $region56: #{tpu_custom_call.1} parent=51 // pred_fallthru
          _
      $region52: #{tpu_custom_call.1} parent=5 // pred_fallthru
        _
      %p3916 = scmp.le.s32.totalorder 2, %s17
      // Predicated region
      $region57: #{tpu_custom_call.1} parent=5 // pred_check
        %p3917 = pneg %p3916
      $region58: #{tpu_custom_call.1} parent=5 // pred_check_branch
        %3919 = sbr.rel (%p3917) target = $region60
      $region59: #{tpu_custom_call.1} parent=5 // pred_region
        %s3920 = ssub.s32 %s17, 2
        // Predicated region
        $region61: #{tpu_custom_call.1} parent=59 // pred_check
          %p3921 = pneg %p263
        $region62: #{tpu_custom_call.1} parent=59 // pred_check_branch
          %3923 = sbr.rel (%p3921) target = $region64
        $region63: #{tpu_custom_call.1} parent=59 // pred_region
          %s3924 = sand.u32 %s248, 1
          %s3925 = scalar_lea.sflag [#allocation3], %s3924
          %s3926 = sand.u32 %s248, 1
          %s3927 = smul.addr %s3926, 16
          %s3928 = scalar_lea.vmem [#allocation2], %s3927
          %3930 = dma.done %s3925, 256
        $region64: #{tpu_custom_call.1} parent=59 // pred_fallthru
          _
      $region60: #{tpu_custom_call.1} parent=5 // pred_fallthru
        _
    $region6: #{tpu_custom_call.1} parent=1 // loop_footer
      %s21 = sadd.s32 1, %s17
    $region7: #{tpu_custom_call.1} parent=1 // loop_footer_branch
      %16 = sbr.rel target = $region3
    $region8: #{tpu_custom_call.1} parent=1 // loop_exit
      _
    %3931 = vsyncpa [#allocation3], 1
    %s3932 = scalar_lea.sflag [#allocation3], 1
    %3933 = vsyncpa %s3932, 1

</llo_original>
